<compile_context>
chip_gen: v5e
topology: v5e:2x2
jax: 0.10.0
libtpu: 0.0.40
codegen_flags: <defaults>
</compile_context>

<pallas_src>
import functools

import jax
import jax.numpy as jnp
from jax.experimental import pallas as pl
from jax.experimental.pallas import tpu as pltpu

# Make the pure-JAX reference's f32 matmuls exact so the f32-kernel check can
# use a tight tolerance (the review flagged the old 1e-2 tolerance as loose).
jax.config.update("jax_default_matmul_precision", "highest")

Z_RATIO = 0.8
LN_EPS = 1e-5
LANE = 128
SUBLANE = 8


def _round_up(x, m):
    return ((x + m - 1) // m) * m


# ----------------------------------------------------------------------------
# Fused Pallas kernel: post-emb LN + all GLASSConv layers + pool + pred head
# ----------------------------------------------------------------------------
def fused_noglass_kernel(h_ref, pg_ref, pb_ref, a_ref,
                         w01_ref, b01_ref, gamma_ref, beta_ref,
                         wch_ref, wcx_ref, bc_ref,
                         pool_ref, wp_ref, bp_ref,
                         o_ref, x_scr, *, inv_h):
    l = pl.program_id(0)
    hp = x_scr.shape[-1]
    cdt = w01_ref.dtype                    # matmul operand dtype (bf16 or f32)

    def layer_norm(v, gamma, beta):
        # Single-pass LN (mean & mean-of-squares) in f32.  Padded columns hold
        # zeros and gamma/beta are zero-padded, so stats over the 1/inv_h real
        # columns are exact and padded columns come out exactly zero.
        mean = jnp.sum(v, axis=-1, keepdims=True) * inv_h
        ex2 = jnp.sum(v * v, axis=-1, keepdims=True) * inv_h
        var = ex2 - mean * mean
        return (v - mean) * jax.lax.rsqrt(var + LN_EPS) * gamma + beta

    # --- layer 0: embedding post-LayerNorm, result becomes the resident state.
    @pl.when(l == 0)
    def _():
        x_scr[...] = layer_norm(h_ref[...], pg_ref[...], pb_ref[...])

    x = x_scr[...]                                                  # (Np, Hp) f32
    xc = x.astype(cdt)

    # trans_fns fused into one (Hp, 2Hp) dot; ReLU commutes with the concat.
    # Hp is a multiple of 128 so the two halves are lane-tile aligned slices.
    h01 = jnp.maximum(
        jnp.dot(xc, w01_ref[0], preferred_element_type=jnp.float32)
        + b01_ref[0], 0.0)                                          # (Np, 2Hp)
    mix = Z_RATIO * h01[:, :hp] + (1.0 - Z_RATIO) * h01[:, hp:]     # (Np, Hp)

    # spmm_mean(adj, mix): A is pre-normalized by row edge-count in the wrapper.
    # TODO(synk): for large N keep A in HBM (memory_space=pl.ANY) and row-tile this dot (emit_pipeline) so the O(N^2) adjacency is never VMEM-resident (decisive on v7x's 64 MiB).
    agg = jnp.dot(a_ref[...], mix.astype(cdt), preferred_element_type=jnp.float32)

    ln = layer_norm(agg, gamma_ref[0], beta_ref[0])

    # comb_fns: the 0.8/0.2 mix and the +x residual are linear, so both were
    # folded into wch/wcx/bc in the wrapper -> two (Hp,Hp) dots, no blend/slice.
    out = (jnp.dot(ln.astype(cdt), wch_ref[0], preferred_element_type=jnp.float32)
           + jnp.dot(xc, wcx_ref[0], preferred_element_type=jnp.float32)
           + bc_ref[0])
    x_scr[...] = out

    # --- last layer: masked-mean pool (as a matmul) + pred linear head.
    @pl.when(l == pl.num_programs(0) - 1)
    def _():
        pooled = jnp.dot(pool_ref[...], out.astype(cdt),
                         preferred_element_type=jnp.float32)        # (Bp, Hp)
        o_ref[...] = jnp.dot(pooled.astype(cdt), wp_ref[...],
                             preferred_element_type=jnp.float32) + bp_ref[...]

    # TODO(synk): on v7x split the node rows across the two TensorCores (CORE_PARALLEL / pl.core_map); the layer-only grid here uses a single TC.
    # TODO(synk): dropout layers are eval-mode identities; training-mode dropout would use pltpu.prng_seed / prng_random_bits.


# ----------------------------------------------------------------------------
# One-time preparation (hoisted out of the per-call hot path, per perf review)
# ----------------------------------------------------------------------------
def prepare_model(params, matmul_dtype=jnp.bfloat16):
    """Pad to TPU tile sizes, fold the linear comb-mix + residual into the
    weights, concat the paired trans weights, and stack per-layer tensors.
    Runs ONCE per model."""
    h = params["emb_table"].shape[1]
    k = params["pred_w"].shape[1]
    hp = _round_up(max(h, LANE), LANE)
    kp = _round_up(max(k, LANE), LANE)

    def pad(m, rows, cols):
        z = jnp.zeros((rows, cols), jnp.float32)
        return z.at[:m.shape[0], :m.shape[1]].set(m.astype(jnp.float32))

    eye = jnp.eye(h, dtype=jnp.float32)          # +x residual folded into wcx
    w01, b01, gamma, beta, wch, wcx, bc = [], [], [], [], [], [], []
    for lp in params["layers"]:
        w01.append(jnp.concatenate([pad(lp["w0"], hp, hp), pad(lp["w1"], hp, hp)], -1))
        b01.append(jnp.concatenate([pad(lp["b0"], 1, hp), pad(lp["b1"], 1, hp)], -1))
        gamma.append(pad(lp["gamma"], 1, hp))
        beta.append(pad(lp["beta"], 1, hp))
        wch.append(pad(Z_RATIO * lp["wc0h"] + (1.0 - Z_RATIO) * lp["wc1h"], hp, hp))
        wcx.append(pad(Z_RATIO * lp["wc0x"] + (1.0 - Z_RATIO) * lp["wc1x"] + eye, hp, hp))
        bc.append(pad(Z_RATIO * lp["bc0"] + (1.0 - Z_RATIO) * lp["bc1"], 1, hp))

    return {
        "emb": pad(params["emb_table"], params["emb_table"].shape[0], hp),
        "pg": pad(params["post_gamma"], 1, hp),
        "pb": pad(params["post_beta"], 1, hp),
        "w01": jnp.stack(w01).astype(matmul_dtype),     # (L, Hp, 2Hp)
        "b01": jnp.stack(b01),                          # (L, 1, 2Hp)  f32
        "gamma": jnp.stack(gamma),                      # (L, 1, Hp)   f32
        "beta": jnp.stack(beta),                        # (L, 1, Hp)   f32
        "wch": jnp.stack(wch).astype(matmul_dtype),     # (L, Hp, Hp)
        "wcx": jnp.stack(wcx).astype(matmul_dtype),     # (L, Hp, Hp)
        "bc": jnp.stack(bc),                            # (L, 1, Hp)   f32
        "wp": pad(params["pred_w"], hp, kp).astype(matmul_dtype),
        "bp": pad(params["pred_b"], 1, kp),
    }


def prepare_graph(edge_index, edge_weight, subg_mask, n_node,
                  matmul_dtype=jnp.bfloat16):
    """Dense row-normalized adjacency (buildAdj + spmm_mean normalization) and
    the mean-pool matrix.  Runs ONCE per graph."""
    np_ = _round_up(max(n_node, SUBLANE), SUBLANE)
    bp_ = _round_up(max(subg_mask.shape[0], SUBLANE), SUBLANE)
    a = jnp.zeros((np_, np_), jnp.float32).at[edge_index[0], edge_index[1]].add(edge_weight)
    rowcount = jnp.zeros((np_,), jnp.float32).at[edge_index[0]].add(1.0)
    a_norm = (a / jnp.maximum(rowcount, 1.0)[:, None]).astype(matmul_dtype)

    mask = subg_mask.astype(jnp.float32)                               # (B, N)
    pool = mask / jnp.maximum(mask.sum(axis=1, keepdims=True), 1.0)
    pool_mat = jnp.zeros((bp_, np_), jnp.float32)
    pool_mat = pool_mat.at[:mask.shape[0], :mask.shape[1]].set(pool)
    return a_norm, pool_mat.astype(matmul_dtype)


# ----------------------------------------------------------------------------
# pipeline_mode=pl.Buffered(1) support probe (grid-invariant inputs need only
# one VMEM buffer; fall back to default double-buffering if unsupported)
# ----------------------------------------------------------------------------
_SINGLE_BUFFER_OK = None


def _single_buffer_ok():
    global _SINGLE_BUFFER_OK
    if _SINGLE_BUFFER_OK is None:
        try:
            spec = pl.BlockSpec((8, 128), lambda i: (0, 0),
                                pipeline_mode=pl.Buffered(1))

            def _k(x_ref, o_ref):
                o_ref[...] = x_ref[...] + 1.0

            y = pl.pallas_call(
                _k, out_shape=jax.ShapeDtypeStruct((8, 128), jnp.float32),
                grid=(2,), in_specs=[spec],
                out_specs=pl.BlockSpec((8, 128), lambda i: (0, 0)),
            )(jnp.zeros((8, 128), jnp.float32))
            jax.block_until_ready(y)
            _SINGLE_BUFFER_OK = True
        except Exception:  # noqa: BLE001 — any failure -> default buffering
            _SINGLE_BUFFER_OK = False
    return _SINGLE_BUFFER_OK


# ----------------------------------------------------------------------------
# Hot path: embedding gather + ONE pallas_call
# ----------------------------------------------------------------------------
@functools.partial(jax.jit, static_argnames=("h_true", "single_buffer"))
def noglass_apply(x_nodes, a_norm, pool_mat, w, h_true, single_buffer):
    np_ = a_norm.shape[0]
    hp = w["emb"].shape[1]
    kp = w["wp"].shape[1]
    bp_ = pool_mat.shape[0]
    num_layers = w["w01"].shape[0]
    n_node = x_nodes.shape[0]

    # EmbZGConv.input_emb gather (glue); the post_emb LayerNorm is fused into
    # layer 0 of the kernel.  Padded node rows / hidden columns stay zero.
    h_raw = jnp.zeros((np_, hp), jnp.float32).at[:n_node].set(w["emb"][x_nodes])

    def inv_spec(shape):
        idx = lambda l, _n=len(shape): (0,) * _n
        if single_buffer:
            return pl.BlockSpec(shape, idx, pipeline_mode=pl.Buffered(1))
        return pl.BlockSpec(shape, idx)

    def per_layer_spec(shape):
        # TODO(synk): bump to pipeline_mode=pl.Buffered(3) if profiling shows the per-layer weight DMA exposed.
        n_rest = len(shape) - 1
        return pl.BlockSpec((1,) + tuple(shape[1:]),
                            lambda l, _n=n_rest: (l,) + (0,) * _n)

    kernel = functools.partial(fused_noglass_kernel, inv_h=1.0 / float(h_true))

    out = pl.pallas_call(
        kernel,
        out_shape=jax.ShapeDtypeStruct((bp_, kp), jnp.float32),
        grid=(num_layers,),
        in_specs=[
            inv_spec((np_, hp)),                      # embedded node features
            inv_spec((1, hp)), inv_spec((1, hp)),     # post_emb LN gamma/beta
            inv_spec((np_, np_)),                     # row-normalized adjacency
            per_layer_spec(w["w01"].shape),
            per_layer_spec(w["b01"].shape),
            per_layer_spec(w["gamma"].shape),
            per_layer_spec(w["beta"].shape),
            per_layer_spec(w["wch"].shape),
            per_layer_spec(w["wcx"].shape),
            per_layer_spec(w["bc"].shape),
            inv_spec((bp_, np_)),                     # mean-pool matrix
            inv_spec((hp, kp)), inv_spec((1, kp)),    # pred head
        ],
        out_specs=pl.BlockSpec((bp_, kp), lambda l: (0, 0)),
        scratch_shapes=[pltpu.VMEM((np_, hp), jnp.float32)],
        compiler_params=pltpu.CompilerParams(
            dimension_semantics=("arbitrary",),
            vmem_limit_bytes=64 * 1024 * 1024),
    )(h_raw, w["pg"], w["pb"], a_norm,
      w["w01"], w["b01"], w["gamma"], w["beta"],
      w["wch"], w["wcx"], w["bc"],
      pool_mat, w["wp"], w["bp"])
    return out


def noglass_forward(x_nodes, edge_index, edge_weight, subg_mask, params,
                    matmul_dtype=jnp.bfloat16):
    # prepare_* run once per model / per graph; only noglass_apply is hot.
    w = prepare_model(params, matmul_dtype)
    a_norm, pool_mat = prepare_graph(edge_index, edge_weight, subg_mask,
                                     x_nodes.shape[0], matmul_dtype)
    out = noglass_apply(x_nodes, a_norm, pool_mat, w,
                        h_true=params["emb_table"].shape[1],
                        single_buffer=_single_buffer_ok())
    return out[:subg_mask.shape[0], :params["pred_w"].shape[1]]


# ----------------------------------------------------------------------------
# Pure-JAX reference (original semantics: repeat over subgraphs, per-layer ops)
# ----------------------------------------------------------------------------
def reference_forward(x_nodes, edge_index, edge_weight, subg_mask, params):
    N = x_nodes.shape[0]
    B = subg_mask.shape[0]
    a = jnp.zeros((N, N), jnp.float32).at[edge_index[0], edge_index[1]].add(edge_weight)
    rowcount = jnp.zeros((N,), jnp.float32).at[edge_index[0]].add(1.0)
    a_norm = a / jnp.maximum(rowcount, 1.0)[:, None]

    def ln(v, g, b):
        mu = v.mean(-1, keepdims=True)
        var = ((v - mu) ** 2).mean(-1, keepdims=True)
        return (v - mu) / jnp.sqrt(var + LN_EPS) * g + b

    h = params["emb_table"][x_nodes]
    h = ln(h, params["post_gamma"], params["post_beta"])
    x = jnp.broadcast_to(h[None], (B, N, h.shape[-1]))

    for lp in params["layers"]:
        x0_in = x
        h0 = jax.nn.relu(x @ lp["w0"] + lp["b0"])
        h1 = jax.nn.relu(x @ lp["w1"] + lp["b1"])
        mix = Z_RATIO * h0 + (1.0 - Z_RATIO) * h1
        agg = jnp.einsum("ij,bjc->bic", a_norm, mix)
        lnx = ln(agg, lp["gamma"], lp["beta"])
        c0 = lnx @ lp["wc0h"] + x @ lp["wc0x"] + lp["bc0"]
        c1 = lnx @ lp["wc1h"] + x @ lp["wc1x"] + lp["bc1"]
        x = Z_RATIO * c0 + (1.0 - Z_RATIO) * c1 + x0_in

    m = subg_mask[:, :, None]
    pooled = (x * m).sum(1) / jnp.maximum(m.sum(1), 1.0)
    return pooled @ params["pred_w"] + params["pred_b"]


# ----------------------------------------------------------------------------
# Deterministic synthetic parameters & inputs
# ----------------------------------------------------------------------------
def make_params(key, hidden, num_layers, max_deg, num_classes):
    def nrm(k, shape, scale=0.2):
        return scale * jax.random.normal(k, shape, jnp.float32)

    keys = iter(jax.random.split(key, 8 + 12 * num_layers))
    params = {
        "emb_table": nrm(next(keys), (max_deg + 1, hidden)),
        "post_gamma": jnp.ones((1, hidden), jnp.float32),
        "post_beta": jnp.zeros((1, hidden), jnp.float32),
        "pred_w": nrm(next(keys), (hidden, num_classes)),
        "pred_b": nrm(next(keys), (1, num_classes)),
        "layers": [],
    }
    for _ in range(num_layers):
        params["layers"].append({
            "w0": nrm(next(keys), (hidden, hidden)),
            "b0": nrm(next(keys), (1, hidden)),
            "w1": nrm(next(keys), (hidden, hidden)),
            "b1": nrm(next(keys), (1, hidden)),
            "gamma": jnp.ones((1, hidden), jnp.float32),
            "beta": jnp.zeros((1, hidden), jnp.float32),
            "wc0h": nrm(next(keys), (hidden, hidden)),
            "wc0x": nrm(next(keys), (hidden, hidden)),
            "bc0": nrm(next(keys), (1, hidden)),
            "wc1h": nrm(next(keys), (hidden, hidden)),
            "wc1x": nrm(next(keys), (hidden, hidden)),
            "bc1": nrm(next(keys), (1, hidden)),
        })
    return params


if __name__ == "__main__":
    B, N, H, K = 3, 16, 32, 2      # num_subg, num_node, hidden=output, classes
    MAX_DEG = 8
    E = 48
    NUM_LAYERS = 2

    key = jax.random.PRNGKey(0)
    k_param, k_x, k_src, k_dst, k_w, k_mask = jax.random.split(key, 6)

    params = make_params(k_param, H, NUM_LAYERS, MAX_DEG, K)

    x_nodes = jax.random.randint(k_x, (N,), 0, MAX_DEG + 1)
    edge_index = jnp.stack([jax.random.randint(k_src, (E,), 0, N),
                            jax.random.randint(k_dst, (E,), 0, N)], axis=0)
    edge_weight = jax.random.uniform(k_w, (E,), jnp.float32, 0.1, 1.0)
    subg_mask = jax.random.bernoulli(k_mask, 0.5, (B, N)).astype(jnp.float32)
    subg_mask = subg_mask.at[:, 0].set(1.0)     # every subgraph has >= 1 node

    ref = jax.block_until_ready(
        reference_forward(x_nodes, edge_index, edge_weight, subg_mask, params))

    # f32 matmul path: tight numerical check of the fused/folded algebra.
    out_f32 = jax.block_until_ready(
        noglass_forward(x_nodes, edge_index, edge_weight, subg_mask, params,
                        matmul_dtype=jnp.float32))
    assert out_f32.shape == (B, K), out_f32.shape
    assert jnp.allclose(out_f32, ref, rtol=1e-4, atol=1e-4), (out_f32, ref)

    # bf16 matmul path (performance mode): bf16 MXU operands, f32 accumulation.
    out_bf16 = jax.block_until_ready(
        noglass_forward(x_nodes, edge_index, edge_weight, subg_mask, params,
                        matmul_dtype=jnp.bfloat16))
    assert out_bf16.shape == (B, K), out_bf16.shape
    assert jnp.allclose(out_bf16, ref, rtol=3e-2, atol=3e-2), (out_bf16, ref)

    print("KERNEL_OK")
</pallas_src>

<mosaic_0001>
module attributes {stable_mosaic.version = 11 : i64} {
  func.func @_k(%arg0: i32, %arg1: memref<8x128xf32, #tpu.memory_space<vmem>>, %arg2: memref<8x128xf32, #tpu.memory_space<vmem>>) attributes {dimension_semantics = [#tpu.dimension_semantics<arbitrary>], iteration_bounds = array<i64: 2>, scalar_prefetch = 0 : i64, scratch_operands = 0 : i64, tpu.core_type = #tpu.core_type<tc>, window_params = [{pipeline_mode = #tpu.pipeline_mode<synchronous>, transform_indices = @transform_0, window_bounds = array<i64: 8, 128>}, {pipeline_mode = #tpu.pipeline_mode<synchronous>, transform_indices = @transform_1, window_bounds = array<i64: 8, 128>}]} {
    %c0 = arith.constant 0 : index
    %c0_0 = arith.constant 0 : index
    %0 = vector.load %arg1[%c0, %c0_0] : memref<8x128xf32, #tpu.memory_space<vmem>>, vector<8x128xf32>
    %cst = arith.constant 1.000000e+00 : f32
    %1 = vector.broadcast %cst : f32 to vector<8x128xf32>
    %2 = arith.addf %0, %1 : vector<8x128xf32>
    %c0_1 = arith.constant 0 : index
    %c0_2 = arith.constant 0 : index
    %3 = vector.load %arg2[%c0_1, %c0_2] : memref<8x128xf32, #tpu.memory_space<vmem>>, vector<8x128xf32>
    tpu.vector_store %arg2[%c0_1, %c0_2], %2 {strides = array<i32>} : memref<8x128xf32, #tpu.memory_space<vmem>>, vector<8x128xf32>,
    return
  }
  func.func @transform_0(%arg0: i32) -> (i32, i32) {
    %c0_i32 = arith.constant 0 : i32
    %c0_i32_0 = arith.constant 0 : i32
    %c0_i32_1 = arith.constant 0 : i32
    return %c0_i32, %c0_i32_0 : i32, i32
  }
  func.func @transform_1(%arg0: i32) -> (i32, i32) {
    %c0_i32 = arith.constant 0 : i32
    %c0_i32_0 = arith.constant 0 : i32
    %c0_i32_1 = arith.constant 0 : i32
    return %c0_i32, %c0_i32_0 : i32, i32
  }
}

module attributes {stable_mosaic.version = 11 : i64} {
  func.func @fused_noglass_kernel(%arg0: i32, %arg1: memref<16x128xf32, #tpu.memory_space<vmem>>, %arg2: memref<1x128xf32, #tpu.memory_space<vmem>>, %arg3: memref<1x128xf32, #tpu.memory_space<vmem>>, %arg4: memref<16x16xf32, #tpu.memory_space<vmem>>, %arg5: memref<1x128x256xf32, #tpu.memory_space<vmem>>, %arg6: memref<1x1x256xf32, #tpu.memory_space<vmem>>, %arg7: memref<1x1x128xf32, #tpu.memory_space<vmem>>, %arg8: memref<1x1x128xf32, #tpu.memory_space<vmem>>, %arg9: memref<1x128x128xf32, #tpu.memory_space<vmem>>, %arg10: memref<1x128x128xf32, #tpu.memory_space<vmem>>, %arg11: memref<1x1x128xf32, #tpu.memory_space<vmem>>, %arg12: memref<8x16xf32, #tpu.memory_space<vmem>>, %arg13: memref<128x128xf32, #tpu.memory_space<vmem>>, %arg14: memref<1x128xf32, #tpu.memory_space<vmem>>, %arg15: memref<8x128xf32, #tpu.memory_space<vmem>>, %arg16: memref<16x128xf32, #tpu.memory_space<vmem>>) attributes {dimension_semantics = [#tpu.dimension_semantics<arbitrary>], iteration_bounds = array<i64: 2>, scalar_prefetch = 0 : i64, scratch_operands = 1 : i64, tpu.core_type = #tpu.core_type<tc>, window_params = [{pipeline_mode = #tpu.pipeline_mode<synchronous>, transform_indices = @transform_0, window_bounds = array<i64: 16, 128>}, {pipeline_mode = #tpu.pipeline_mode<synchronous>, transform_indices = @transform_1, window_bounds = array<i64: 1, 128>}, {pipeline_mode = #tpu.pipeline_mode<synchronous>, transform_indices = @transform_2, window_bounds = array<i64: 1, 128>}, {pipeline_mode = #tpu.pipeline_mode<synchronous>, transform_indices = @transform_3, window_bounds = array<i64: 16, 16>}, {transform_indices = @transform_4, window_bounds = array<i64: 1, 128, 256>}, {transform_indices = @transform_5, window_bounds = array<i64: 1, 1, 256>}, {transform_indices = @transform_6, window_bounds = array<i64: 1, 1, 128>}, {transform_indices = @transform_7, window_bounds = array<i64: 1, 1, 128>}, {transform_indices = @transform_8, window_bounds = array<i64: 1, 128, 128>}, {transform_indices = @transform_9, window_bounds = array<i64: 1, 128, 128>}, {transform_indices = @transform_10, window_bounds = array<i64: 1, 1, 128>}, {pipeline_mode = #tpu.pipeline_mode<synchronous>, transform_indices = @transform_11, window_bounds = array<i64: 8, 16>}, {pipeline_mode = #tpu.pipeline_mode<synchronous>, transform_indices = @transform_12, window_bounds = array<i64: 128, 128>}, {pipeline_mode = #tpu.pipeline_mode<synchronous>, transform_indices = @transform_13, window_bounds = array<i64: 1, 128>}, {pipeline_mode = #tpu.pipeline_mode<synchronous>, transform_indices = @transform_14, window_bounds = array<i64: 8, 128>}]} {
    %c0_i32 = arith.constant 0 : i32
    %0 = arith.cmpi eq, %arg0, %c0_i32 : i32
    %1 = arith.extui %0 : i1 to i32
    %c0_i32_0 = arith.constant 0 : i32
    %2 = arith.cmpi ne, %1, %c0_i32_0 : i32
    scf.if %2 {
      %c0_39 = arith.constant 0 : index
      %c0_40 = arith.constant 0 : index
      %63 = vector.load %arg1[%c0_39, %c0_40] : memref<16x128xf32, #tpu.memory_space<vmem>>, vector<16x128xf32>
      %c0_41 = arith.constant 0 : index
      %c0_42 = arith.constant 0 : index
      %64 = vector.load %arg2[%c0_41, %c0_42] : memref<1x128xf32, #tpu.memory_space<vmem>>, vector<1x128xf32>
      %c0_43 = arith.constant 0 : index
      %c0_44 = arith.constant 0 : index
      %65 = vector.load %arg3[%c0_43, %c0_44] : memref<1x128xf32, #tpu.memory_space<vmem>>, vector<1x128xf32>
      %cst_45 = arith.constant dense<0.000000e+00> : vector<16xf32>
      %66 = vector.multi_reduction <add>, %63, %cst_45 [1] : vector<16x128xf32> to vector<16xf32>
      %67 = vector.shape_cast %66 : vector<16xf32> to vector<16x1xf32>
      %cst_46 = arith.constant 3.125000e-02 : f32
      %68 = vector.broadcast %cst_46 : f32 to vector<16x1xf32>
      %69 = arith.mulf %67, %68 : vector<16x1xf32>
      %70 = arith.mulf %63, %63 : vector<16x128xf32>
      %cst_47 = arith.constant dense<0.000000e+00> : vector<16xf32>
      %71 = vector.multi_reduction <add>, %70, %cst_47 [1] : vector<16x128xf32> to vector<16xf32>
      %72 = vector.shape_cast %71 : vector<16xf32> to vector<16x1xf32>
      %cst_48 = arith.constant 3.125000e-02 : f32
      %73 = vector.broadcast %cst_48 : f32 to vector<16x1xf32>
      %74 = arith.mulf %72, %73 : vector<16x1xf32>
      %75 = arith.mulf %69, %69 : vector<16x1xf32>
      %76 = arith.subf %74, %75 : vector<16x1xf32>
      %77 = vector.broadcast %69 : vector<16x1xf32> to vector<16x128xf32>
      %78 = arith.subf %63, %77 : vector<16x128xf32>
      %cst_49 = arith.constant 9.99999974E-6 : f32
      %79 = vector.broadcast %cst_49 : f32 to vector<16x1xf32>
      %80 = arith.addf %76, %79 : vector<16x1xf32>
      %81 = math.rsqrt %80 : vector<16x1xf32>
      %82 = vector.broadcast %81 : vector<16x1xf32> to vector<16x128xf32>
      %83 = arith.mulf %78, %82 : vector<16x128xf32>
      %84 = vector.broadcast %64 : vector<1x128xf32> to vector<16x128xf32>
      %85 = arith.mulf %83, %84 : vector<16x128xf32>
      %86 = vector.broadcast %65 : vector<1x128xf32> to vector<16x128xf32>
      %87 = arith.addf %85, %86 : vector<16x128xf32>
      %c0_50 = arith.constant 0 : index
      %c0_51 = arith.constant 0 : index
      %88 = vector.load %arg16[%c0_50, %c0_51] : memref<16x128xf32, #tpu.memory_space<vmem>>, vector<16x128xf32>
      tpu.vector_store %arg16[%c0_50, %c0_51], %87 {strides = array<i32>} : memref<16x128xf32, #tpu.memory_space<vmem>>, vector<16x128xf32>,
    } else {
    }
    %c0 = arith.constant 0 : index
    %c0_1 = arith.constant 0 : index
    %3 = vector.load %arg16[%c0, %c0_1] : memref<16x128xf32, #tpu.memory_space<vmem>>, vector<16x128xf32>
    %c0_2 = arith.constant 0 : index
    %c0_3 = arith.constant 0 : index
    %c0_4 = arith.constant 0 : index
    %4 = vector.load %arg5[%c0_2, %c0_3, %c0_4] : memref<1x128x256xf32, #tpu.memory_space<vmem>>, vector<1x128x256xf32>
    %5 = vector.shape_cast %4 : vector<1x128x256xf32> to vector<128x256xf32>
    %cst = arith.constant dense<0.000000e+00> : vector<16x256xf32>
    %6 = tpu.matmul %3, %5, %cst {dimension_numbers = #tpu.dot_dimension_numbers<[1], [0], [0], [1], [0, 0, 1, 1], [], []>, precision = #tpu.contract_precision<fp32>} : vector<16x128xf32>, vector<128x256xf32>, vector<16x256xf32> -> vector<16x256xf32>
    %c0_5 = arith.constant 0 : index
    %c0_6 = arith.constant 0 : index
    %c0_7 = arith.constant 0 : index
    %7 = vector.load %arg6[%c0_5, %c0_6, %c0_7] : memref<1x1x256xf32, #tpu.memory_space<vmem>>, vector<1x1x256xf32>
    %8 = vector.shape_cast %7 : vector<1x1x256xf32> to vector<1x256xf32>
    %9 = vector.broadcast %8 : vector<1x256xf32> to vector<16x256xf32>
    %10 = arith.addf %6, %9 : vector<16x256xf32>
    %cst_8 = arith.constant 0.000000e+00 : f32
    %11 = vector.broadcast %cst_8 : f32 to vector<16x256xf32>
    %12 = arith.maximumf %10, %11 : vector<16x256xf32>
    %13 = vector.extract_strided_slice %12 {offsets = [0, 0], sizes = [16, 128], strides = [1, 1]} : vector<16x256xf32> to vector<16x128xf32>
    %cst_9 = arith.constant 8.000000e-01 : f32
    %14 = vector.broadcast %cst_9 : f32 to vector<16x128xf32>
    %15 = arith.mulf %14, %13 : vector<16x128xf32>
    %16 = vector.extract_strided_slice %12 {offsets = [0, 128], sizes = [16, 128], strides = [1, 1]} : vector<16x256xf32> to vector<16x128xf32>
    %cst_10 = arith.constant 2.000000e-01 : f32
    %17 = vector.broadcast %cst_10 : f32 to vector<16x128xf32>
    %18 = arith.mulf %17, %16 : vector<16x128xf32>
    %19 = arith.addf %15, %18 : vector<16x128xf32>
    %c0_11 = arith.constant 0 : index
    %c0_12 = arith.constant 0 : index
    %20 = vector.load %arg4[%c0_11, %c0_12] : memref<16x16xf32, #tpu.memory_space<vmem>>, vector<16x16xf32>
    %cst_13 = arith.constant dense<0.000000e+00> : vector<16x128xf32>
    %21 = tpu.matmul %20, %19, %cst_13 {dimension_numbers = #tpu.dot_dimension_numbers<[1], [0], [0], [1], [0, 0, 1, 1], [], []>, precision = #tpu.contract_precision<fp32>} : vector<16x16xf32>, vector<16x128xf32>, vector<16x128xf32> -> vector<16x128xf32>
    %c0_14 = arith.constant 0 : index
    %c0_15 = arith.constant 0 : index
    %c0_16 = arith.constant 0 : index
    %22 = vector.load %arg7[%c0_14, %c0_15, %c0_16] : memref<1x1x128xf32, #tpu.memory_space<vmem>>, vector<1x1x128xf32>
    %23 = vector.shape_cast %22 : vector<1x1x128xf32> to vector<1x128xf32>
    %c0_17 = arith.constant 0 : index
    %c0_18 = arith.constant 0 : index
    %c0_19 = arith.constant 0 : index
    %24 = vector.load %arg8[%c0_17, %c0_18, %c0_19] : memref<1x1x128xf32, #tpu.memory_space<vmem>>, vector<1x1x128xf32>
    %25 = vector.shape_cast %24 : vector<1x1x128xf32> to vector<1x128xf32>
    %cst_20 = arith.constant dense<0.000000e+00> : vector<16xf32>
    %26 = vector.multi_reduction <add>, %21, %cst_20 [1] : vector<16x128xf32> to vector<16xf32>
    %27 = vector.shape_cast %26 : vector<16xf32> to vector<16x1xf32>
    %cst_21 = arith.constant 3.125000e-02 : f32
    %28 = vector.broadcast %cst_21 : f32 to vector<16x1xf32>
    %29 = arith.mulf %27, %28 : vector<16x1xf32>
    %30 = arith.mulf %21, %21 : vector<16x128xf32>
    %cst_22 = arith.constant dense<0.000000e+00> : vector<16xf32>
    %31 = vector.multi_reduction <add>, %30, %cst_22 [1] : vector<16x128xf32> to vector<16xf32>
    %32 = vector.shape_cast %31 : vector<16xf32> to vector<16x1xf32>
    %cst_23 = arith.constant 3.125000e-02 : f32
    %33 = vector.broadcast %cst_23 : f32 to vector<16x1xf32>
    %34 = arith.mulf %32, %33 : vector<16x1xf32>
    %35 = arith.mulf %29, %29 : vector<16x1xf32>
    %36 = arith.subf %34, %35 : vector<16x1xf32>
    %37 = vector.broadcast %29 : vector<16x1xf32> to vector<16x128xf32>
    %38 = arith.subf %21, %37 : vector<16x128xf32>
    %cst_24 = arith.constant 9.99999974E-6 : f32
    %39 = vector.broadcast %cst_24 : f32 to vector<16x1xf32>
    %40 = arith.addf %36, %39 : vector<16x1xf32>
    %41 = math.rsqrt %40 : vector<16x1xf32>
    %42 = vector.broadcast %41 : vector<16x1xf32> to vector<16x128xf32>
    %43 = arith.mulf %38, %42 : vector<16x128xf32>
    %44 = vector.broadcast %23 : vector<1x128xf32> to vector<16x128xf32>
    %45 = arith.mulf %43, %44 : vector<16x128xf32>
    %46 = vector.broadcast %25 : vector<1x128xf32> to vector<16x128xf32>
    %47 = arith.addf %45, %46 : vector<16x128xf32>
    %c0_25 = arith.constant 0 : index
    %c0_26 = arith.constant 0 : index
    %c0_27 = arith.constant 0 : index
    %48 = vector.load %arg9[%c0_25, %c0_26, %c0_27] : memref<1x128x128xf32, #tpu.memory_space<vmem>>, vector<1x128x128xf32>
    %49 = vector.shape_cast %48 : vector<1x128x128xf32> to vector<128x128xf32>
    %cst_28 = arith.constant dense<0.000000e+00> : vector<16x128xf32>
    %50 = tpu.matmul %47, %49, %cst_28 {dimension_numbers = #tpu.dot_dimension_numbers<[1], [0], [0], [1], [0, 0, 1, 1], [], []>, precision = #tpu.contract_precision<fp32>} : vector<16x128xf32>, vector<128x128xf32>, vector<16x128xf32> -> vector<16x128xf32>
    %c0_29 = arith.constant 0 : index
    %c0_30 = arith.constant 0 : index
    %c0_31 = arith.constant 0 : index
    %51 = vector.load %arg10[%c0_29, %c0_30, %c0_31] : memref<1x128x128xf32, #tpu.memory_space<vmem>>, vector<1x128x128xf32>
    %52 = vector.shape_cast %51 : vector<1x128x128xf32> to vector<128x128xf32>
    %cst_32 = arith.constant dense<0.000000e+00> : vector<16x128xf32>
    %53 = tpu.matmul %3, %52, %cst_32 {dimension_numbers = #tpu.dot_dimension_numbers<[1], [0], [0], [1], [0, 0, 1, 1], [], []>, precision = #tpu.contract_precision<fp32>} : vector<16x128xf32>, vector<128x128xf32>, vector<16x128xf32> -> vector<16x128xf32>
    %54 = arith.addf %50, %53 : vector<16x128xf32>
    %c0_33 = arith.constant 0 : index
    %c0_34 = arith.constant 0 : index
    %c0_35 = arith.constant 0 : index
    %55 = vector.load %arg11[%c0_33, %c0_34, %c0_35] : memref<1x1x128xf32, #tpu.memory_space<vmem>>, vector<1x1x128xf32>
    %56 = vector.shape_cast %55 : vector<1x1x128xf32> to vector<1x128xf32>
    %57 = vector.broadcast %56 : vector<1x128xf32> to vector<16x128xf32>
    %58 = arith.addf %54, %57 : vector<16x128xf32>
    %c0_36 = arith.constant 0 : index
    %c0_37 = arith.constant 0 : index
    %59 = vector.load %arg16[%c0_36, %c0_37] : memref<16x128xf32, #tpu.memory_space<vmem>>, vector<16x128xf32>
    tpu.vector_store %arg16[%c0_36, %c0_37], %58 {strides = array<i32>} : memref<16x128xf32, #tpu.memory_space<vmem>>, vector<16x128xf32>,
    %c1_i32 = arith.constant 1 : i32
    %60 = arith.cmpi eq, %arg0, %c1_i32 : i32
    %61 = arith.extui %60 : i1 to i32
    %c0_i32_38 = arith.constant 0 : i32
    %62 = arith.cmpi ne, %61, %c0_i32_38 : i32
    scf.if %62 {
      %c0_39 = arith.constant 0 : index
      %c0_40 = arith.constant 0 : index
      %63 = vector.load %arg12[%c0_39, %c0_40] : memref<8x16xf32, #tpu.memory_space<vmem>>, vector<8x16xf32>
      %cst_41 = arith.constant dense<0.000000e+00> : vector<8x128xf32>
      %64 = tpu.matmul %63, %58, %cst_41 {dimension_numbers = #tpu.dot_dimension_numbers<[1], [0], [0], [1], [0, 0, 1, 1], [], []>, precision = #tpu.contract_precision<fp32>} : vector<8x16xf32>, vector<16x128xf32>, vector<8x128xf32> -> vector<8x128xf32>
      %c0_42 = arith.constant 0 : index
      %c0_43 = arith.constant 0 : index
      %65 = vector.load %arg13[%c0_42, %c0_43] : memref<128x128xf32, #tpu.memory_space<vmem>>, vector<128x128xf32>
      %cst_44 = arith.constant dense<0.000000e+00> : vector<8x128xf32>
      %66 = tpu.matmul %64, %65, %cst_44 {dimension_numbers = #tpu.dot_dimension_numbers<[1], [0], [0], [1], [0, 0, 1, 1], [], []>, precision = #tpu.contract_precision<fp32>} : vector<8x128xf32>, vector<128x128xf32>, vector<8x128xf32> -> vector<8x128xf32>
      %c0_45 = arith.constant 0 : index
      %c0_46 = arith.constant 0 : index
      %67 = vector.load %arg14[%c0_45, %c0_46] : memref<1x128xf32, #tpu.memory_space<vmem>>, vector<1x128xf32>
      %68 = vector.broadcast %67 : vector<1x128xf32> to vector<8x128xf32>
      %69 = arith.addf %66, %68 : vector<8x128xf32>
      %c0_47 = arith.constant 0 : index
      %c0_48 = arith.constant 0 : index
      %70 = vector.load %arg15[%c0_47, %c0_48] : memref<8x128xf32, #tpu.memory_space<vmem>>, vector<8x128xf32>
      tpu.vector_store %arg15[%c0_47, %c0_48], %69 {strides = array<i32>} : memref<8x128xf32, #tpu.memory_space<vmem>>, vector<8x128xf32>,
    } else {
    }
    return
  }
  func.func @transform_0(%arg0: i32) -> (i32, i32) {
    %c0_i32 = arith.constant 0 : i32
    %c0_i32_0 = arith.constant 0 : i32
    %c0_i32_1 = arith.constant 0 : i32
    return %c0_i32, %c0_i32_0 : i32, i32
  }
  func.func @transform_1(%arg0: i32) -> (i32, i32) {
    %c0_i32 = arith.constant 0 : i32
    %c0_i32_0 = arith.constant 0 : i32
    %c0_i32_1 = arith.constant 0 : i32
    return %c0_i32, %c0_i32_0 : i32, i32
  }
  func.func @transform_2(%arg0: i32) -> (i32, i32) {
    %c0_i32 = arith.constant 0 : i32
    %c0_i32_0 = arith.constant 0 : i32
    %c0_i32_1 = arith.constant 0 : i32
    return %c0_i32, %c0_i32_0 : i32, i32
  }
  func.func @transform_3(%arg0: i32) -> (i32, i32) {
    %c0_i32 = arith.constant 0 : i32
    %c0_i32_0 = arith.constant 0 : i32
    %c0_i32_1 = arith.constant 0 : i32
    return %c0_i32, %c0_i32_0 : i32, i32
  }
  func.func @transform_4(%arg0: i32) -> (i32, i32, i32) {
    %c0_i32 = arith.constant 0 : i32
    %c0_i32_0 = arith.constant 0 : i32
    %c0_i32_1 = arith.constant 0 : i32
    return %arg0, %c0_i32, %c0_i32_0 : i32, i32, i32
  }
  func.func @transform_5(%arg0: i32) -> (i32, i32, i32) {
    %c0_i32 = arith.constant 0 : i32
    %c0_i32_0 = arith.constant 0 : i32
    %c0_i32_1 = arith.constant 0 : i32
    return %arg0, %c0_i32, %c0_i32_0 : i32, i32, i32
  }
  func.func @transform_6(%arg0: i32) -> (i32, i32, i32) {
    %c0_i32 = arith.constant 0 : i32
    %c0_i32_0 = arith.constant 0 : i32
    %c0_i32_1 = arith.constant 0 : i32
    return %arg0, %c0_i32, %c0_i32_0 : i32, i32, i32
  }
  func.func @transform_7(%arg0: i32) -> (i32, i32, i32) {
    %c0_i32 = arith.constant 0 : i32
    %c0_i32_0 = arith.constant 0 : i32
    %c0_i32_1 = arith.constant 0 : i32
    return %arg0, %c0_i32, %c0_i32_0 : i32, i32, i32
  }
  func.func @transform_8(%arg0: i32) -> (i32, i32, i32) {
    %c0_i32 = arith.constant 0 : i32
    %c0_i32_0 = arith.constant 0 : i32
    %c0_i32_1 = arith.constant 0 : i32
    return %arg0, %c0_i32, %c0_i32_0 : i32, i32, i32
  }
  func.func @transform_9(%arg0: i32) -> (i32, i32, i32) {
    %c0_i32 = arith.constant 0 : i32
    %c0_i32_0 = arith.constant 0 : i32
    %c0_i32_1 = arith.constant 0 : i32
    return %arg0, %c0_i32, %c0_i32_0 : i32, i32, i32
  }
  func.func @transform_10(%arg0: i32) -> (i32, i32, i32) {
    %c0_i32 = arith.constant 0 : i32
    %c0_i32_0 = arith.constant 0 : i32
    %c0_i32_1 = arith.constant 0 : i32
    return %arg0, %c0_i32, %c0_i32_0 : i32, i32, i32
  }
  func.func @transform_11(%arg0: i32) -> (i32, i32) {
    %c0_i32 = arith.constant 0 : i32
    %c0_i32_0 = arith.constant 0 : i32
    %c0_i32_1 = arith.constant 0 : i32
    return %c0_i32, %c0_i32_0 : i32, i32
  }
  func.func @transform_12(%arg0: i32) -> (i32, i32) {
    %c0_i32 = arith.constant 0 : i32
    %c0_i32_0 = arith.constant 0 : i32
    %c0_i32_1 = arith.constant 0 : i32
    return %c0_i32, %c0_i32_0 : i32, i32
  }
  func.func @transform_13(%arg0: i32) -> (i32, i32) {
    %c0_i32 = arith.constant 0 : i32
    %c0_i32_0 = arith.constant 0 : i32
    %c0_i32_1 = arith.constant 0 : i32
    return %c0_i32, %c0_i32_0 : i32, i32
  }
  func.func @transform_14(%arg0: i32) -> (i32, i32) {
    %c0_i32 = arith.constant 0 : i32
    %c0_i32_0 = arith.constant 0 : i32
    %c0_i32_1 = arith.constant 0 : i32
    return %c0_i32, %c0_i32_0 : i32, i32
  }
}

</mosaic_0001>

<llo_original>
// kernel: tpu_custom_call.1
$region0: #{tpu_custom_call.1}
  #allocation0 [shape = 'u32[]', space=smem, size = 0x4, offset = 0x4, fixed_abs, tag = 'smem constant byte address 0x4 - core index']
  #allocation1 [shape = 'u32[72,128]{1,0:T(1,128)}', space=vmem, size = 0x9000, scoped, tag = 'internal scratch']
  %s0 = inlined_call_operand.hbm [shape: f32[8,128], index: 0, kind: input, shape index: {}]
  %s1 = inlined_call_operand.hbm [shape: f32[8,128], index: 1, kind: output, shape index: {}]
  %s2 = sld [smem:[#allocation0]]
  $region41: #{tpu_custom_call.1} parent=0
    _
  %s4 = ssub.s32 1, %s2
  %s5 = scalar_select 0, %s4, %s2
  $region1: #{tpu_custom_call.1} parent=0
    #allocation2 [shape = 'u8[4096]{0}', space=vmem, size = 0x1000, scoped, tag = 'input window, operand 0, single buffered']
    #allocation3 [shape = 's32[2]{0}', space=sflag, size = 0x8, scoped, tag = 'scoped memory for tpu_custom_call.1']
    #allocation4 [shape = 's32[2]{0}', space=sflag, size = 0x8, scoped, tag = 'scoped memory for tpu_custom_call.1']
    #allocation5 [shape = 'u8[4096]{0}', space=vmem, size = 0x1000, scoped, tag = 'output window, operand 0, single buffered']
    %6 = vsyncpa [#allocation3], 0
    %7 = vsyncpa [#allocation4], 0
    loop: start=0, step=1, limit=4
    $region2: #{tpu_custom_call.1} parent=1 // loop_pre_header
      _
    $region3: #{tpu_custom_call.1} parent=1 // loop_header
      %s9 = sphi 0, %s13
      %p10 = scmp.ge.s32.totalorder %s9, 4
      %s17 = sphi 0, %s17
      %s19 = sphi 0, %s17
      %s20 = sphi 0, %s19
      %s34 = sphi 0, %s20
      %s38 = sphi 0, %s38
      %s40 = sphi 0, %s38
      %s41 = sphi 0, %s40
      %s55 = sphi 0, %s41
    $region4: #{tpu_custom_call.1} parent=1 // loop_header_branch
      %12 = sbr.rel (%p10) target = $region8
    $region5: #{tpu_custom_call.1} parent=1 // loop_body
      %s14 = ssub.s32 %s9, 1
      %s15 = ssub.s32 %s9, 2
      %s16 = sadd.s32 %s9, 1
      %s18 = sadd.s32 %s17, 1
      %p21 = scmp.eq.s32.totalorder %s9, 1
      %p22 = scmp.ne.s32.totalorder %s17, %s19
      %p23 = scmp.eq.s32.totalorder %s9, 0
      %p24 = por %p22, %p23
      %p25 = scmp.ne.s32.totalorder %s17, %s19
      %p26 = scmp.eq.s32.totalorder %s14, 1
      %p27 = por %p25, %p26
      %p28 = scmp.ne.s32.totalorder %s19, %s20
      %p29 = scmp.eq.s32.totalorder %s14, 0
      %p30 = por %p28, %p29
      %p31 = scmp.ne.s32.totalorder %s19, %s20
      %p32 = scmp.eq.s32.totalorder %s15, 1
      %p33 = por %p31, %p32
      %p35 = scmp.ne.s32.totalorder %s20, %s34
      %p36 = scmp.eq.s32.totalorder %s15, 0
      %p37 = por %p35, %p36
      %s39 = sadd.s32 %s38, 1
      %p42 = scmp.eq.s32.totalorder %s9, 1
      %p43 = scmp.ne.s32.totalorder %s38, %s40
      %p44 = scmp.eq.s32.totalorder %s9, 0
      %p45 = por %p43, %p44
      %p46 = scmp.ne.s32.totalorder %s38, %s40
      %p47 = scmp.eq.s32.totalorder %s14, 1
      %p48 = por %p46, %p47
      %p49 = scmp.ne.s32.totalorder %s40, %s41
      %p50 = scmp.eq.s32.totalorder %s14, 0
      %p51 = por %p49, %p50
      %p52 = scmp.ne.s32.totalorder %s40, %s41
      %p53 = scmp.eq.s32.totalorder %s15, 1
      %p54 = por %p52, %p53
      %p56 = scmp.ne.s32.totalorder %s41, %s55
      %p57 = scmp.eq.s32.totalorder %s15, 0
      %p58 = por %p56, %p57
      %p59 = scmp.le.s32.totalorder 1, %s9
      %p60 = scmp.lt.s32.totalorder %s9, 3
      %p61 = pnand %p59, %p60
      %p62 = pneg %p61
      // Predicated region
      $region9: #{tpu_custom_call.1} parent=5 // pred_check
        _
      $region10: #{tpu_custom_call.1} parent=5 // pred_check_branch
        %64 = sbr.rel (%p61) target = $region12
      $region11: #{tpu_custom_call.1} parent=5 // pred_region
        %s65 = ssub.s32 %s9, 1
        // Predicated region
        $region13: #{tpu_custom_call.1} parent=11 // pred_check
          %p66 = pneg %p30
        $region14: #{tpu_custom_call.1} parent=11 // pred_check_branch
          %68 = sbr.rel (%p66) target = $region16
        $region15: #{tpu_custom_call.1} parent=11 // pred_region
          %70 = vsyncadd [#allocation3], 0
          %s72 = sshll.u32 %s0, 4
          %s73 = int_to_ptr.hbm [resolvable:$true] %s72
          %s74 = sshll.u32 [#allocation2], 4
          %s75 = int_to_ptr.vmem [resolvable:$true] %s74
          %77 = dma.hbm_to_vmem [thread:$0]  %s73, 128, %s75, [#allocation3]
        $region16: #{tpu_custom_call.1} parent=11 // pred_fallthru
          _
      $region12: #{tpu_custom_call.1} parent=5 // pred_fallthru
        _
      %p78 = scmp.lt.s32.totalorder %s9, 2
      // Predicated region
      $region17: #{tpu_custom_call.1} parent=5 // pred_check
        %p79 = pneg %p78
      $region18: #{tpu_custom_call.1} parent=5 // pred_check_branch
        %81 = sbr.rel (%p79) target = $region20
      $region19: #{tpu_custom_call.1} parent=5 // pred_region
        _
      $region20: #{tpu_custom_call.1} parent=5 // pred_fallthru
        _
      %p82 = scmp.le.s32.totalorder 1, %s9
      %p83 = scmp.lt.s32.totalorder %s9, 3
      %p84 = pnand %p82, %p83
      %p85 = pneg %p84
      // Predicated region
      $region21: #{tpu_custom_call.1} parent=5 // pred_check
        _
      $region22: #{tpu_custom_call.1} parent=5 // pred_check_branch
        %87 = sbr.rel (%p84) target = $region24
      $region23: #{tpu_custom_call.1} parent=5 // pred_region
        %s88 = ssub.s32 %s9, 1
        // Predicated region
        $region25: #{tpu_custom_call.1} parent=23 // pred_check
          %p89 = pneg %p30
        $region26: #{tpu_custom_call.1} parent=23 // pred_check_branch
          %91 = sbr.rel (%p89) target = $region28
        $region27: #{tpu_custom_call.1} parent=23 // pred_region
          %93 = dma.done [#allocation3], 128
        $region28: #{tpu_custom_call.1} parent=23 // pred_fallthru
          _
        %p94 = pneg %p30
        %p95 = pneg %p27
        %p96 = pneg %p51
        %p97 = pneg %p48
        %v98 = vld [vmem:[#allocation2] sm:$0xff]
        %v99 = vadd.f32 %v98, 1.0
        %100 = vst [vmem:[#allocation5] sm:$0xff] %v99
        // Predicated region
        $region29: #{tpu_custom_call.1} parent=23 // pred_check
          %p101 = pneg %p48
        $region30: #{tpu_custom_call.1} parent=23 // pred_check_branch
          %103 = sbr.rel (%p101) target = $region32
        $region31: #{tpu_custom_call.1} parent=23 // pred_region
          %105 = vsyncadd [#allocation4], 0
          %s107 = sshll.u32 [#allocation5], 4
          %s108 = int_to_ptr.vmem [resolvable:$true] %s107
          %s109 = sshll.u32 %s1, 4
          %s110 = int_to_ptr.hbm [resolvable:$true] %s109
          %112 = dma.vmem_to_hbm [thread:$0]  %s108, 128, %s110, [#allocation4]
        $region32: #{tpu_custom_call.1} parent=23 // pred_fallthru
          _
        // Predicated region
        $region33: #{tpu_custom_call.1} parent=23 // pred_check
          %p113 = pneg %p48
        $region34: #{tpu_custom_call.1} parent=23 // pred_check_branch
          %115 = sbr.rel (%p113) target = $region36
        $region35: #{tpu_custom_call.1} parent=23 // pred_region
          %117 = dma.done [#allocation4], 128
        $region36: #{tpu_custom_call.1} parent=23 // pred_fallthru
          _
      $region24: #{tpu_custom_call.1} parent=5 // pred_fallthru
        _
      %p118 = scmp.le.s32.totalorder 2, %s9
      // Predicated region
      $region37: #{tpu_custom_call.1} parent=5 // pred_check
        %p119 = pneg %p118
      $region38: #{tpu_custom_call.1} parent=5 // pred_check_branch
        %121 = sbr.rel (%p119) target = $region40
      $region39: #{tpu_custom_call.1} parent=5 // pred_region
        %s122 = ssub.s32 %s9, 2
      $region40: #{tpu_custom_call.1} parent=5 // pred_fallthru
        _
    $region6: #{tpu_custom_call.1} parent=1 // loop_footer
      %s13 = sadd.s32 1, %s9
    $region7: #{tpu_custom_call.1} parent=1 // loop_footer_branch
      %8 = sbr.rel target = $region3
    $region8: #{tpu_custom_call.1} parent=1 // loop_exit
      _
    %123 = vsyncpa [#allocation3], 1
    %s124 = scalar_lea.sflag [#allocation3], 1
    %125 = vsyncpa %s124, 1
    %126 = vsyncpa [#allocation4], 1
    %s127 = scalar_lea.sflag [#allocation4], 1
    %128 = vsyncpa %s127, 1

// kernel: noglass_apply.1
$region0: #{noglass_apply.1}
  #allocation0 [shape = 'u32[]', space=smem, size = 0x4, offset = 0x4, fixed_abs, tag = 'smem constant byte address 0x4 - core index']
  #allocation1 [shape = 'u32[72,128]{1,0:T(1,128)}', space=vmem, size = 0x9000, scoped, tag = 'internal scratch']
  #allocation2 [shape = 'f32[16,128]{1,0:T(8,128)}', space=vmem, size = 0x2000, scoped, tag = 'scratch operand']
  %s0 = inlined_call_operand.vmem [shape: f32[16,128], index: 0, kind: input, shape index: {}]
  %s1 = inlined_call_operand.vmem [shape: f32[1,128], index: 1, kind: input, shape index: {}]
  %s2 = inlined_call_operand.vmem [shape: f32[1,128], index: 2, kind: input, shape index: {}]
  %s3 = inlined_call_operand.vmem [shape: f32[16,16], index: 3, kind: input, shape index: {}]
  %s4 = inlined_call_operand.hbm [shape: f32[2,128,256], index: 4, kind: input, shape index: {}]
  %s5 = inlined_call_operand.vmem [shape: f32[2,1,256], index: 5, kind: input, shape index: {}]
  %s6 = inlined_call_operand.vmem [shape: f32[2,1,128], index: 6, kind: input, shape index: {}]
  %s7 = inlined_call_operand.vmem [shape: f32[2,1,128], index: 7, kind: input, shape index: {}]
  %s8 = inlined_call_operand.hbm [shape: f32[2,128,128], index: 8, kind: input, shape index: {}]
  %s9 = inlined_call_operand.hbm [shape: f32[2,128,128], index: 9, kind: input, shape index: {}]
  %s10 = inlined_call_operand.vmem [shape: f32[2,1,128], index: 10, kind: input, shape index: {}]
  %s11 = inlined_call_operand.vmem [shape: f32[8,16], index: 11, kind: input, shape index: {}]
  %s12 = inlined_call_operand.vmem [shape: f32[128,128], index: 12, kind: input, shape index: {}]
  %s13 = inlined_call_operand.vmem [shape: f32[1,128], index: 13, kind: input, shape index: {}]
  %s14 = inlined_call_operand.hbm [shape: f32[8,128], index: 14, kind: output, shape index: {}]
  %s15 = sld [smem:[#allocation0]]
  $region109: #{noglass_apply.1} parent=0
    _
  %s17 = ssub.s32 1, %s15
  %s18 = scalar_select 0, %s17, %s15
  $region1: #{noglass_apply.1} parent=0
    #allocation3 [shape = 'u8[262144]{0}', space=vmem, size = 0x40000, scoped, tag = 'input window, operand 4']
    #allocation4 [shape = 's32[2]{0}', space=sflag, size = 0x8, scoped, tag = 'scoped memory for noglass_apply.1']
    #allocation5 [shape = 's32[2]{0}', space=sflag, size = 0x8, scoped, tag = 'scoped memory for noglass_apply.1']
    #allocation6 [shape = 'u8[131072]{0}', space=vmem, size = 0x20000, scoped, tag = 'input window, operand 8']
    #allocation7 [shape = 's32[2]{0}', space=sflag, size = 0x8, scoped, tag = 'scoped memory for noglass_apply.1']
    #allocation8 [shape = 'u8[131072]{0}', space=vmem, size = 0x20000, scoped, tag = 'input window, operand 9']
    #allocation9 [shape = 'u8[4096]{0}', space=vmem, size = 0x1000, scoped, tag = 'output window, operand 0, single buffered']
    %19 = vsyncpa [#allocation4], 0
    %s20 = scalar_lea.sflag [#allocation4], 1
    %21 = vsyncpa %s20, 0
    %22 = vsyncpa [#allocation7], 0
    %s23 = scalar_lea.sflag [#allocation7], 1
    %24 = vsyncpa %s23, 0
    %25 = vsyncpa [#allocation5], 0
    loop: start=0, step=1, limit=4
    $region2: #{noglass_apply.1} parent=1 // loop_pre_header
      _
    $region3: #{noglass_apply.1} parent=1 // loop_header
      %s27 = sphi 0, %s31
      %p28 = scmp.ge.s32.totalorder %s27, 4
      %s35 = sphi 0, %s35
      %s37 = sphi 0, %s35
      %s38 = sphi 0, %s37
      %s52 = sphi 0, %s38
      %s56 = sphi 0, %s56
      %s58 = sphi 0, %s56
      %s59 = sphi 0, %s58
      %s73 = sphi 0, %s59
      %s77 = sphi 0, %s77
      %s79 = sphi 0, %s77
      %s80 = sphi 0, %s79
      %s94 = sphi 0, %s80
      %s98 = sphi 0, %s98
      %s100 = sphi 0, %s98
      %s101 = sphi 0, %s100
      %s115 = sphi 0, %s101
      %s121 = sphi 0, %s123
      %s124 = sphi 0, %s121
      %s125 = sphi 0, %s124
      %s141 = sphi 0, %s125
      %s147 = sphi 0, %s149
      %s150 = sphi 0, %s147
      %s151 = sphi 0, %s150
      %s167 = sphi 0, %s151
      %s173 = sphi 0, %s175
      %s176 = sphi 0, %s173
      %s177 = sphi 0, %s176
      %s193 = sphi 0, %s177
      %s199 = sphi 0, %s201
      %s202 = sphi 0, %s199
      %s203 = sphi 0, %s202
      %s219 = sphi 0, %s203
      %s225 = sphi 0, %s227
      %s228 = sphi 0, %s225
      %s229 = sphi 0, %s228
      %s245 = sphi 0, %s229
      %s251 = sphi 0, %s253
      %s254 = sphi 0, %s251
      %s255 = sphi 0, %s254
      %s271 = sphi 0, %s255
      %s277 = sphi 0, %s279
      %s280 = sphi 0, %s277
      %s281 = sphi 0, %s280
      %s297 = sphi 0, %s281
      %s301 = sphi 0, %s301
      %s303 = sphi 0, %s301
      %s304 = sphi 0, %s303
      %s318 = sphi 0, %s304
      %s322 = sphi 0, %s322
      %s324 = sphi 0, %s322
      %s325 = sphi 0, %s324
      %s339 = sphi 0, %s325
      %s343 = sphi 0, %s343
      %s345 = sphi 0, %s343
      %s346 = sphi 0, %s345
      %s360 = sphi 0, %s346
      %s364 = sphi 0, %s364
      %s366 = sphi 0, %s364
      %s367 = sphi 0, %s366
      %s381 = sphi 0, %s367
    $region4: #{noglass_apply.1} parent=1 // loop_header_branch
      %30 = sbr.rel (%p28) target = $region8
    $region5: #{noglass_apply.1} parent=1 // loop_body
      %s32 = ssub.s32 %s27, 1
      %s33 = ssub.s32 %s27, 2
      %s34 = sadd.s32 %s27, 1
      %s36 = sadd.s32 %s35, 1
      %p39 = scmp.eq.s32.totalorder %s27, 1
      %p40 = scmp.ne.s32.totalorder %s35, %s37
      %p41 = scmp.eq.s32.totalorder %s27, 0
      %p42 = por %p40, %p41
      %p43 = scmp.ne.s32.totalorder %s35, %s37
      %p44 = scmp.eq.s32.totalorder %s32, 1
      %p45 = por %p43, %p44
      %p46 = scmp.ne.s32.totalorder %s37, %s38
      %p47 = scmp.eq.s32.totalorder %s32, 0
      %p48 = por %p46, %p47
      %p49 = scmp.ne.s32.totalorder %s37, %s38
      %p50 = scmp.eq.s32.totalorder %s33, 1
      %p51 = por %p49, %p50
      %p53 = scmp.ne.s32.totalorder %s38, %s52
      %p54 = scmp.eq.s32.totalorder %s33, 0
      %p55 = por %p53, %p54
      %s57 = sadd.s32 %s56, 1
      %p60 = scmp.eq.s32.totalorder %s27, 1
      %p61 = scmp.ne.s32.totalorder %s56, %s58
      %p62 = scmp.eq.s32.totalorder %s27, 0
      %p63 = por %p61, %p62
      %p64 = scmp.ne.s32.totalorder %s56, %s58
      %p65 = scmp.eq.s32.totalorder %s32, 1
      %p66 = por %p64, %p65
      %p67 = scmp.ne.s32.totalorder %s58, %s59
      %p68 = scmp.eq.s32.totalorder %s32, 0
      %p69 = por %p67, %p68
      %p70 = scmp.ne.s32.totalorder %s58, %s59
      %p71 = scmp.eq.s32.totalorder %s33, 1
      %p72 = por %p70, %p71
      %p74 = scmp.ne.s32.totalorder %s59, %s73
      %p75 = scmp.eq.s32.totalorder %s33, 0
      %p76 = por %p74, %p75
      %s78 = sadd.s32 %s77, 1
      %p81 = scmp.eq.s32.totalorder %s27, 1
      %p82 = scmp.ne.s32.totalorder %s77, %s79
      %p83 = scmp.eq.s32.totalorder %s27, 0
      %p84 = por %p82, %p83
      %p85 = scmp.ne.s32.totalorder %s77, %s79
      %p86 = scmp.eq.s32.totalorder %s32, 1
      %p87 = por %p85, %p86
      %p88 = scmp.ne.s32.totalorder %s79, %s80
      %p89 = scmp.eq.s32.totalorder %s32, 0
      %p90 = por %p88, %p89
      %p91 = scmp.ne.s32.totalorder %s79, %s80
      %p92 = scmp.eq.s32.totalorder %s33, 1
      %p93 = por %p91, %p92
      %p95 = scmp.ne.s32.totalorder %s80, %s94
      %p96 = scmp.eq.s32.totalorder %s33, 0
      %p97 = por %p95, %p96
      %s99 = sadd.s32 %s98, 1
      %p102 = scmp.eq.s32.totalorder %s27, 1
      %p103 = scmp.ne.s32.totalorder %s98, %s100
      %p104 = scmp.eq.s32.totalorder %s27, 0
      %p105 = por %p103, %p104
      %p106 = scmp.ne.s32.totalorder %s98, %s100
      %p107 = scmp.eq.s32.totalorder %s32, 1
      %p108 = por %p106, %p107
      %p109 = scmp.ne.s32.totalorder %s100, %s101
      %p110 = scmp.eq.s32.totalorder %s32, 0
      %p111 = por %p109, %p110
      %p112 = scmp.ne.s32.totalorder %s100, %s101
      %p113 = scmp.eq.s32.totalorder %s33, 1
      %p114 = por %p112, %p113
      %p116 = scmp.ne.s32.totalorder %s101, %s115
      %p117 = scmp.eq.s32.totalorder %s33, 0
      %p118 = por %p116, %p117
      %s119 = ssub.s32 %s27, %s34
      %p120 = scmp.eq.s32.totalorder %s119, 0
      %s122 = sadd.s32 %s121, 1
      %s123 = scalar_select %p120, %s121, %s122
      %p126 = pneg %p120
      %p127 = scmp.eq.s32.totalorder %s27, 1
      %p128 = por %p126, %p127
      %p129 = scmp.ne.s32.totalorder %s121, %s124
      %p130 = scmp.eq.s32.totalorder %s27, 0
      %p131 = por %p129, %p130
      %p132 = scmp.ne.s32.totalorder %s121, %s124
      %p133 = scmp.eq.s32.totalorder %s32, 1
      %p134 = por %p132, %p133
      %p135 = scmp.ne.s32.totalorder %s124, %s125
      %p136 = scmp.eq.s32.totalorder %s32, 0
      %p137 = por %p135, %p136
      %p138 = scmp.ne.s32.totalorder %s124, %s125
      %p139 = scmp.eq.s32.totalorder %s33, 1
      %p140 = por %p138, %p139
      %p142 = scmp.ne.s32.totalorder %s125, %s141
      %p143 = scmp.eq.s32.totalorder %s33, 0
      %p144 = por %p142, %p143
      %s145 = ssub.s32 %s27, %s34
      %p146 = scmp.eq.s32.totalorder %s145, 0
      %s148 = sadd.s32 %s147, 1
      %s149 = scalar_select %p146, %s147, %s148
      %p152 = pneg %p146
      %p153 = scmp.eq.s32.totalorder %s27, 1
      %p154 = por %p152, %p153
      %p155 = scmp.ne.s32.totalorder %s147, %s150
      %p156 = scmp.eq.s32.totalorder %s27, 0
      %p157 = por %p155, %p156
      %p158 = scmp.ne.s32.totalorder %s147, %s150
      %p159 = scmp.eq.s32.totalorder %s32, 1
      %p160 = por %p158, %p159
      %p161 = scmp.ne.s32.totalorder %s150, %s151
      %p162 = scmp.eq.s32.totalorder %s32, 0
      %p163 = por %p161, %p162
      %p164 = scmp.ne.s32.totalorder %s150, %s151
      %p165 = scmp.eq.s32.totalorder %s33, 1
      %p166 = por %p164, %p165
      %p168 = scmp.ne.s32.totalorder %s151, %s167
      %p169 = scmp.eq.s32.totalorder %s33, 0
      %p170 = por %p168, %p169
      %s171 = ssub.s32 %s27, %s34
      %p172 = scmp.eq.s32.totalorder %s171, 0
      %s174 = sadd.s32 %s173, 1
      %s175 = scalar_select %p172, %s173, %s174
      %p178 = pneg %p172
      %p179 = scmp.eq.s32.totalorder %s27, 1
      %p180 = por %p178, %p179
      %p181 = scmp.ne.s32.totalorder %s173, %s176
      %p182 = scmp.eq.s32.totalorder %s27, 0
      %p183 = por %p181, %p182
      %p184 = scmp.ne.s32.totalorder %s173, %s176
      %p185 = scmp.eq.s32.totalorder %s32, 1
      %p186 = por %p184, %p185
      %p187 = scmp.ne.s32.totalorder %s176, %s177
      %p188 = scmp.eq.s32.totalorder %s32, 0
      %p189 = por %p187, %p188
      %p190 = scmp.ne.s32.totalorder %s176, %s177
      %p191 = scmp.eq.s32.totalorder %s33, 1
      %p192 = por %p190, %p191
      %p194 = scmp.ne.s32.totalorder %s177, %s193
      %p195 = scmp.eq.s32.totalorder %s33, 0
      %p196 = por %p194, %p195
      %s197 = ssub.s32 %s27, %s34
      %p198 = scmp.eq.s32.totalorder %s197, 0
      %s200 = sadd.s32 %s199, 1
      %s201 = scalar_select %p198, %s199, %s200
      %p204 = pneg %p198
      %p205 = scmp.eq.s32.totalorder %s27, 1
      %p206 = por %p204, %p205
      %p207 = scmp.ne.s32.totalorder %s199, %s202
      %p208 = scmp.eq.s32.totalorder %s27, 0
      %p209 = por %p207, %p208
      %p210 = scmp.ne.s32.totalorder %s199, %s202
      %p211 = scmp.eq.s32.totalorder %s32, 1
      %p212 = por %p210, %p211
      %p213 = scmp.ne.s32.totalorder %s202, %s203
      %p214 = scmp.eq.s32.totalorder %s32, 0
      %p215 = por %p213, %p214
      %p216 = scmp.ne.s32.totalorder %s202, %s203
      %p217 = scmp.eq.s32.totalorder %s33, 1
      %p218 = por %p216, %p217
      %p220 = scmp.ne.s32.totalorder %s203, %s219
      %p221 = scmp.eq.s32.totalorder %s33, 0
      %p222 = por %p220, %p221
      %s223 = ssub.s32 %s27, %s34
      %p224 = scmp.eq.s32.totalorder %s223, 0
      %s226 = sadd.s32 %s225, 1
      %s227 = scalar_select %p224, %s225, %s226
      %p230 = pneg %p224
      %p231 = scmp.eq.s32.totalorder %s27, 1
      %p232 = por %p230, %p231
      %p233 = scmp.ne.s32.totalorder %s225, %s228
      %p234 = scmp.eq.s32.totalorder %s27, 0
      %p235 = por %p233, %p234
      %p236 = scmp.ne.s32.totalorder %s225, %s228
      %p237 = scmp.eq.s32.totalorder %s32, 1
      %p238 = por %p236, %p237
      %p239 = scmp.ne.s32.totalorder %s228, %s229
      %p240 = scmp.eq.s32.totalorder %s32, 0
      %p241 = por %p239, %p240
      %p242 = scmp.ne.s32.totalorder %s228, %s229
      %p243 = scmp.eq.s32.totalorder %s33, 1
      %p244 = por %p242, %p243
      %p246 = scmp.ne.s32.totalorder %s229, %s245
      %p247 = scmp.eq.s32.totalorder %s33, 0
      %p248 = por %p246, %p247
      %s249 = ssub.s32 %s27, %s34
      %p250 = scmp.eq.s32.totalorder %s249, 0
      %s252 = sadd.s32 %s251, 1
      %s253 = scalar_select %p250, %s251, %s252
      %p256 = pneg %p250
      %p257 = scmp.eq.s32.totalorder %s27, 1
      %p258 = por %p256, %p257
      %p259 = scmp.ne.s32.totalorder %s251, %s254
      %p260 = scmp.eq.s32.totalorder %s27, 0
      %p261 = por %p259, %p260
      %p262 = scmp.ne.s32.totalorder %s251, %s254
      %p263 = scmp.eq.s32.totalorder %s32, 1
      %p264 = por %p262, %p263
      %p265 = scmp.ne.s32.totalorder %s254, %s255
      %p266 = scmp.eq.s32.totalorder %s32, 0
      %p267 = por %p265, %p266
      %p268 = scmp.ne.s32.totalorder %s254, %s255
      %p269 = scmp.eq.s32.totalorder %s33, 1
      %p270 = por %p268, %p269
      %p272 = scmp.ne.s32.totalorder %s255, %s271
      %p273 = scmp.eq.s32.totalorder %s33, 0
      %p274 = por %p272, %p273
      %s275 = ssub.s32 %s27, %s34
      %p276 = scmp.eq.s32.totalorder %s275, 0
      %s278 = sadd.s32 %s277, 1
      %s279 = scalar_select %p276, %s277, %s278
      %p282 = pneg %p276
      %p283 = scmp.eq.s32.totalorder %s27, 1
      %p284 = por %p282, %p283
      %p285 = scmp.ne.s32.totalorder %s277, %s280
      %p286 = scmp.eq.s32.totalorder %s27, 0
      %p287 = por %p285, %p286
      %p288 = scmp.ne.s32.totalorder %s277, %s280
      %p289 = scmp.eq.s32.totalorder %s32, 1
      %p290 = por %p288, %p289
      %p291 = scmp.ne.s32.totalorder %s280, %s281
      %p292 = scmp.eq.s32.totalorder %s32, 0
      %p293 = por %p291, %p292
      %p294 = scmp.ne.s32.totalorder %s280, %s281
      %p295 = scmp.eq.s32.totalorder %s33, 1
      %p296 = por %p294, %p295
      %p298 = scmp.ne.s32.totalorder %s281, %s297
      %p299 = scmp.eq.s32.totalorder %s33, 0
      %p300 = por %p298, %p299
      %s302 = sadd.s32 %s301, 1
      %p305 = scmp.eq.s32.totalorder %s27, 1
      %p306 = scmp.ne.s32.totalorder %s301, %s303
      %p307 = scmp.eq.s32.totalorder %s27, 0
      %p308 = por %p306, %p307
      %p309 = scmp.ne.s32.totalorder %s301, %s303
      %p310 = scmp.eq.s32.totalorder %s32, 1
      %p311 = por %p309, %p310
      %p312 = scmp.ne.s32.totalorder %s303, %s304
      %p313 = scmp.eq.s32.totalorder %s32, 0
      %p314 = por %p312, %p313
      %p315 = scmp.ne.s32.totalorder %s303, %s304
      %p316 = scmp.eq.s32.totalorder %s33, 1
      %p317 = por %p315, %p316
      %p319 = scmp.ne.s32.totalorder %s304, %s318
      %p320 = scmp.eq.s32.totalorder %s33, 0
      %p321 = por %p319, %p320
      %s323 = sadd.s32 %s322, 1
      %p326 = scmp.eq.s32.totalorder %s27, 1
      %p327 = scmp.ne.s32.totalorder %s322, %s324
      %p328 = scmp.eq.s32.totalorder %s27, 0
      %p329 = por %p327, %p328
      %p330 = scmp.ne.s32.totalorder %s322, %s324
      %p331 = scmp.eq.s32.totalorder %s32, 1
      %p332 = por %p330, %p331
      %p333 = scmp.ne.s32.totalorder %s324, %s325
      %p334 = scmp.eq.s32.totalorder %s32, 0
      %p335 = por %p333, %p334
      %p336 = scmp.ne.s32.totalorder %s324, %s325
      %p337 = scmp.eq.s32.totalorder %s33, 1
      %p338 = por %p336, %p337
      %p340 = scmp.ne.s32.totalorder %s325, %s339
      %p341 = scmp.eq.s32.totalorder %s33, 0
      %p342 = por %p340, %p341
      %s344 = sadd.s32 %s343, 1
      %p347 = scmp.eq.s32.totalorder %s27, 1
      %p348 = scmp.ne.s32.totalorder %s343, %s345
      %p349 = scmp.eq.s32.totalorder %s27, 0
      %p350 = por %p348, %p349
      %p351 = scmp.ne.s32.totalorder %s343, %s345
      %p352 = scmp.eq.s32.totalorder %s32, 1
      %p353 = por %p351, %p352
      %p354 = scmp.ne.s32.totalorder %s345, %s346
      %p355 = scmp.eq.s32.totalorder %s32, 0
      %p356 = por %p354, %p355
      %p357 = scmp.ne.s32.totalorder %s345, %s346
      %p358 = scmp.eq.s32.totalorder %s33, 1
      %p359 = por %p357, %p358
      %p361 = scmp.ne.s32.totalorder %s346, %s360
      %p362 = scmp.eq.s32.totalorder %s33, 0
      %p363 = por %p361, %p362
      %s365 = sadd.s32 %s364, 1
      %p368 = scmp.eq.s32.totalorder %s27, 1
      %p369 = scmp.ne.s32.totalorder %s364, %s366
      %p370 = scmp.eq.s32.totalorder %s27, 0
      %p371 = por %p369, %p370
      %p372 = scmp.ne.s32.totalorder %s364, %s366
      %p373 = scmp.eq.s32.totalorder %s32, 1
      %p374 = por %p372, %p373
      %p375 = scmp.ne.s32.totalorder %s366, %s367
      %p376 = scmp.eq.s32.totalorder %s32, 0
      %p377 = por %p375, %p376
      %p378 = scmp.ne.s32.totalorder %s366, %s367
      %p379 = scmp.eq.s32.totalorder %s33, 1
      %p380 = por %p378, %p379
      %p382 = scmp.ne.s32.totalorder %s367, %s381
      %p383 = scmp.eq.s32.totalorder %s33, 0
      %p384 = por %p382, %p383
      %p385 = scmp.le.s32.totalorder 1, %s27
      %p386 = scmp.lt.s32.totalorder %s27, 3
      %p387 = pnand %p385, %p386
      %p388 = pneg %p387
      // Predicated region
      $region9: #{noglass_apply.1} parent=5 // pred_check
        _
      $region10: #{noglass_apply.1} parent=5 // pred_check_branch
        %390 = sbr.rel (%p387) target = $region12
      $region11: #{noglass_apply.1} parent=5 // pred_region
        %s391 = ssub.s32 %s27, 1
        // Predicated region
        $region13: #{noglass_apply.1} parent=11 // pred_check
          %p392 = pneg %p48
        $region14: #{noglass_apply.1} parent=11 // pred_check_branch
          %394 = sbr.rel (%p392) target = $region16
        $region15: #{noglass_apply.1} parent=11 // pred_region
          _
        $region16: #{noglass_apply.1} parent=11 // pred_fallthru
          _
        // Predicated region
        $region17: #{noglass_apply.1} parent=11 // pred_check
          %p395 = pneg %p69
        $region18: #{noglass_apply.1} parent=11 // pred_check_branch
          %397 = sbr.rel (%p395) target = $region20
        $region19: #{noglass_apply.1} parent=11 // pred_region
          _
        $region20: #{noglass_apply.1} parent=11 // pred_fallthru
          _
        // Predicated region
        $region21: #{noglass_apply.1} parent=11 // pred_check
          %p398 = pneg %p90
        $region22: #{noglass_apply.1} parent=11 // pred_check_branch
          %400 = sbr.rel (%p398) target = $region24
        $region23: #{noglass_apply.1} parent=11 // pred_region
          _
        $region24: #{noglass_apply.1} parent=11 // pred_fallthru
          _
        // Predicated region
        $region25: #{noglass_apply.1} parent=11 // pred_check
          %p401 = pneg %p111
        $region26: #{noglass_apply.1} parent=11 // pred_check_branch
          %403 = sbr.rel (%p401) target = $region28
        $region27: #{noglass_apply.1} parent=11 // pred_region
          _
        $region28: #{noglass_apply.1} parent=11 // pred_fallthru
          _
        // Predicated region
        $region29: #{noglass_apply.1} parent=11 // pred_check
          %p404 = pneg %p314
        $region30: #{noglass_apply.1} parent=11 // pred_check_branch
          %406 = sbr.rel (%p404) target = $region32
        $region31: #{noglass_apply.1} parent=11 // pred_region
          _
        $region32: #{noglass_apply.1} parent=11 // pred_fallthru
          _
        // Predicated region
        $region33: #{noglass_apply.1} parent=11 // pred_check
          %p407 = pneg %p335
        $region34: #{noglass_apply.1} parent=11 // pred_check_branch
          %409 = sbr.rel (%p407) target = $region36
        $region35: #{noglass_apply.1} parent=11 // pred_region
          _
        $region36: #{noglass_apply.1} parent=11 // pred_fallthru
          _
        // Predicated region
        $region37: #{noglass_apply.1} parent=11 // pred_check
          %p410 = pneg %p356
        $region38: #{noglass_apply.1} parent=11 // pred_check_branch
          %412 = sbr.rel (%p410) target = $region40
        $region39: #{noglass_apply.1} parent=11 // pred_region
          _
        $region40: #{noglass_apply.1} parent=11 // pred_fallthru
          _
      $region12: #{noglass_apply.1} parent=5 // pred_fallthru
        _
      %p413 = scmp.lt.s32.totalorder %s27, 2
      // Predicated region
      $region41: #{noglass_apply.1} parent=5 // pred_check
        %p414 = pneg %p413
      $region42: #{noglass_apply.1} parent=5 // pred_check_branch
        %416 = sbr.rel (%p414) target = $region44
      $region43: #{noglass_apply.1} parent=5 // pred_region
        // Predicated region
        $region45: #{noglass_apply.1} parent=43 // pred_check
          %p417 = pneg %p131
        $region46: #{noglass_apply.1} parent=43 // pred_check_branch
          %419 = sbr.rel (%p417) target = $region48
        $region47: #{noglass_apply.1} parent=43 // pred_region
          %s420 = sand.u32 %s121, 1
          %s421 = scalar_lea.sflag [#allocation4], %s420
          %s422 = sand.u32 %s121, 1
          %s423 = smul.addr %s422, 256
          %s424 = scalar_lea.vmem [#allocation3], %s423
          %426 = vsyncadd %s421, 0
          %s427 = smul.addr %s27, 32
          %s428 = smul.addr %s427, 8
          %s429 = scalar_lea.hbm %s4, %s428
          %s430 = sshll.u32 %s429, 4
          %s431 = int_to_ptr.hbm [resolvable:$true] %s430
          %s432 = sshll.u32 %s424, 4
          %s433 = int_to_ptr.vmem [resolvable:$true] %s432
          %438 = dma.hbm_to_vmem [thread:$0]  %s431, 4096, %s433, %s421, 256, 256, 16
        $region48: #{noglass_apply.1} parent=43 // pred_fallthru
          _
        // Predicated region
        $region49: #{noglass_apply.1} parent=43 // pred_check
          %p439 = pneg %p157
        $region50: #{noglass_apply.1} parent=43 // pred_check_branch
          %441 = sbr.rel (%p439) target = $region52
        $region51: #{noglass_apply.1} parent=43 // pred_region
          %p442 = scmp.lt.s32.totalorder %s27, 1
          %s443 = scalar_select %p442, %s27, 1
          %s444 = smul.addr %s443, 2
          %s445 = scalar_lea.vmem %s5, %s444
        $region52: #{noglass_apply.1} parent=43 // pred_fallthru
          _
        // Predicated region
        $region53: #{noglass_apply.1} parent=43 // pred_check
          %p446 = pneg %p183
        $region54: #{noglass_apply.1} parent=43 // pred_check_branch
          %448 = sbr.rel (%p446) target = $region56
        $region55: #{noglass_apply.1} parent=43 // pred_region
          %p449 = scmp.lt.s32.totalorder %s27, 1
          %s450 = scalar_select %p449, %s27, 1
          %s451 = scalar_lea.vmem %s6, %s450
        $region56: #{noglass_apply.1} parent=43 // pred_fallthru
          _
        // Predicated region
        $region57: #{noglass_apply.1} parent=43 // pred_check
          %p452 = pneg %p209
        $region58: #{noglass_apply.1} parent=43 // pred_check_branch
          %454 = sbr.rel (%p452) target = $region60
        $region59: #{noglass_apply.1} parent=43 // pred_region
          %p455 = scmp.lt.s32.totalorder %s27, 1
          %s456 = scalar_select %p455, %s27, 1
          %s457 = scalar_lea.vmem %s7, %s456
        $region60: #{noglass_apply.1} parent=43 // pred_fallthru
          _
        // Predicated region
        $region61: #{noglass_apply.1} parent=43 // pred_check
          %p458 = pneg %p235
        $region62: #{noglass_apply.1} parent=43 // pred_check_branch
          %460 = sbr.rel (%p458) target = $region64
        $region63: #{noglass_apply.1} parent=43 // pred_region
          %s461 = sand.u32 %s27, 1
          %s462 = scalar_lea.sflag [#allocation7], %s461
          %s463 = sand.u32 %s225, 1
          %s464 = smul.addr %s463, 128
          %s465 = scalar_lea.vmem [#allocation6], %s464
          %467 = vsyncadd %s462, 0
          %s468 = smul.addr %s27, 16
          %s469 = smul.addr %s468, 8
          %s470 = scalar_lea.hbm %s8, %s469
          %s471 = sshll.u32 %s470, 4
          %s472 = int_to_ptr.hbm [resolvable:$true] %s471
          %s473 = sshll.u32 %s465, 4
          %s474 = int_to_ptr.vmem [resolvable:$true] %s473
          %479 = dma.hbm_to_vmem [thread:$0]  %s472, 2048, %s474, %s462, 128, 128, 8
        $region64: #{noglass_apply.1} parent=43 // pred_fallthru
          _
        // Predicated region
        $region65: #{noglass_apply.1} parent=43 // pred_check
          %p480 = pneg %p261
        $region66: #{noglass_apply.1} parent=43 // pred_check_branch
          %482 = sbr.rel (%p480) target = $region68
        $region67: #{noglass_apply.1} parent=43 // pred_region
          %s483 = sand.u32 %s27, 1
          %s484 = scalar_lea.sflag [#allocation7], %s483
          %s485 = sand.u32 %s251, 1
          %s486 = smul.addr %s485, 128
          %s487 = scalar_lea.vmem [#allocation8], %s486
          %489 = vsyncadd %s484, 0
          %s490 = smul.addr %s27, 16
          %s491 = smul.addr %s490, 8
          %s492 = scalar_lea.hbm %s9, %s491
          %s493 = sshll.u32 %s492, 4
          %s494 = int_to_ptr.hbm [resolvable:$true] %s493
          %s495 = sshll.u32 %s487, 4
          %s496 = int_to_ptr.vmem [resolvable:$true] %s495
          %501 = dma.hbm_to_vmem [thread:$0]  %s494, 2048, %s496, %s484, 128, 128, 8
        $region68: #{noglass_apply.1} parent=43 // pred_fallthru
          _
        // Predicated region
        $region69: #{noglass_apply.1} parent=43 // pred_check
          %p502 = pneg %p287
        $region70: #{noglass_apply.1} parent=43 // pred_check_branch
          %504 = sbr.rel (%p502) target = $region72
        $region71: #{noglass_apply.1} parent=43 // pred_region
          %p505 = scmp.lt.s32.totalorder %s27, 1
          %s506 = scalar_select %p505, %s27, 1
          %s507 = scalar_lea.vmem %s10, %s506
        $region72: #{noglass_apply.1} parent=43 // pred_fallthru
          _
      $region44: #{noglass_apply.1} parent=5 // pred_fallthru
        _
      %p508 = scmp.le.s32.totalorder 1, %s27
      %p509 = scmp.lt.s32.totalorder %s27, 3
      %p510 = pnand %p508, %p509
      %p511 = pneg %p510
      // Predicated region
      $region73: #{noglass_apply.1} parent=5 // pred_check
        _
      $region74: #{noglass_apply.1} parent=5 // pred_check_branch
        %513 = sbr.rel (%p510) target = $region76
      $region75: #{noglass_apply.1} parent=5 // pred_region
        %s514 = ssub.s32 %s27, 1
        %s515 = sand.u32 %s124, 1
        %s516 = scalar_lea.sflag [#allocation4], %s515
        %s517 = sand.u32 %s124, 1
        %s518 = smul.addr %s517, 256
        %s519 = scalar_lea.vmem [#allocation3], %s518
        // Predicated region
        $region77: #{noglass_apply.1} parent=75 // pred_check
          %p520 = pneg %p137
        $region78: #{noglass_apply.1} parent=75 // pred_check_branch
          %522 = sbr.rel (%p520) target = $region80
        $region79: #{noglass_apply.1} parent=75 // pred_region
          %524 = dma.done %s516, 4096
        $region80: #{noglass_apply.1} parent=75 // pred_fallthru
          _
        %s525 = sand.u32 %s32, 1
        %s526 = scalar_lea.sflag [#allocation7], %s525
        %s527 = sand.u32 %s228, 1
        %s528 = smul.addr %s527, 128
        %s529 = scalar_lea.vmem [#allocation6], %s528
        // Predicated region
        $region81: #{noglass_apply.1} parent=75 // pred_check
          %p530 = pneg %p241
        $region82: #{noglass_apply.1} parent=75 // pred_check_branch
          %532 = sbr.rel (%p530) target = $region84
        $region83: #{noglass_apply.1} parent=75 // pred_region
          %534 = dma.done %s526, 2048
        $region84: #{noglass_apply.1} parent=75 // pred_fallthru
          _
        %s535 = sand.u32 %s32, 1
        %s536 = scalar_lea.sflag [#allocation7], %s535
        %s537 = sand.u32 %s254, 1
        %s538 = smul.addr %s537, 128
        %s539 = scalar_lea.vmem [#allocation8], %s538
        // Predicated region
        $region85: #{noglass_apply.1} parent=75 // pred_check
          %p540 = pneg %p267
        $region86: #{noglass_apply.1} parent=75 // pred_check_branch
          %542 = sbr.rel (%p540) target = $region88
        $region87: #{noglass_apply.1} parent=75 // pred_region
          %544 = dma.done %s536, 2048
        $region88: #{noglass_apply.1} parent=75 // pred_fallthru
          _
        %p545 = pneg %p48
        %p546 = pneg %p45
        %p547 = pneg %p69
        %p548 = pneg %p66
        %p549 = pneg %p90
        %p550 = pneg %p87
        %p551 = pneg %p111
        %p552 = pneg %p108
        %s553 = sand.u32 %s124, 1
        %s554 = scalar_lea.sflag [#allocation4], %s553
        %s555 = sand.u32 %s124, 1
        %s556 = smul.addr %s555, 256
        %s557 = scalar_lea.vmem [#allocation3], %s556
        %p558 = pneg %p137
        %p559 = pneg %p134
        %p560 = scmp.lt.s32.totalorder %s32, 1
        %s561 = scalar_select %p560, %s32, 1
        %s562 = smul.addr %s561, 2
        %s563 = scalar_lea.vmem %s5, %s562
        %p564 = pneg %p163
        %p565 = pneg %p160
        %p566 = scmp.lt.s32.totalorder %s32, 1
        %s567 = scalar_select %p566, %s32, 1
        %s568 = scalar_lea.vmem %s6, %s567
        %p569 = pneg %p189
        %p570 = pneg %p186
        %p571 = scmp.lt.s32.totalorder %s32, 1
        %s572 = scalar_select %p571, %s32, 1
        %s573 = scalar_lea.vmem %s7, %s572
        %p574 = pneg %p215
        %p575 = pneg %p212
        %s576 = sand.u32 %s32, 1
        %s577 = scalar_lea.sflag [#allocation7], %s576
        %s578 = sand.u32 %s228, 1
        %s579 = smul.addr %s578, 128
        %s580 = scalar_lea.vmem [#allocation6], %s579
        %p581 = pneg %p241
        %p582 = pneg %p238
        %s583 = sand.u32 %s32, 1
        %s584 = scalar_lea.sflag [#allocation7], %s583
        %s585 = sand.u32 %s254, 1
        %s586 = smul.addr %s585, 128
        %s587 = scalar_lea.vmem [#allocation8], %s586
        %p588 = pneg %p267
        %p589 = pneg %p264
        %p590 = scmp.lt.s32.totalorder %s32, 1
        %s591 = scalar_select %p590, %s32, 1
        %s592 = scalar_lea.vmem %s10, %s591
        %p593 = pneg %p293
        %p594 = pneg %p290
        %p595 = pneg %p314
        %p596 = pneg %p311
        %p597 = pneg %p335
        %p598 = pneg %p332
        %p599 = pneg %p356
        %p600 = pneg %p353
        %p601 = pneg %p377
        %p602 = pneg %p374
        %p603 = scmp.lt.s32.totalorder %s32, 1
        %s604 = scalar_select %p603, %s32, 1
        %s605 = smul.addr %s604, 2
        %s606 = scalar_lea.vmem %s5, %s605
        %p607 = scmp.lt.s32.totalorder %s32, 1
        %s608 = scalar_select %p607, %s32, 1
        %s609 = scalar_lea.vmem %s6, %s608
        %p610 = scmp.lt.s32.totalorder %s32, 1
        %s611 = scalar_select %p610, %s32, 1
        %s612 = scalar_lea.vmem %s7, %s611
        %p613 = scmp.lt.s32.totalorder %s32, 1
        %s614 = scalar_select %p613, %s32, 1
        %s615 = scalar_lea.vmem %s10, %s614
        %p616 = scmp.eq.s32.totalorder %s32, 0
        // Predicated region
        $region89: #{noglass_apply.1} parent=75 // pred_check
          %p617 = pneg %p616
        $region90: #{noglass_apply.1} parent=75 // pred_check_branch
          %619 = sbr.rel (%p617) target = $region92
        $region91: #{noglass_apply.1} parent=75 // pred_region
          %v620 = vld [vmem:[%s0] sm:$0xff]
          %v621 = vld [vmem:[%s0 + $0x8] sm:$0xff]
          %v622 = vld [vmem:[%s1] sm:$0x1]
          %v623 = vld [vmem:[%s2] sm:$0x1]
          %624 = vadd.xlane.f32.xlu0 %v620
          %v625 = vpop.xlane.xlu0 %624
          %626 = vadd.xlane.f32.xlu0 %v621
          %v627 = vpop.xlane.xlu0 %626
          %v628 = vmul.f32 %v625, 0.03125
          %v629 = vmul.f32 %v627, 0.03125
          %v630 = vmul.f32 %v620, %v620
          %v631 = vmul.f32 %v621, %v621
          %632 = vadd.xlane.f32.xlu0 %v630
          %v633 = vpop.xlane.xlu0 %632
          %634 = vadd.xlane.f32.xlu0 %v631
          %v635 = vpop.xlane.xlu0 %634
          %v636 = vmul.f32 %v633, 0.03125
          %v637 = vmul.f32 %v635, 0.03125
          %v638 = vmul.f32 %v628, %v628
          %v639 = vmul.f32 %v629, %v629
          %v640 = vsub.f32 %v636, %v638
          %v641 = vsub.f32 %v637, %v639
          %v642 = vsub.f32 %v620, %v628
          %v643 = vsub.f32 %v621, %v629
          %v644 = vadd.f32 %v640, 1e-05
          %v645 = vadd.f32 %v641, 1e-05
          %v646 = vrsqrt.pop %v644
          %v647 = vmul.f32 %v646, %v644
          %v648 = vmul.f32 %v647, %v646
          %v649 = vmul.f32 0.5, %v648
          %v650 = vsub.f32 1.5, %v649
          %v651 = vmul.f32 %v646, %v650
          %vm652 = vweird.f32 %v644
          %vm653 = vweird.f32 %v646
          %vm654 = vmor %vm652, %vm653
          %v655 = vsel %vm654, %v646, %v651
          %v656 = vrsqrt.pop %v645
          %v657 = vmul.f32 %v656, %v645
          %v658 = vmul.f32 %v657, %v656
          %v659 = vmul.f32 0.5, %v658
          %v660 = vsub.f32 1.5, %v659
          %v661 = vmul.f32 %v656, %v660
          %vm662 = vweird.f32 %v645
          %vm663 = vweird.f32 %v656
          %vm664 = vmor %vm662, %vm663
          %v665 = vsel %vm664, %v656, %v661
          %v666 = vmul.f32 %v642, %v655
          %v667 = vmul.f32 %v643, %v665
          %v669 = vperm.slane %v622, 0
          %v671 = vmul.f32 %v666, %v669
          %v672 = vmul.f32 %v667, %v669
          %v674 = vperm.slane %v623, 0
          %v676 = vadd.f32 %v671, %v674
          %v677 = vadd.f32 %v672, %v674
          %678 = vst [vmem:[#allocation2] sm:$0xff] %v676
          %679 = vst [vmem:[#allocation2 + $0x8] sm:$0xff] %v677
        $region92: #{noglass_apply.1} parent=75 // pred_fallthru
          _
        %v680 = vld [vmem:[#allocation2] sm:$0xff]
        %v681 = vld [vmem:[#allocation2 + $0x8] sm:$0xff]
        %v682 = vld [vmem:[%s519] sm:$0xff]
        %v683 = vld [vmem:[%s519 + $0x8] sm:$0xff]
        %v684 = vld [vmem:[%s519 + $0x10] sm:$0xff]
        %v685 = vld [vmem:[%s519 + $0x18] sm:$0xff]
        %v686 = vld [vmem:[%s519 + $0x20] sm:$0xff]
        %v687 = vld [vmem:[%s519 + $0x28] sm:$0xff]
        %v688 = vld [vmem:[%s519 + $0x30] sm:$0xff]
        %v689 = vld [vmem:[%s519 + $0x38] sm:$0xff]
        %v690 = vld [vmem:[%s519 + $0x40] sm:$0xff]
        %v691 = vld [vmem:[%s519 + $0x48] sm:$0xff]
        %v692 = vld [vmem:[%s519 + $0x50] sm:$0xff]
        %v693 = vld [vmem:[%s519 + $0x58] sm:$0xff]
        %v694 = vld [vmem:[%s519 + $0x60] sm:$0xff]
        %v695 = vld [vmem:[%s519 + $0x68] sm:$0xff]
        %v696 = vld [vmem:[%s519 + $0x70] sm:$0xff]
        %v697 = vld [vmem:[%s519 + $0x78] sm:$0xff]
        %v698 = vld [vmem:[%s519 + $0x80] sm:$0xff]
        %v699 = vld [vmem:[%s519 + $0x88] sm:$0xff]
        %v700 = vld [vmem:[%s519 + $0x90] sm:$0xff]
        %v701 = vld [vmem:[%s519 + $0x98] sm:$0xff]
        %v702 = vld [vmem:[%s519 + $0xa0] sm:$0xff]
        %v703 = vld [vmem:[%s519 + $0xa8] sm:$0xff]
        %v704 = vld [vmem:[%s519 + $0xb0] sm:$0xff]
        %v705 = vld [vmem:[%s519 + $0xb8] sm:$0xff]
        %v706 = vld [vmem:[%s519 + $0xc0] sm:$0xff]
        %v707 = vld [vmem:[%s519 + $0xc8] sm:$0xff]
        %v708 = vld [vmem:[%s519 + $0xd0] sm:$0xff]
        %v709 = vld [vmem:[%s519 + $0xd8] sm:$0xff]
        %v710 = vld [vmem:[%s519 + $0xe0] sm:$0xff]
        %v711 = vld [vmem:[%s519 + $0xe8] sm:$0xff]
        %v712 = vld [vmem:[%s519 + $0xf0] sm:$0xff]
        %v713 = vld [vmem:[%s519 + $0xf8] sm:$0xff]
        %v714 = vld [vmem:[%s606] sm:$0x3]
        %v716 = vperm.slane %v714, 0
        %v717 = vperm.slane %v714, 1
        %v720 = vand.u32 %v712, 4294901760
        %721 = vmatpush.msra.mxu0 %v720
        %v722 = vand.u32 %v710, 4294901760
        %723 = vmatpush.msra.mxu0 %v722
        %v724 = vand.u32 %v708, 4294901760
        %725 = vmatpush.msra.mxu0 %v724
        %v726 = vand.u32 %v706, 4294901760
        %727 = vmatpush.msra.mxu0 %v726
        %v728 = vand.u32 %v704, 4294901760
        %729 = vmatpush.msra.mxu0 %v728
        %v730 = vand.u32 %v702, 4294901760
        %731 = vmatpush.msra.mxu0 %v730
        %v732 = vand.u32 %v700, 4294901760
        %733 = vmatpush.msra.mxu0 %v732
        %v734 = vand.u32 %v698, 4294901760
        %735 = vmatpush.msra.mxu0 %v734
        %v736 = vand.u32 %v696, 4294901760
        %737 = vmatpush.msra.mxu0 %v736
        %v738 = vand.u32 %v694, 4294901760
        %739 = vmatpush.msra.mxu0 %v738
        %v740 = vand.u32 %v692, 4294901760
        %741 = vmatpush.msra.mxu0 %v740
        %v742 = vand.u32 %v690, 4294901760
        %743 = vmatpush.msra.mxu0 %v742
        %v744 = vand.u32 %v688, 4294901760
        %745 = vmatpush.msra.mxu0 %v744
        %v746 = vand.u32 %v686, 4294901760
        %747 = vmatpush.msra.mxu0 %v746
        %v748 = vand.u32 %v684, 4294901760
        %749 = vmatpush.msra.mxu0 %v748
        %v750 = vand.u32 %v682, 4294901760
        %751 = vmatpush.msra.mxu0 %v750
        %v752 = vand.u32 %v680, 4294901760
        %v753 = vsub.f32 %v680, %v752
        %v754 = vand.u32 %v753, 4294901760
        %v755 = vsub.f32 %v753, %v754
        %v756 = vand.u32 %v755, 4294901760
        %757 = vmatmul.f32.gmra.mxu0 %v756
        %v758 = vpop.f32.mrf.mxu0
        %v759 = vadd.f32 %v716, %v758
        %v760 = vand.u32 %v681, 4294901760
        %v761 = vsub.f32 %v681, %v760
        %v762 = vand.u32 %v761, 4294901760
        %v763 = vsub.f32 %v761, %v762
        %v764 = vand.u32 %v763, 4294901760
        %765 = vmatmul.f32.gmra.mxu0 %v764
        %v766 = vpop.f32.mrf.mxu0
        %v767 = vadd.f32 %v716, %v766
        %768 = vdwg.mxu0
        %v769 = vand.u32 %v712, 4294901760
        %v770 = vsub.f32 %v712, %v769
        %v771 = vand.u32 %v770, 4294901760
        %v772 = vsub.f32 %v770, %v771
        %v773 = vand.u32 %v772, 4294901760
        %774 = vmatpush.msra.mxu0 %v773
        %v775 = vand.u32 %v710, 4294901760
        %v776 = vsub.f32 %v710, %v775
        %v777 = vand.u32 %v776, 4294901760
        %v778 = vsub.f32 %v776, %v777
        %v779 = vand.u32 %v778, 4294901760
        %780 = vmatpush.msra.mxu0 %v779
        %v781 = vand.u32 %v708, 4294901760
        %v782 = vsub.f32 %v708, %v781
        %v783 = vand.u32 %v782, 4294901760
        %v784 = vsub.f32 %v782, %v783
        %v785 = vand.u32 %v784, 4294901760
        %786 = vmatpush.msra.mxu0 %v785
        %v787 = vand.u32 %v706, 4294901760
        %v788 = vsub.f32 %v706, %v787
        %v789 = vand.u32 %v788, 4294901760
        %v790 = vsub.f32 %v788, %v789
        %v791 = vand.u32 %v790, 4294901760
        %792 = vmatpush.msra.mxu0 %v791
        %v793 = vand.u32 %v704, 4294901760
        %v794 = vsub.f32 %v704, %v793
        %v795 = vand.u32 %v794, 4294901760
        %v796 = vsub.f32 %v794, %v795
        %v797 = vand.u32 %v796, 4294901760
        %798 = vmatpush.msra.mxu0 %v797
        %v799 = vand.u32 %v702, 4294901760
        %v800 = vsub.f32 %v702, %v799
        %v801 = vand.u32 %v800, 4294901760
        %v802 = vsub.f32 %v800, %v801
        %v803 = vand.u32 %v802, 4294901760
        %804 = vmatpush.msra.mxu0 %v803
        %v805 = vand.u32 %v700, 4294901760
        %v806 = vsub.f32 %v700, %v805
        %v807 = vand.u32 %v806, 4294901760
        %v808 = vsub.f32 %v806, %v807
        %v809 = vand.u32 %v808, 4294901760
        %810 = vmatpush.msra.mxu0 %v809
        %v811 = vand.u32 %v698, 4294901760
        %v812 = vsub.f32 %v698, %v811
        %v813 = vand.u32 %v812, 4294901760
        %v814 = vsub.f32 %v812, %v813
        %v815 = vand.u32 %v814, 4294901760
        %816 = vmatpush.msra.mxu0 %v815
        %v817 = vand.u32 %v696, 4294901760
        %v818 = vsub.f32 %v696, %v817
        %v819 = vand.u32 %v818, 4294901760
        %v820 = vsub.f32 %v818, %v819
        %v821 = vand.u32 %v820, 4294901760
        %822 = vmatpush.msra.mxu0 %v821
        %v823 = vand.u32 %v694, 4294901760
        %v824 = vsub.f32 %v694, %v823
        %v825 = vand.u32 %v824, 4294901760
        %v826 = vsub.f32 %v824, %v825
        %v827 = vand.u32 %v826, 4294901760
        %828 = vmatpush.msra.mxu0 %v827
        %v829 = vand.u32 %v692, 4294901760
        %v830 = vsub.f32 %v692, %v829
        %v831 = vand.u32 %v830, 4294901760
        %v832 = vsub.f32 %v830, %v831
        %v833 = vand.u32 %v832, 4294901760
        %834 = vmatpush.msra.mxu0 %v833
        %v835 = vand.u32 %v690, 4294901760
        %v836 = vsub.f32 %v690, %v835
        %v837 = vand.u32 %v836, 4294901760
        %v838 = vsub.f32 %v836, %v837
        %v839 = vand.u32 %v838, 4294901760
        %840 = vmatpush.msra.mxu0 %v839
        %v841 = vand.u32 %v688, 4294901760
        %v842 = vsub.f32 %v688, %v841
        %v843 = vand.u32 %v842, 4294901760
        %v844 = vsub.f32 %v842, %v843
        %v845 = vand.u32 %v844, 4294901760
        %846 = vmatpush.msra.mxu0 %v845
        %v847 = vand.u32 %v686, 4294901760
        %v848 = vsub.f32 %v686, %v847
        %v849 = vand.u32 %v848, 4294901760
        %v850 = vsub.f32 %v848, %v849
        %v851 = vand.u32 %v850, 4294901760
        %852 = vmatpush.msra.mxu0 %v851
        %v853 = vand.u32 %v684, 4294901760
        %v854 = vsub.f32 %v684, %v853
        %v855 = vand.u32 %v854, 4294901760
        %v856 = vsub.f32 %v854, %v855
        %v857 = vand.u32 %v856, 4294901760
        %858 = vmatpush.msra.mxu0 %v857
        %v859 = vand.u32 %v682, 4294901760
        %v860 = vsub.f32 %v682, %v859
        %v861 = vand.u32 %v860, 4294901760
        %v862 = vsub.f32 %v860, %v861
        %v863 = vand.u32 %v862, 4294901760
        %864 = vmatpush.msra.mxu0 %v863
        %v865 = vand.u32 %v680, 4294901760
        %866 = vmatmul.f32.gmra.mxu0 %v865
        %v867 = vpop.f32.mrf.mxu0
        %v868 = vadd.f32 %v759, %v867
        %v869 = vand.u32 %v681, 4294901760
        %870 = vmatmul.f32.gmra.mxu0 %v869
        %v871 = vpop.f32.mrf.mxu0
        %v872 = vadd.f32 %v767, %v871
        %873 = vdwg.mxu0
        %v874 = vand.u32 %v712, 4294901760
        %v875 = vsub.f32 %v712, %v874
        %876 = vmatpush.msra.mxu0 %v875
        %v877 = vand.u32 %v710, 4294901760
        %v878 = vsub.f32 %v710, %v877
        %879 = vmatpush.msra.mxu0 %v878
        %v880 = vand.u32 %v708, 4294901760
        %v881 = vsub.f32 %v708, %v880
        %882 = vmatpush.msra.mxu0 %v881
        %v883 = vand.u32 %v706, 4294901760
        %v884 = vsub.f32 %v706, %v883
        %885 = vmatpush.msra.mxu0 %v884
        %v886 = vand.u32 %v704, 4294901760
        %v887 = vsub.f32 %v704, %v886
        %888 = vmatpush.msra.mxu0 %v887
        %v889 = vand.u32 %v702, 4294901760
        %v890 = vsub.f32 %v702, %v889
        %891 = vmatpush.msra.mxu0 %v890
        %v892 = vand.u32 %v700, 4294901760
        %v893 = vsub.f32 %v700, %v892
        %894 = vmatpush.msra.mxu0 %v893
        %v895 = vand.u32 %v698, 4294901760
        %v896 = vsub.f32 %v698, %v895
        %897 = vmatpush.msra.mxu0 %v896
        %v898 = vand.u32 %v696, 4294901760
        %v899 = vsub.f32 %v696, %v898
        %900 = vmatpush.msra.mxu0 %v899
        %v901 = vand.u32 %v694, 4294901760
        %v902 = vsub.f32 %v694, %v901
        %903 = vmatpush.msra.mxu0 %v902
        %v904 = vand.u32 %v692, 4294901760
        %v905 = vsub.f32 %v692, %v904
        %906 = vmatpush.msra.mxu0 %v905
        %v907 = vand.u32 %v690, 4294901760
        %v908 = vsub.f32 %v690, %v907
        %909 = vmatpush.msra.mxu0 %v908
        %v910 = vand.u32 %v688, 4294901760
        %v911 = vsub.f32 %v688, %v910
        %912 = vmatpush.msra.mxu0 %v911
        %v913 = vand.u32 %v686, 4294901760
        %v914 = vsub.f32 %v686, %v913
        %915 = vmatpush.msra.mxu0 %v914
        %v916 = vand.u32 %v684, 4294901760
        %v917 = vsub.f32 %v684, %v916
        %918 = vmatpush.msra.mxu0 %v917
        %v919 = vand.u32 %v682, 4294901760
        %v920 = vsub.f32 %v682, %v919
        %921 = vmatpush.msra.mxu0 %v920
        %v922 = vand.u32 %v680, 4294901760
        %v923 = vsub.f32 %v680, %v922
        %924 = vmatmul.f32.gmra.mxu0 %v923
        %v925 = vpop.f32.mrf.mxu0
        %v926 = vadd.f32 %v868, %v925
        %v927 = vand.u32 %v681, 4294901760
        %v928 = vsub.f32 %v681, %v927
        %929 = vmatmul.f32.gmra.mxu0 %v928
        %v930 = vpop.f32.mrf.mxu0
        %v931 = vadd.f32 %v872, %v930
        %932 = vdwg.mxu0
        %v933 = vand.u32 %v712, 4294901760
        %934 = vmatpush.msra.mxu0 %v933
        %v935 = vand.u32 %v710, 4294901760
        %936 = vmatpush.msra.mxu0 %v935
        %v937 = vand.u32 %v708, 4294901760
        %938 = vmatpush.msra.mxu0 %v937
        %v939 = vand.u32 %v706, 4294901760
        %940 = vmatpush.msra.mxu0 %v939
        %v941 = vand.u32 %v704, 4294901760
        %942 = vmatpush.msra.mxu0 %v941
        %v943 = vand.u32 %v702, 4294901760
        %944 = vmatpush.msra.mxu0 %v943
        %v945 = vand.u32 %v700, 4294901760
        %946 = vmatpush.msra.mxu0 %v945
        %v947 = vand.u32 %v698, 4294901760
        %948 = vmatpush.msra.mxu0 %v947
        %v949 = vand.u32 %v696, 4294901760
        %950 = vmatpush.msra.mxu0 %v949
        %v951 = vand.u32 %v694, 4294901760
        %952 = vmatpush.msra.mxu0 %v951
        %v953 = vand.u32 %v692, 4294901760
        %954 = vmatpush.msra.mxu0 %v953
        %v955 = vand.u32 %v690, 4294901760
        %956 = vmatpush.msra.mxu0 %v955
        %v957 = vand.u32 %v688, 4294901760
        %958 = vmatpush.msra.mxu0 %v957
        %v959 = vand.u32 %v686, 4294901760
        %960 = vmatpush.msra.mxu0 %v959
        %v961 = vand.u32 %v684, 4294901760
        %962 = vmatpush.msra.mxu0 %v961
        %v963 = vand.u32 %v682, 4294901760
        %964 = vmatpush.msra.mxu0 %v963
        %v965 = vand.u32 %v680, 4294901760
        %v966 = vsub.f32 %v680, %v965
        %v967 = vand.u32 %v966, 4294901760
        %968 = vmatmul.f32.gmra.mxu0 %v967
        %v969 = vpop.f32.mrf.mxu0
        %v970 = vadd.f32 %v926, %v969
        %v971 = vand.u32 %v681, 4294901760
        %v972 = vsub.f32 %v681, %v971
        %v973 = vand.u32 %v972, 4294901760
        %974 = vmatmul.f32.gmra.mxu0 %v973
        %v975 = vpop.f32.mrf.mxu0
        %v976 = vadd.f32 %v931, %v975
        %977 = vdwg.mxu0
        %v978 = vand.u32 %v712, 4294901760
        %v979 = vsub.f32 %v712, %v978
        %v980 = vand.u32 %v979, 4294901760
        %981 = vmatpush.msra.mxu0 %v980
        %v982 = vand.u32 %v710, 4294901760
        %v983 = vsub.f32 %v710, %v982
        %v984 = vand.u32 %v983, 4294901760
        %985 = vmatpush.msra.mxu0 %v984
        %v986 = vand.u32 %v708, 4294901760
        %v987 = vsub.f32 %v708, %v986
        %v988 = vand.u32 %v987, 4294901760
        %989 = vmatpush.msra.mxu0 %v988
        %v990 = vand.u32 %v706, 4294901760
        %v991 = vsub.f32 %v706, %v990
        %v992 = vand.u32 %v991, 4294901760
        %993 = vmatpush.msra.mxu0 %v992
        %v994 = vand.u32 %v704, 4294901760
        %v995 = vsub.f32 %v704, %v994
        %v996 = vand.u32 %v995, 4294901760
        %997 = vmatpush.msra.mxu0 %v996
        %v998 = vand.u32 %v702, 4294901760
        %v999 = vsub.f32 %v702, %v998
        %v1000 = vand.u32 %v999, 4294901760
        %1001 = vmatpush.msra.mxu0 %v1000
        %v1002 = vand.u32 %v700, 4294901760
        %v1003 = vsub.f32 %v700, %v1002
        %v1004 = vand.u32 %v1003, 4294901760
        %1005 = vmatpush.msra.mxu0 %v1004
        %v1006 = vand.u32 %v698, 4294901760
        %v1007 = vsub.f32 %v698, %v1006
        %v1008 = vand.u32 %v1007, 4294901760
        %1009 = vmatpush.msra.mxu0 %v1008
        %v1010 = vand.u32 %v696, 4294901760
        %v1011 = vsub.f32 %v696, %v1010
        %v1012 = vand.u32 %v1011, 4294901760
        %1013 = vmatpush.msra.mxu0 %v1012
        %v1014 = vand.u32 %v694, 4294901760
        %v1015 = vsub.f32 %v694, %v1014
        %v1016 = vand.u32 %v1015, 4294901760
        %1017 = vmatpush.msra.mxu0 %v1016
        %v1018 = vand.u32 %v692, 4294901760
        %v1019 = vsub.f32 %v692, %v1018
        %v1020 = vand.u32 %v1019, 4294901760
        %1021 = vmatpush.msra.mxu0 %v1020
        %v1022 = vand.u32 %v690, 4294901760
        %v1023 = vsub.f32 %v690, %v1022
        %v1024 = vand.u32 %v1023, 4294901760
        %1025 = vmatpush.msra.mxu0 %v1024
        %v1026 = vand.u32 %v688, 4294901760
        %v1027 = vsub.f32 %v688, %v1026
        %v1028 = vand.u32 %v1027, 4294901760
        %1029 = vmatpush.msra.mxu0 %v1028
        %v1030 = vand.u32 %v686, 4294901760
        %v1031 = vsub.f32 %v686, %v1030
        %v1032 = vand.u32 %v1031, 4294901760
        %1033 = vmatpush.msra.mxu0 %v1032
        %v1034 = vand.u32 %v684, 4294901760
        %v1035 = vsub.f32 %v684, %v1034
        %v1036 = vand.u32 %v1035, 4294901760
        %1037 = vmatpush.msra.mxu0 %v1036
        %v1038 = vand.u32 %v682, 4294901760
        %v1039 = vsub.f32 %v682, %v1038
        %v1040 = vand.u32 %v1039, 4294901760
        %1041 = vmatpush.msra.mxu0 %v1040
        %v1042 = vand.u32 %v680, 4294901760
        %1043 = vmatmul.f32.gmra.mxu0 %v1042
        %v1044 = vpop.f32.mrf.mxu0
        %v1045 = vadd.f32 %v970, %v1044
        %v1046 = vand.u32 %v681, 4294901760
        %1047 = vmatmul.f32.gmra.mxu0 %v1046
        %v1048 = vpop.f32.mrf.mxu0
        %v1049 = vadd.f32 %v976, %v1048
        %1050 = vdwg.mxu0
        %v1051 = vand.u32 %v712, 4294901760
        %1052 = vmatpush.msra.mxu0 %v1051
        %v1053 = vand.u32 %v710, 4294901760
        %1054 = vmatpush.msra.mxu0 %v1053
        %v1055 = vand.u32 %v708, 4294901760
        %1056 = vmatpush.msra.mxu0 %v1055
        %v1057 = vand.u32 %v706, 4294901760
        %1058 = vmatpush.msra.mxu0 %v1057
        %v1059 = vand.u32 %v704, 4294901760
        %1060 = vmatpush.msra.mxu0 %v1059
        %v1061 = vand.u32 %v702, 4294901760
        %1062 = vmatpush.msra.mxu0 %v1061
        %v1063 = vand.u32 %v700, 4294901760
        %1064 = vmatpush.msra.mxu0 %v1063
        %v1065 = vand.u32 %v698, 4294901760
        %1066 = vmatpush.msra.mxu0 %v1065
        %v1067 = vand.u32 %v696, 4294901760
        %1068 = vmatpush.msra.mxu0 %v1067
        %v1069 = vand.u32 %v694, 4294901760
        %1070 = vmatpush.msra.mxu0 %v1069
        %v1071 = vand.u32 %v692, 4294901760
        %1072 = vmatpush.msra.mxu0 %v1071
        %v1073 = vand.u32 %v690, 4294901760
        %1074 = vmatpush.msra.mxu0 %v1073
        %v1075 = vand.u32 %v688, 4294901760
        %1076 = vmatpush.msra.mxu0 %v1075
        %v1077 = vand.u32 %v686, 4294901760
        %1078 = vmatpush.msra.mxu0 %v1077
        %v1079 = vand.u32 %v684, 4294901760
        %1080 = vmatpush.msra.mxu0 %v1079
        %v1081 = vand.u32 %v682, 4294901760
        %1082 = vmatpush.msra.mxu0 %v1081
        %v1083 = vand.u32 %v680, 4294901760
        %1084 = vmatmul.f32.gmra.mxu0 %v1083
        %v1085 = vpop.f32.mrf.mxu0
        %v1086 = vadd.f32 %v1045, %v1085
        %v1087 = vand.u32 %v681, 4294901760
        %1088 = vmatmul.f32.gmra.mxu0 %v1087
        %v1089 = vpop.f32.mrf.mxu0
        %v1090 = vadd.f32 %v1049, %v1089
        %1091 = vdwg.mxu0
        %v1092 = vand.u32 %v713, 4294901760
        %1093 = vmatpush.msra.mxu0 %v1092
        %v1094 = vand.u32 %v711, 4294901760
        %1095 = vmatpush.msra.mxu0 %v1094
        %v1096 = vand.u32 %v709, 4294901760
        %1097 = vmatpush.msra.mxu0 %v1096
        %v1098 = vand.u32 %v707, 4294901760
        %1099 = vmatpush.msra.mxu0 %v1098
        %v1100 = vand.u32 %v705, 4294901760
        %1101 = vmatpush.msra.mxu0 %v1100
        %v1102 = vand.u32 %v703, 4294901760
        %1103 = vmatpush.msra.mxu0 %v1102
        %v1104 = vand.u32 %v701, 4294901760
        %1105 = vmatpush.msra.mxu0 %v1104
        %v1106 = vand.u32 %v699, 4294901760
        %1107 = vmatpush.msra.mxu0 %v1106
        %v1108 = vand.u32 %v697, 4294901760
        %1109 = vmatpush.msra.mxu0 %v1108
        %v1110 = vand.u32 %v695, 4294901760
        %1111 = vmatpush.msra.mxu0 %v1110
        %v1112 = vand.u32 %v693, 4294901760
        %1113 = vmatpush.msra.mxu0 %v1112
        %v1114 = vand.u32 %v691, 4294901760
        %1115 = vmatpush.msra.mxu0 %v1114
        %v1116 = vand.u32 %v689, 4294901760
        %1117 = vmatpush.msra.mxu0 %v1116
        %v1118 = vand.u32 %v687, 4294901760
        %1119 = vmatpush.msra.mxu0 %v1118
        %v1120 = vand.u32 %v685, 4294901760
        %1121 = vmatpush.msra.mxu0 %v1120
        %v1122 = vand.u32 %v683, 4294901760
        %1123 = vmatpush.msra.mxu0 %v1122
        %v1124 = vand.u32 %v680, 4294901760
        %v1125 = vsub.f32 %v680, %v1124
        %v1126 = vand.u32 %v1125, 4294901760
        %v1127 = vsub.f32 %v1125, %v1126
        %v1128 = vand.u32 %v1127, 4294901760
        %1129 = vmatmul.f32.gmra.mxu0 %v1128
        %v1130 = vpop.f32.mrf.mxu0
        %v1131 = vadd.f32 %v717, %v1130
        %v1132 = vand.u32 %v681, 4294901760
        %v1133 = vsub.f32 %v681, %v1132
        %v1134 = vand.u32 %v1133, 4294901760
        %v1135 = vsub.f32 %v1133, %v1134
        %v1136 = vand.u32 %v1135, 4294901760
        %1137 = vmatmul.f32.gmra.mxu0 %v1136
        %v1138 = vpop.f32.mrf.mxu0
        %v1139 = vadd.f32 %v717, %v1138
        %1140 = vdwg.mxu0
        %v1141 = vand.u32 %v713, 4294901760
        %v1142 = vsub.f32 %v713, %v1141
        %v1143 = vand.u32 %v1142, 4294901760
        %v1144 = vsub.f32 %v1142, %v1143
        %v1145 = vand.u32 %v1144, 4294901760
        %1146 = vmatpush.msra.mxu0 %v1145
        %v1147 = vand.u32 %v711, 4294901760
        %v1148 = vsub.f32 %v711, %v1147
        %v1149 = vand.u32 %v1148, 4294901760
        %v1150 = vsub.f32 %v1148, %v1149
        %v1151 = vand.u32 %v1150, 4294901760
        %1152 = vmatpush.msra.mxu0 %v1151
        %v1153 = vand.u32 %v709, 4294901760
        %v1154 = vsub.f32 %v709, %v1153
        %v1155 = vand.u32 %v1154, 4294901760
        %v1156 = vsub.f32 %v1154, %v1155
        %v1157 = vand.u32 %v1156, 4294901760
        %1158 = vmatpush.msra.mxu0 %v1157
        %v1159 = vand.u32 %v707, 4294901760
        %v1160 = vsub.f32 %v707, %v1159
        %v1161 = vand.u32 %v1160, 4294901760
        %v1162 = vsub.f32 %v1160, %v1161
        %v1163 = vand.u32 %v1162, 4294901760
        %1164 = vmatpush.msra.mxu0 %v1163
        %v1165 = vand.u32 %v705, 4294901760
        %v1166 = vsub.f32 %v705, %v1165
        %v1167 = vand.u32 %v1166, 4294901760
        %v1168 = vsub.f32 %v1166, %v1167
        %v1169 = vand.u32 %v1168, 4294901760
        %1170 = vmatpush.msra.mxu0 %v1169
        %v1171 = vand.u32 %v703, 4294901760
        %v1172 = vsub.f32 %v703, %v1171
        %v1173 = vand.u32 %v1172, 4294901760
        %v1174 = vsub.f32 %v1172, %v1173
        %v1175 = vand.u32 %v1174, 4294901760
        %1176 = vmatpush.msra.mxu0 %v1175
        %v1177 = vand.u32 %v701, 4294901760
        %v1178 = vsub.f32 %v701, %v1177
        %v1179 = vand.u32 %v1178, 4294901760
        %v1180 = vsub.f32 %v1178, %v1179
        %v1181 = vand.u32 %v1180, 4294901760
        %1182 = vmatpush.msra.mxu0 %v1181
        %v1183 = vand.u32 %v699, 4294901760
        %v1184 = vsub.f32 %v699, %v1183
        %v1185 = vand.u32 %v1184, 4294901760
        %v1186 = vsub.f32 %v1184, %v1185
        %v1187 = vand.u32 %v1186, 4294901760
        %1188 = vmatpush.msra.mxu0 %v1187
        %v1189 = vand.u32 %v697, 4294901760
        %v1190 = vsub.f32 %v697, %v1189
        %v1191 = vand.u32 %v1190, 4294901760
        %v1192 = vsub.f32 %v1190, %v1191
        %v1193 = vand.u32 %v1192, 4294901760
        %1194 = vmatpush.msra.mxu0 %v1193
        %v1195 = vand.u32 %v695, 4294901760
        %v1196 = vsub.f32 %v695, %v1195
        %v1197 = vand.u32 %v1196, 4294901760
        %v1198 = vsub.f32 %v1196, %v1197
        %v1199 = vand.u32 %v1198, 4294901760
        %1200 = vmatpush.msra.mxu0 %v1199
        %v1201 = vand.u32 %v693, 4294901760
        %v1202 = vsub.f32 %v693, %v1201
        %v1203 = vand.u32 %v1202, 4294901760
        %v1204 = vsub.f32 %v1202, %v1203
        %v1205 = vand.u32 %v1204, 4294901760
        %1206 = vmatpush.msra.mxu0 %v1205
        %v1207 = vand.u32 %v691, 4294901760
        %v1208 = vsub.f32 %v691, %v1207
        %v1209 = vand.u32 %v1208, 4294901760
        %v1210 = vsub.f32 %v1208, %v1209
        %v1211 = vand.u32 %v1210, 4294901760
        %1212 = vmatpush.msra.mxu0 %v1211
        %v1213 = vand.u32 %v689, 4294901760
        %v1214 = vsub.f32 %v689, %v1213
        %v1215 = vand.u32 %v1214, 4294901760
        %v1216 = vsub.f32 %v1214, %v1215
        %v1217 = vand.u32 %v1216, 4294901760
        %1218 = vmatpush.msra.mxu0 %v1217
        %v1219 = vand.u32 %v687, 4294901760
        %v1220 = vsub.f32 %v687, %v1219
        %v1221 = vand.u32 %v1220, 4294901760
        %v1222 = vsub.f32 %v1220, %v1221
        %v1223 = vand.u32 %v1222, 4294901760
        %1224 = vmatpush.msra.mxu0 %v1223
        %v1225 = vand.u32 %v685, 4294901760
        %v1226 = vsub.f32 %v685, %v1225
        %v1227 = vand.u32 %v1226, 4294901760
        %v1228 = vsub.f32 %v1226, %v1227
        %v1229 = vand.u32 %v1228, 4294901760
        %1230 = vmatpush.msra.mxu0 %v1229
        %v1231 = vand.u32 %v683, 4294901760
        %v1232 = vsub.f32 %v683, %v1231
        %v1233 = vand.u32 %v1232, 4294901760
        %v1234 = vsub.f32 %v1232, %v1233
        %v1235 = vand.u32 %v1234, 4294901760
        %1236 = vmatpush.msra.mxu0 %v1235
        %v1237 = vand.u32 %v680, 4294901760
        %1238 = vmatmul.f32.gmra.mxu0 %v1237
        %v1239 = vpop.f32.mrf.mxu0
        %v1240 = vadd.f32 %v1131, %v1239
        %v1241 = vand.u32 %v681, 4294901760
        %1242 = vmatmul.f32.gmra.mxu0 %v1241
        %v1243 = vpop.f32.mrf.mxu0
        %v1244 = vadd.f32 %v1139, %v1243
        %1245 = vdwg.mxu0
        %v1246 = vand.u32 %v713, 4294901760
        %v1247 = vsub.f32 %v713, %v1246
        %1248 = vmatpush.msra.mxu0 %v1247
        %v1249 = vand.u32 %v711, 4294901760
        %v1250 = vsub.f32 %v711, %v1249
        %1251 = vmatpush.msra.mxu0 %v1250
        %v1252 = vand.u32 %v709, 4294901760
        %v1253 = vsub.f32 %v709, %v1252
        %1254 = vmatpush.msra.mxu0 %v1253
        %v1255 = vand.u32 %v707, 4294901760
        %v1256 = vsub.f32 %v707, %v1255
        %1257 = vmatpush.msra.mxu0 %v1256
        %v1258 = vand.u32 %v705, 4294901760
        %v1259 = vsub.f32 %v705, %v1258
        %1260 = vmatpush.msra.mxu0 %v1259
        %v1261 = vand.u32 %v703, 4294901760
        %v1262 = vsub.f32 %v703, %v1261
        %1263 = vmatpush.msra.mxu0 %v1262
        %v1264 = vand.u32 %v701, 4294901760
        %v1265 = vsub.f32 %v701, %v1264
        %1266 = vmatpush.msra.mxu0 %v1265
        %v1267 = vand.u32 %v699, 4294901760
        %v1268 = vsub.f32 %v699, %v1267
        %1269 = vmatpush.msra.mxu0 %v1268
        %v1270 = vand.u32 %v697, 4294901760
        %v1271 = vsub.f32 %v697, %v1270
        %1272 = vmatpush.msra.mxu0 %v1271
        %v1273 = vand.u32 %v695, 4294901760
        %v1274 = vsub.f32 %v695, %v1273
        %1275 = vmatpush.msra.mxu0 %v1274
        %v1276 = vand.u32 %v693, 4294901760
        %v1277 = vsub.f32 %v693, %v1276
        %1278 = vmatpush.msra.mxu0 %v1277
        %v1279 = vand.u32 %v691, 4294901760
        %v1280 = vsub.f32 %v691, %v1279
        %1281 = vmatpush.msra.mxu0 %v1280
        %v1282 = vand.u32 %v689, 4294901760
        %v1283 = vsub.f32 %v689, %v1282
        %1284 = vmatpush.msra.mxu0 %v1283
        %v1285 = vand.u32 %v687, 4294901760
        %v1286 = vsub.f32 %v687, %v1285
        %1287 = vmatpush.msra.mxu0 %v1286
        %v1288 = vand.u32 %v685, 4294901760
        %v1289 = vsub.f32 %v685, %v1288
        %1290 = vmatpush.msra.mxu0 %v1289
        %v1291 = vand.u32 %v683, 4294901760
        %v1292 = vsub.f32 %v683, %v1291
        %1293 = vmatpush.msra.mxu0 %v1292
        %v1294 = vand.u32 %v680, 4294901760
        %v1295 = vsub.f32 %v680, %v1294
        %1296 = vmatmul.f32.gmra.mxu0 %v1295
        %v1297 = vpop.f32.mrf.mxu0
        %v1298 = vadd.f32 %v1240, %v1297
        %v1299 = vand.u32 %v681, 4294901760
        %v1300 = vsub.f32 %v681, %v1299
        %1301 = vmatmul.f32.gmra.mxu0 %v1300
        %v1302 = vpop.f32.mrf.mxu0
        %v1303 = vadd.f32 %v1244, %v1302
        %1304 = vdwg.mxu0
        %v1305 = vand.u32 %v713, 4294901760
        %1306 = vmatpush.msra.mxu0 %v1305
        %v1307 = vand.u32 %v711, 4294901760
        %1308 = vmatpush.msra.mxu0 %v1307
        %v1309 = vand.u32 %v709, 4294901760
        %1310 = vmatpush.msra.mxu0 %v1309
        %v1311 = vand.u32 %v707, 4294901760
        %1312 = vmatpush.msra.mxu0 %v1311
        %v1313 = vand.u32 %v705, 4294901760
        %1314 = vmatpush.msra.mxu0 %v1313
        %v1315 = vand.u32 %v703, 4294901760
        %1316 = vmatpush.msra.mxu0 %v1315
        %v1317 = vand.u32 %v701, 4294901760
        %1318 = vmatpush.msra.mxu0 %v1317
        %v1319 = vand.u32 %v699, 4294901760
        %1320 = vmatpush.msra.mxu0 %v1319
        %v1321 = vand.u32 %v697, 4294901760
        %1322 = vmatpush.msra.mxu0 %v1321
        %v1323 = vand.u32 %v695, 4294901760
        %1324 = vmatpush.msra.mxu0 %v1323
        %v1325 = vand.u32 %v693, 4294901760
        %1326 = vmatpush.msra.mxu0 %v1325
        %v1327 = vand.u32 %v691, 4294901760
        %1328 = vmatpush.msra.mxu0 %v1327
        %v1329 = vand.u32 %v689, 4294901760
        %1330 = vmatpush.msra.mxu0 %v1329
        %v1331 = vand.u32 %v687, 4294901760
        %1332 = vmatpush.msra.mxu0 %v1331
        %v1333 = vand.u32 %v685, 4294901760
        %1334 = vmatpush.msra.mxu0 %v1333
        %v1335 = vand.u32 %v683, 4294901760
        %1336 = vmatpush.msra.mxu0 %v1335
        %v1337 = vand.u32 %v680, 4294901760
        %v1338 = vsub.f32 %v680, %v1337
        %v1339 = vand.u32 %v1338, 4294901760
        %1340 = vmatmul.f32.gmra.mxu0 %v1339
        %v1341 = vpop.f32.mrf.mxu0
        %v1342 = vadd.f32 %v1298, %v1341
        %v1343 = vand.u32 %v681, 4294901760
        %v1344 = vsub.f32 %v681, %v1343
        %v1345 = vand.u32 %v1344, 4294901760
        %1346 = vmatmul.f32.gmra.mxu0 %v1345
        %v1347 = vpop.f32.mrf.mxu0
        %v1348 = vadd.f32 %v1303, %v1347
        %1349 = vdwg.mxu0
        %v1350 = vand.u32 %v713, 4294901760
        %v1351 = vsub.f32 %v713, %v1350
        %v1352 = vand.u32 %v1351, 4294901760
        %1353 = vmatpush.msra.mxu0 %v1352
        %v1354 = vand.u32 %v711, 4294901760
        %v1355 = vsub.f32 %v711, %v1354
        %v1356 = vand.u32 %v1355, 4294901760
        %1357 = vmatpush.msra.mxu0 %v1356
        %v1358 = vand.u32 %v709, 4294901760
        %v1359 = vsub.f32 %v709, %v1358
        %v1360 = vand.u32 %v1359, 4294901760
        %1361 = vmatpush.msra.mxu0 %v1360
        %v1362 = vand.u32 %v707, 4294901760
        %v1363 = vsub.f32 %v707, %v1362
        %v1364 = vand.u32 %v1363, 4294901760
        %1365 = vmatpush.msra.mxu0 %v1364
        %v1366 = vand.u32 %v705, 4294901760
        %v1367 = vsub.f32 %v705, %v1366
        %v1368 = vand.u32 %v1367, 4294901760
        %1369 = vmatpush.msra.mxu0 %v1368
        %v1370 = vand.u32 %v703, 4294901760
        %v1371 = vsub.f32 %v703, %v1370
        %v1372 = vand.u32 %v1371, 4294901760
        %1373 = vmatpush.msra.mxu0 %v1372
        %v1374 = vand.u32 %v701, 4294901760
        %v1375 = vsub.f32 %v701, %v1374
        %v1376 = vand.u32 %v1375, 4294901760
        %1377 = vmatpush.msra.mxu0 %v1376
        %v1378 = vand.u32 %v699, 4294901760
        %v1379 = vsub.f32 %v699, %v1378
        %v1380 = vand.u32 %v1379, 4294901760
        %1381 = vmatpush.msra.mxu0 %v1380
        %v1382 = vand.u32 %v697, 4294901760
        %v1383 = vsub.f32 %v697, %v1382
        %v1384 = vand.u32 %v1383, 4294901760
        %1385 = vmatpush.msra.mxu0 %v1384
        %v1386 = vand.u32 %v695, 4294901760
        %v1387 = vsub.f32 %v695, %v1386
        %v1388 = vand.u32 %v1387, 4294901760
        %1389 = vmatpush.msra.mxu0 %v1388
        %v1390 = vand.u32 %v693, 4294901760
        %v1391 = vsub.f32 %v693, %v1390
        %v1392 = vand.u32 %v1391, 4294901760
        %1393 = vmatpush.msra.mxu0 %v1392
        %v1394 = vand.u32 %v691, 4294901760
        %v1395 = vsub.f32 %v691, %v1394
        %v1396 = vand.u32 %v1395, 4294901760
        %1397 = vmatpush.msra.mxu0 %v1396
        %v1398 = vand.u32 %v689, 4294901760
        %v1399 = vsub.f32 %v689, %v1398
        %v1400 = vand.u32 %v1399, 4294901760
        %1401 = vmatpush.msra.mxu0 %v1400
        %v1402 = vand.u32 %v687, 4294901760
        %v1403 = vsub.f32 %v687, %v1402
        %v1404 = vand.u32 %v1403, 4294901760
        %1405 = vmatpush.msra.mxu0 %v1404
        %v1406 = vand.u32 %v685, 4294901760
        %v1407 = vsub.f32 %v685, %v1406
        %v1408 = vand.u32 %v1407, 4294901760
        %1409 = vmatpush.msra.mxu0 %v1408
        %v1410 = vand.u32 %v683, 4294901760
        %v1411 = vsub.f32 %v683, %v1410
        %v1412 = vand.u32 %v1411, 4294901760
        %1413 = vmatpush.msra.mxu0 %v1412
        %v1414 = vand.u32 %v680, 4294901760
        %1415 = vmatmul.f32.gmra.mxu0 %v1414
        %v1416 = vpop.f32.mrf.mxu0
        %v1417 = vadd.f32 %v1342, %v1416
        %v1418 = vand.u32 %v681, 4294901760
        %1419 = vmatmul.f32.gmra.mxu0 %v1418
        %v1420 = vpop.f32.mrf.mxu0
        %v1421 = vadd.f32 %v1348, %v1420
        %1422 = vdwg.mxu0
        %v1423 = vand.u32 %v713, 4294901760
        %1424 = vmatpush.msra.mxu0 %v1423
        %v1425 = vand.u32 %v711, 4294901760
        %1426 = vmatpush.msra.mxu0 %v1425
        %v1427 = vand.u32 %v709, 4294901760
        %1428 = vmatpush.msra.mxu0 %v1427
        %v1429 = vand.u32 %v707, 4294901760
        %1430 = vmatpush.msra.mxu0 %v1429
        %v1431 = vand.u32 %v705, 4294901760
        %1432 = vmatpush.msra.mxu0 %v1431
        %v1433 = vand.u32 %v703, 4294901760
        %1434 = vmatpush.msra.mxu0 %v1433
        %v1435 = vand.u32 %v701, 4294901760
        %1436 = vmatpush.msra.mxu0 %v1435
        %v1437 = vand.u32 %v699, 4294901760
        %1438 = vmatpush.msra.mxu0 %v1437
        %v1439 = vand.u32 %v697, 4294901760
        %1440 = vmatpush.msra.mxu0 %v1439
        %v1441 = vand.u32 %v695, 4294901760
        %1442 = vmatpush.msra.mxu0 %v1441
        %v1443 = vand.u32 %v693, 4294901760
        %1444 = vmatpush.msra.mxu0 %v1443
        %v1445 = vand.u32 %v691, 4294901760
        %1446 = vmatpush.msra.mxu0 %v1445
        %v1447 = vand.u32 %v689, 4294901760
        %1448 = vmatpush.msra.mxu0 %v1447
        %v1449 = vand.u32 %v687, 4294901760
        %1450 = vmatpush.msra.mxu0 %v1449
        %v1451 = vand.u32 %v685, 4294901760
        %1452 = vmatpush.msra.mxu0 %v1451
        %v1453 = vand.u32 %v683, 4294901760
        %1454 = vmatpush.msra.mxu0 %v1453
        %v1455 = vand.u32 %v680, 4294901760
        %1456 = vmatmul.f32.gmra.mxu0 %v1455
        %v1457 = vpop.f32.mrf.mxu0
        %v1458 = vadd.f32 %v1417, %v1457
        %v1459 = vand.u32 %v681, 4294901760
        %1460 = vmatmul.f32.gmra.mxu0 %v1459
        %v1461 = vpop.f32.mrf.mxu0
        %v1462 = vadd.f32 %v1421, %v1461
        %1463 = vdwg.mxu0
        %v1464 = vmax.f32 %v1086, 0.0
        %v1465 = vmax.f32 %v1458, 0.0
        %v1466 = vmax.f32 %v1090, 0.0
        %v1467 = vmax.f32 %v1462, 0.0
        %v1468 = vmul.f32 %v1464, 0.8
        %v1469 = vmul.f32 %v1466, 0.8
        %v1470 = vmul.f32 %v1465, 0.2
        %v1471 = vmul.f32 %v1467, 0.2
        %v1472 = vadd.f32 %v1468, %v1470
        %v1473 = vadd.f32 %v1469, %v1471
        %v1474 = vld [vmem:[%s3] sm:$0xff]
        %v1475 = vld [vmem:[%s3 + $0x8] sm:$0xff]
        %vm1476 = vcmask 130048
        %v1478 = vsel %vm1476, %v1474, 0
        %v1481 = vsel %vm1476, %v1475, 0
        %1483 = vmatpush.msra.mxu0 0.0
        %1484 = vmatpush.msra.mxu0 0.0
        %1485 = vmatpush.msra.mxu0 0.0
        %1486 = vmatpush.msra.mxu0 0.0
        %1487 = vmatpush.msra.mxu0 0.0
        %1488 = vmatpush.msra.mxu0 0.0
        %1489 = vmatpush.msra.mxu0 0.0
        %1490 = vmatpush.msra.mxu0 0.0
        %1491 = vmatpush.msra.mxu0 0.0
        %1492 = vmatpush.msra.mxu0 0.0
        %1493 = vmatpush.msra.mxu0 0.0
        %1494 = vmatpush.msra.mxu0 0.0
        %1495 = vmatpush.msra.mxu0 0.0
        %1496 = vmatpush.msra.mxu0 0.0
        %v1497 = vand.u32 %v1473, 4294901760
        %1498 = vmatpush.msra.mxu0 %v1497
        %v1499 = vand.u32 %v1472, 4294901760
        %1500 = vmatpush.msra.mxu0 %v1499
        %v1501 = vand.u32 %v1478, 4294901760
        %v1502 = vsub.f32 %v1478, %v1501
        %v1503 = vand.u32 %v1502, 4294901760
        %v1504 = vsub.f32 %v1502, %v1503
        %v1505 = vand.u32 %v1504, 4294901760
        %1506 = vmatmul.f32.gmra.mxu0 %v1505
        %v1507 = vpop.f32.mrf.mxu0
        %v1508 = vadd.f32 0.0, %v1507
        %v1509 = vand.u32 %v1481, 4294901760
        %v1510 = vsub.f32 %v1481, %v1509
        %v1511 = vand.u32 %v1510, 4294901760
        %v1512 = vsub.f32 %v1510, %v1511
        %v1513 = vand.u32 %v1512, 4294901760
        %1514 = vmatmul.f32.gmra.mxu0 %v1513
        %v1515 = vpop.f32.mrf.mxu0
        %v1516 = vadd.f32 0.0, %v1515
        %1517 = vdwg.mxu0
        %1518 = vmatpush.msra.mxu0 0.0
        %1519 = vmatpush.msra.mxu0 0.0
        %1520 = vmatpush.msra.mxu0 0.0
        %1521 = vmatpush.msra.mxu0 0.0
        %1522 = vmatpush.msra.mxu0 0.0
        %1523 = vmatpush.msra.mxu0 0.0
        %1524 = vmatpush.msra.mxu0 0.0
        %1525 = vmatpush.msra.mxu0 0.0
        %1526 = vmatpush.msra.mxu0 0.0
        %1527 = vmatpush.msra.mxu0 0.0
        %1528 = vmatpush.msra.mxu0 0.0
        %1529 = vmatpush.msra.mxu0 0.0
        %1530 = vmatpush.msra.mxu0 0.0
        %1531 = vmatpush.msra.mxu0 0.0
        %v1532 = vand.u32 %v1473, 4294901760
        %v1533 = vsub.f32 %v1473, %v1532
        %v1534 = vand.u32 %v1533, 4294901760
        %v1535 = vsub.f32 %v1533, %v1534
        %v1536 = vand.u32 %v1535, 4294901760
        %1537 = vmatpush.msra.mxu0 %v1536
        %v1538 = vand.u32 %v1472, 4294901760
        %v1539 = vsub.f32 %v1472, %v1538
        %v1540 = vand.u32 %v1539, 4294901760
        %v1541 = vsub.f32 %v1539, %v1540
        %v1542 = vand.u32 %v1541, 4294901760
        %1543 = vmatpush.msra.mxu0 %v1542
        %v1544 = vand.u32 %v1478, 4294901760
        %1545 = vmatmul.f32.gmra.mxu0 %v1544
        %v1546 = vpop.f32.mrf.mxu0
        %v1547 = vadd.f32 %v1508, %v1546
        %v1548 = vand.u32 %v1481, 4294901760
        %1549 = vmatmul.f32.gmra.mxu0 %v1548
        %v1550 = vpop.f32.mrf.mxu0
        %v1551 = vadd.f32 %v1516, %v1550
        %1552 = vdwg.mxu0
        %1553 = vmatpush.msra.mxu0 0.0
        %1554 = vmatpush.msra.mxu0 0.0
        %1555 = vmatpush.msra.mxu0 0.0
        %1556 = vmatpush.msra.mxu0 0.0
        %1557 = vmatpush.msra.mxu0 0.0
        %1558 = vmatpush.msra.mxu0 0.0
        %1559 = vmatpush.msra.mxu0 0.0
        %1560 = vmatpush.msra.mxu0 0.0
        %1561 = vmatpush.msra.mxu0 0.0
        %1562 = vmatpush.msra.mxu0 0.0
        %1563 = vmatpush.msra.mxu0 0.0
        %1564 = vmatpush.msra.mxu0 0.0
        %1565 = vmatpush.msra.mxu0 0.0
        %1566 = vmatpush.msra.mxu0 0.0
        %v1567 = vand.u32 %v1473, 4294901760
        %v1568 = vsub.f32 %v1473, %v1567
        %1569 = vmatpush.msra.mxu0 %v1568
        %v1570 = vand.u32 %v1472, 4294901760
        %v1571 = vsub.f32 %v1472, %v1570
        %1572 = vmatpush.msra.mxu0 %v1571
        %v1573 = vand.u32 %v1478, 4294901760
        %v1574 = vsub.f32 %v1478, %v1573
        %1575 = vmatmul.f32.gmra.mxu0 %v1574
        %v1576 = vpop.f32.mrf.mxu0
        %v1577 = vadd.f32 %v1547, %v1576
        %v1578 = vand.u32 %v1481, 4294901760
        %v1579 = vsub.f32 %v1481, %v1578
        %1580 = vmatmul.f32.gmra.mxu0 %v1579
        %v1581 = vpop.f32.mrf.mxu0
        %v1582 = vadd.f32 %v1551, %v1581
        %1583 = vdwg.mxu0
        %1584 = vmatpush.msra.mxu0 0.0
        %1585 = vmatpush.msra.mxu0 0.0
        %1586 = vmatpush.msra.mxu0 0.0
        %1587 = vmatpush.msra.mxu0 0.0
        %1588 = vmatpush.msra.mxu0 0.0
        %1589 = vmatpush.msra.mxu0 0.0
        %1590 = vmatpush.msra.mxu0 0.0
        %1591 = vmatpush.msra.mxu0 0.0
        %1592 = vmatpush.msra.mxu0 0.0
        %1593 = vmatpush.msra.mxu0 0.0
        %1594 = vmatpush.msra.mxu0 0.0
        %1595 = vmatpush.msra.mxu0 0.0
        %1596 = vmatpush.msra.mxu0 0.0
        %1597 = vmatpush.msra.mxu0 0.0
        %v1598 = vand.u32 %v1473, 4294901760
        %1599 = vmatpush.msra.mxu0 %v1598
        %v1600 = vand.u32 %v1472, 4294901760
        %1601 = vmatpush.msra.mxu0 %v1600
        %v1602 = vand.u32 %v1478, 4294901760
        %v1603 = vsub.f32 %v1478, %v1602
        %v1604 = vand.u32 %v1603, 4294901760
        %1605 = vmatmul.f32.gmra.mxu0 %v1604
        %v1606 = vpop.f32.mrf.mxu0
        %v1607 = vadd.f32 %v1577, %v1606
        %v1608 = vand.u32 %v1481, 4294901760
        %v1609 = vsub.f32 %v1481, %v1608
        %v1610 = vand.u32 %v1609, 4294901760
        %1611 = vmatmul.f32.gmra.mxu0 %v1610
        %v1612 = vpop.f32.mrf.mxu0
        %v1613 = vadd.f32 %v1582, %v1612
        %1614 = vdwg.mxu0
        %1615 = vmatpush.msra.mxu0 0.0
        %1616 = vmatpush.msra.mxu0 0.0
        %1617 = vmatpush.msra.mxu0 0.0
        %1618 = vmatpush.msra.mxu0 0.0
        %1619 = vmatpush.msra.mxu0 0.0
        %1620 = vmatpush.msra.mxu0 0.0
        %1621 = vmatpush.msra.mxu0 0.0
        %1622 = vmatpush.msra.mxu0 0.0
        %1623 = vmatpush.msra.mxu0 0.0
        %1624 = vmatpush.msra.mxu0 0.0
        %1625 = vmatpush.msra.mxu0 0.0
        %1626 = vmatpush.msra.mxu0 0.0
        %1627 = vmatpush.msra.mxu0 0.0
        %1628 = vmatpush.msra.mxu0 0.0
        %v1629 = vand.u32 %v1473, 4294901760
        %v1630 = vsub.f32 %v1473, %v1629
        %v1631 = vand.u32 %v1630, 4294901760
        %1632 = vmatpush.msra.mxu0 %v1631
        %v1633 = vand.u32 %v1472, 4294901760
        %v1634 = vsub.f32 %v1472, %v1633
        %v1635 = vand.u32 %v1634, 4294901760
        %1636 = vmatpush.msra.mxu0 %v1635
        %v1637 = vand.u32 %v1478, 4294901760
        %1638 = vmatmul.f32.gmra.mxu0 %v1637
        %v1639 = vpop.f32.mrf.mxu0
        %v1640 = vadd.f32 %v1607, %v1639
        %v1641 = vand.u32 %v1481, 4294901760
        %1642 = vmatmul.f32.gmra.mxu0 %v1641
        %v1643 = vpop.f32.mrf.mxu0
        %v1644 = vadd.f32 %v1613, %v1643
        %1645 = vdwg.mxu0
        %1646 = vmatpush.msra.mxu0 0.0
        %1647 = vmatpush.msra.mxu0 0.0
        %1648 = vmatpush.msra.mxu0 0.0
        %1649 = vmatpush.msra.mxu0 0.0
        %1650 = vmatpush.msra.mxu0 0.0
        %1651 = vmatpush.msra.mxu0 0.0
        %1652 = vmatpush.msra.mxu0 0.0
        %1653 = vmatpush.msra.mxu0 0.0
        %1654 = vmatpush.msra.mxu0 0.0
        %1655 = vmatpush.msra.mxu0 0.0
        %1656 = vmatpush.msra.mxu0 0.0
        %1657 = vmatpush.msra.mxu0 0.0
        %1658 = vmatpush.msra.mxu0 0.0
        %1659 = vmatpush.msra.mxu0 0.0
        %v1660 = vand.u32 %v1473, 4294901760
        %1661 = vmatpush.msra.mxu0 %v1660
        %v1662 = vand.u32 %v1472, 4294901760
        %1663 = vmatpush.msra.mxu0 %v1662
        %v1664 = vand.u32 %v1478, 4294901760
        %1665 = vmatmul.f32.gmra.mxu0 %v1664
        %v1666 = vpop.f32.mrf.mxu0
        %v1667 = vadd.f32 %v1640, %v1666
        %v1668 = vand.u32 %v1481, 4294901760
        %1669 = vmatmul.f32.gmra.mxu0 %v1668
        %v1670 = vpop.f32.mrf.mxu0
        %v1671 = vadd.f32 %v1644, %v1670
        %1672 = vdwg.mxu0
        %v1673 = vld [vmem:[%s609] sm:$0x1]
        %v1674 = vld [vmem:[%s612] sm:$0x1]
        %1675 = vadd.xlane.f32.xlu0 %v1667
        %v1676 = vpop.xlane.xlu0 %1675
        %1677 = vadd.xlane.f32.xlu0 %v1671
        %v1678 = vpop.xlane.xlu0 %1677
        %v1679 = vmul.f32 %v1676, 0.03125
        %v1680 = vmul.f32 %v1678, 0.03125
        %v1681 = vmul.f32 %v1667, %v1667
        %v1682 = vmul.f32 %v1671, %v1671
        %1683 = vadd.xlane.f32.xlu0 %v1681
        %v1684 = vpop.xlane.xlu0 %1683
        %1685 = vadd.xlane.f32.xlu0 %v1682
        %v1686 = vpop.xlane.xlu0 %1685
        %v1687 = vmul.f32 %v1684, 0.03125
        %v1688 = vmul.f32 %v1686, 0.03125
        %v1689 = vmul.f32 %v1679, %v1679
        %v1690 = vmul.f32 %v1680, %v1680
        %v1691 = vsub.f32 %v1687, %v1689
        %v1692 = vsub.f32 %v1688, %v1690
        %v1693 = vsub.f32 %v1667, %v1679
        %v1694 = vsub.f32 %v1671, %v1680
        %v1695 = vadd.f32 %v1691, 1e-05
        %v1696 = vadd.f32 %v1692, 1e-05
        %v1697 = vrsqrt.pop %v1695
        %v1698 = vmul.f32 %v1697, %v1695
        %v1699 = vmul.f32 %v1698, %v1697
        %v1700 = vmul.f32 0.5, %v1699
        %v1701 = vsub.f32 1.5, %v1700
        %v1702 = vmul.f32 %v1697, %v1701
        %vm1703 = vweird.f32 %v1695
        %vm1704 = vweird.f32 %v1697
        %vm1705 = vmor %vm1703, %vm1704
        %v1706 = vsel %vm1705, %v1697, %v1702
        %v1707 = vrsqrt.pop %v1696
        %v1708 = vmul.f32 %v1707, %v1696
        %v1709 = vmul.f32 %v1708, %v1707
        %v1710 = vmul.f32 0.5, %v1709
        %v1711 = vsub.f32 1.5, %v1710
        %v1712 = vmul.f32 %v1707, %v1711
        %vm1713 = vweird.f32 %v1696
        %vm1714 = vweird.f32 %v1707
        %vm1715 = vmor %vm1713, %vm1714
        %v1716 = vsel %vm1715, %v1707, %v1712
        %v1717 = vmul.f32 %v1693, %v1706
        %v1718 = vmul.f32 %v1694, %v1716
        %v1720 = vperm.slane %v1673, 0
        %v1722 = vmul.f32 %v1717, %v1720
        %v1723 = vmul.f32 %v1718, %v1720
        %v1725 = vperm.slane %v1674, 0
        %v1727 = vadd.f32 %v1722, %v1725
        %v1728 = vadd.f32 %v1723, %v1725
        %v1729 = vld [vmem:[%s529] sm:$0xff]
        %v1730 = vld [vmem:[%s529 + $0x8] sm:$0xff]
        %v1731 = vld [vmem:[%s529 + $0x10] sm:$0xff]
        %v1732 = vld [vmem:[%s529 + $0x18] sm:$0xff]
        %v1733 = vld [vmem:[%s529 + $0x20] sm:$0xff]
        %v1734 = vld [vmem:[%s529 + $0x28] sm:$0xff]
        %v1735 = vld [vmem:[%s529 + $0x30] sm:$0xff]
        %v1736 = vld [vmem:[%s529 + $0x38] sm:$0xff]
        %v1737 = vld [vmem:[%s529 + $0x40] sm:$0xff]
        %v1738 = vld [vmem:[%s529 + $0x48] sm:$0xff]
        %v1739 = vld [vmem:[%s529 + $0x50] sm:$0xff]
        %v1740 = vld [vmem:[%s529 + $0x58] sm:$0xff]
        %v1741 = vld [vmem:[%s529 + $0x60] sm:$0xff]
        %v1742 = vld [vmem:[%s529 + $0x68] sm:$0xff]
        %v1743 = vld [vmem:[%s529 + $0x70] sm:$0xff]
        %v1744 = vld [vmem:[%s529 + $0x78] sm:$0xff]
        %v1745 = vld [vmem:[%s539] sm:$0xff]
        %v1746 = vld [vmem:[%s539 + $0x8] sm:$0xff]
        %v1747 = vld [vmem:[%s539 + $0x10] sm:$0xff]
        %v1748 = vld [vmem:[%s539 + $0x18] sm:$0xff]
        %v1749 = vld [vmem:[%s539 + $0x20] sm:$0xff]
        %v1750 = vld [vmem:[%s539 + $0x28] sm:$0xff]
        %v1751 = vld [vmem:[%s539 + $0x30] sm:$0xff]
        %v1752 = vld [vmem:[%s539 + $0x38] sm:$0xff]
        %v1753 = vld [vmem:[%s539 + $0x40] sm:$0xff]
        %v1754 = vld [vmem:[%s539 + $0x48] sm:$0xff]
        %v1755 = vld [vmem:[%s539 + $0x50] sm:$0xff]
        %v1756 = vld [vmem:[%s539 + $0x58] sm:$0xff]
        %v1757 = vld [vmem:[%s539 + $0x60] sm:$0xff]
        %v1758 = vld [vmem:[%s539 + $0x68] sm:$0xff]
        %v1759 = vld [vmem:[%s539 + $0x70] sm:$0xff]
        %v1760 = vld [vmem:[%s539 + $0x78] sm:$0xff]
        %v1761 = vand.u32 %v1760, 4294901760
        %1762 = vmatpush.msra.mxu0 %v1761
        %v1763 = vand.u32 %v1759, 4294901760
        %1764 = vmatpush.msra.mxu0 %v1763
        %v1765 = vand.u32 %v1758, 4294901760
        %1766 = vmatpush.msra.mxu0 %v1765
        %v1767 = vand.u32 %v1757, 4294901760
        %1768 = vmatpush.msra.mxu0 %v1767
        %v1769 = vand.u32 %v1756, 4294901760
        %1770 = vmatpush.msra.mxu0 %v1769
        %v1771 = vand.u32 %v1755, 4294901760
        %1772 = vmatpush.msra.mxu0 %v1771
        %v1773 = vand.u32 %v1754, 4294901760
        %1774 = vmatpush.msra.mxu0 %v1773
        %v1775 = vand.u32 %v1753, 4294901760
        %1776 = vmatpush.msra.mxu0 %v1775
        %v1777 = vand.u32 %v1752, 4294901760
        %1778 = vmatpush.msra.mxu0 %v1777
        %v1779 = vand.u32 %v1751, 4294901760
        %1780 = vmatpush.msra.mxu0 %v1779
        %v1781 = vand.u32 %v1750, 4294901760
        %1782 = vmatpush.msra.mxu0 %v1781
        %v1783 = vand.u32 %v1749, 4294901760
        %1784 = vmatpush.msra.mxu0 %v1783
        %v1785 = vand.u32 %v1748, 4294901760
        %1786 = vmatpush.msra.mxu0 %v1785
        %v1787 = vand.u32 %v1747, 4294901760
        %1788 = vmatpush.msra.mxu0 %v1787
        %v1789 = vand.u32 %v1746, 4294901760
        %1790 = vmatpush.msra.mxu0 %v1789
        %v1791 = vand.u32 %v1745, 4294901760
        %1792 = vmatpush.msra.mxu0 %v1791
        %v1793 = vand.u32 %v680, 4294901760
        %v1794 = vsub.f32 %v680, %v1793
        %v1795 = vand.u32 %v1794, 4294901760
        %v1796 = vsub.f32 %v1794, %v1795
        %v1797 = vand.u32 %v1796, 4294901760
        %1798 = vmatmul.f32.gmra.mxu0 %v1797
        %v1799 = vpop.f32.mrf.mxu0
        %v1800 = vadd.f32 0.0, %v1799
        %v1801 = vand.u32 %v681, 4294901760
        %v1802 = vsub.f32 %v681, %v1801
        %v1803 = vand.u32 %v1802, 4294901760
        %v1804 = vsub.f32 %v1802, %v1803
        %v1805 = vand.u32 %v1804, 4294901760
        %1806 = vmatmul.f32.gmra.mxu0 %v1805
        %v1807 = vpop.f32.mrf.mxu0
        %v1808 = vadd.f32 0.0, %v1807
        %1809 = vdwg.mxu0
        %v1810 = vand.u32 %v1760, 4294901760
        %v1811 = vsub.f32 %v1760, %v1810
        %v1812 = vand.u32 %v1811, 4294901760
        %v1813 = vsub.f32 %v1811, %v1812
        %v1814 = vand.u32 %v1813, 4294901760
        %1815 = vmatpush.msra.mxu0 %v1814
        %v1816 = vand.u32 %v1759, 4294901760
        %v1817 = vsub.f32 %v1759, %v1816
        %v1818 = vand.u32 %v1817, 4294901760
        %v1819 = vsub.f32 %v1817, %v1818
        %v1820 = vand.u32 %v1819, 4294901760
        %1821 = vmatpush.msra.mxu0 %v1820
        %v1822 = vand.u32 %v1758, 4294901760
        %v1823 = vsub.f32 %v1758, %v1822
        %v1824 = vand.u32 %v1823, 4294901760
        %v1825 = vsub.f32 %v1823, %v1824
        %v1826 = vand.u32 %v1825, 4294901760
        %1827 = vmatpush.msra.mxu0 %v1826
        %v1828 = vand.u32 %v1757, 4294901760
        %v1829 = vsub.f32 %v1757, %v1828
        %v1830 = vand.u32 %v1829, 4294901760
        %v1831 = vsub.f32 %v1829, %v1830
        %v1832 = vand.u32 %v1831, 4294901760
        %1833 = vmatpush.msra.mxu0 %v1832
        %v1834 = vand.u32 %v1756, 4294901760
        %v1835 = vsub.f32 %v1756, %v1834
        %v1836 = vand.u32 %v1835, 4294901760
        %v1837 = vsub.f32 %v1835, %v1836
        %v1838 = vand.u32 %v1837, 4294901760
        %1839 = vmatpush.msra.mxu0 %v1838
        %v1840 = vand.u32 %v1755, 4294901760
        %v1841 = vsub.f32 %v1755, %v1840
        %v1842 = vand.u32 %v1841, 4294901760
        %v1843 = vsub.f32 %v1841, %v1842
        %v1844 = vand.u32 %v1843, 4294901760
        %1845 = vmatpush.msra.mxu0 %v1844
        %v1846 = vand.u32 %v1754, 4294901760
        %v1847 = vsub.f32 %v1754, %v1846
        %v1848 = vand.u32 %v1847, 4294901760
        %v1849 = vsub.f32 %v1847, %v1848
        %v1850 = vand.u32 %v1849, 4294901760
        %1851 = vmatpush.msra.mxu0 %v1850
        %v1852 = vand.u32 %v1753, 4294901760
        %v1853 = vsub.f32 %v1753, %v1852
        %v1854 = vand.u32 %v1853, 4294901760
        %v1855 = vsub.f32 %v1853, %v1854
        %v1856 = vand.u32 %v1855, 4294901760
        %1857 = vmatpush.msra.mxu0 %v1856
        %v1858 = vand.u32 %v1752, 4294901760
        %v1859 = vsub.f32 %v1752, %v1858
        %v1860 = vand.u32 %v1859, 4294901760
        %v1861 = vsub.f32 %v1859, %v1860
        %v1862 = vand.u32 %v1861, 4294901760
        %1863 = vmatpush.msra.mxu0 %v1862
        %v1864 = vand.u32 %v1751, 4294901760
        %v1865 = vsub.f32 %v1751, %v1864
        %v1866 = vand.u32 %v1865, 4294901760
        %v1867 = vsub.f32 %v1865, %v1866
        %v1868 = vand.u32 %v1867, 4294901760
        %1869 = vmatpush.msra.mxu0 %v1868
        %v1870 = vand.u32 %v1750, 4294901760
        %v1871 = vsub.f32 %v1750, %v1870
        %v1872 = vand.u32 %v1871, 4294901760
        %v1873 = vsub.f32 %v1871, %v1872
        %v1874 = vand.u32 %v1873, 4294901760
        %1875 = vmatpush.msra.mxu0 %v1874
        %v1876 = vand.u32 %v1749, 4294901760
        %v1877 = vsub.f32 %v1749, %v1876
        %v1878 = vand.u32 %v1877, 4294901760
        %v1879 = vsub.f32 %v1877, %v1878
        %v1880 = vand.u32 %v1879, 4294901760
        %1881 = vmatpush.msra.mxu0 %v1880
        %v1882 = vand.u32 %v1748, 4294901760
        %v1883 = vsub.f32 %v1748, %v1882
        %v1884 = vand.u32 %v1883, 4294901760
        %v1885 = vsub.f32 %v1883, %v1884
        %v1886 = vand.u32 %v1885, 4294901760
        %1887 = vmatpush.msra.mxu0 %v1886
        %v1888 = vand.u32 %v1747, 4294901760
        %v1889 = vsub.f32 %v1747, %v1888
        %v1890 = vand.u32 %v1889, 4294901760
        %v1891 = vsub.f32 %v1889, %v1890
        %v1892 = vand.u32 %v1891, 4294901760
        %1893 = vmatpush.msra.mxu0 %v1892
        %v1894 = vand.u32 %v1746, 4294901760
        %v1895 = vsub.f32 %v1746, %v1894
        %v1896 = vand.u32 %v1895, 4294901760
        %v1897 = vsub.f32 %v1895, %v1896
        %v1898 = vand.u32 %v1897, 4294901760
        %1899 = vmatpush.msra.mxu0 %v1898
        %v1900 = vand.u32 %v1745, 4294901760
        %v1901 = vsub.f32 %v1745, %v1900
        %v1902 = vand.u32 %v1901, 4294901760
        %v1903 = vsub.f32 %v1901, %v1902
        %v1904 = vand.u32 %v1903, 4294901760
        %1905 = vmatpush.msra.mxu0 %v1904
        %v1906 = vand.u32 %v680, 4294901760
        %1907 = vmatmul.f32.gmra.mxu0 %v1906
        %v1908 = vpop.f32.mrf.mxu0
        %v1909 = vadd.f32 %v1800, %v1908
        %v1910 = vand.u32 %v681, 4294901760
        %1911 = vmatmul.f32.gmra.mxu0 %v1910
        %v1912 = vpop.f32.mrf.mxu0
        %v1913 = vadd.f32 %v1808, %v1912
        %1914 = vdwg.mxu0
        %v1915 = vand.u32 %v1760, 4294901760
        %v1916 = vsub.f32 %v1760, %v1915
        %1917 = vmatpush.msra.mxu0 %v1916
        %v1918 = vand.u32 %v1759, 4294901760
        %v1919 = vsub.f32 %v1759, %v1918
        %1920 = vmatpush.msra.mxu0 %v1919
        %v1921 = vand.u32 %v1758, 4294901760
        %v1922 = vsub.f32 %v1758, %v1921
        %1923 = vmatpush.msra.mxu0 %v1922
        %v1924 = vand.u32 %v1757, 4294901760
        %v1925 = vsub.f32 %v1757, %v1924
        %1926 = vmatpush.msra.mxu0 %v1925
        %v1927 = vand.u32 %v1756, 4294901760
        %v1928 = vsub.f32 %v1756, %v1927
        %1929 = vmatpush.msra.mxu0 %v1928
        %v1930 = vand.u32 %v1755, 4294901760
        %v1931 = vsub.f32 %v1755, %v1930
        %1932 = vmatpush.msra.mxu0 %v1931
        %v1933 = vand.u32 %v1754, 4294901760
        %v1934 = vsub.f32 %v1754, %v1933
        %1935 = vmatpush.msra.mxu0 %v1934
        %v1936 = vand.u32 %v1753, 4294901760
        %v1937 = vsub.f32 %v1753, %v1936
        %1938 = vmatpush.msra.mxu0 %v1937
        %v1939 = vand.u32 %v1752, 4294901760
        %v1940 = vsub.f32 %v1752, %v1939
        %1941 = vmatpush.msra.mxu0 %v1940
        %v1942 = vand.u32 %v1751, 4294901760
        %v1943 = vsub.f32 %v1751, %v1942
        %1944 = vmatpush.msra.mxu0 %v1943
        %v1945 = vand.u32 %v1750, 4294901760
        %v1946 = vsub.f32 %v1750, %v1945
        %1947 = vmatpush.msra.mxu0 %v1946
        %v1948 = vand.u32 %v1749, 4294901760
        %v1949 = vsub.f32 %v1749, %v1948
        %1950 = vmatpush.msra.mxu0 %v1949
        %v1951 = vand.u32 %v1748, 4294901760
        %v1952 = vsub.f32 %v1748, %v1951
        %1953 = vmatpush.msra.mxu0 %v1952
        %v1954 = vand.u32 %v1747, 4294901760
        %v1955 = vsub.f32 %v1747, %v1954
        %1956 = vmatpush.msra.mxu0 %v1955
        %v1957 = vand.u32 %v1746, 4294901760
        %v1958 = vsub.f32 %v1746, %v1957
        %1959 = vmatpush.msra.mxu0 %v1958
        %v1960 = vand.u32 %v1745, 4294901760
        %v1961 = vsub.f32 %v1745, %v1960
        %1962 = vmatpush.msra.mxu0 %v1961
        %v1963 = vand.u32 %v680, 4294901760
        %v1964 = vsub.f32 %v680, %v1963
        %1965 = vmatmul.f32.gmra.mxu0 %v1964
        %v1966 = vpop.f32.mrf.mxu0
        %v1967 = vadd.f32 %v1909, %v1966
        %v1968 = vand.u32 %v681, 4294901760
        %v1969 = vsub.f32 %v681, %v1968
        %1970 = vmatmul.f32.gmra.mxu0 %v1969
        %v1971 = vpop.f32.mrf.mxu0
        %v1972 = vadd.f32 %v1913, %v1971
        %1973 = vdwg.mxu0
        %v1974 = vand.u32 %v1760, 4294901760
        %1975 = vmatpush.msra.mxu0 %v1974
        %v1976 = vand.u32 %v1759, 4294901760
        %1977 = vmatpush.msra.mxu0 %v1976
        %v1978 = vand.u32 %v1758, 4294901760
        %1979 = vmatpush.msra.mxu0 %v1978
        %v1980 = vand.u32 %v1757, 4294901760
        %1981 = vmatpush.msra.mxu0 %v1980
        %v1982 = vand.u32 %v1756, 4294901760
        %1983 = vmatpush.msra.mxu0 %v1982
        %v1984 = vand.u32 %v1755, 4294901760
        %1985 = vmatpush.msra.mxu0 %v1984
        %v1986 = vand.u32 %v1754, 4294901760
        %1987 = vmatpush.msra.mxu0 %v1986
        %v1988 = vand.u32 %v1753, 4294901760
        %1989 = vmatpush.msra.mxu0 %v1988
        %v1990 = vand.u32 %v1752, 4294901760
        %1991 = vmatpush.msra.mxu0 %v1990
        %v1992 = vand.u32 %v1751, 4294901760
        %1993 = vmatpush.msra.mxu0 %v1992
        %v1994 = vand.u32 %v1750, 4294901760
        %1995 = vmatpush.msra.mxu0 %v1994
        %v1996 = vand.u32 %v1749, 4294901760
        %1997 = vmatpush.msra.mxu0 %v1996
        %v1998 = vand.u32 %v1748, 4294901760
        %1999 = vmatpush.msra.mxu0 %v1998
        %v2000 = vand.u32 %v1747, 4294901760
        %2001 = vmatpush.msra.mxu0 %v2000
        %v2002 = vand.u32 %v1746, 4294901760
        %2003 = vmatpush.msra.mxu0 %v2002
        %v2004 = vand.u32 %v1745, 4294901760
        %2005 = vmatpush.msra.mxu0 %v2004
        %v2006 = vand.u32 %v680, 4294901760
        %v2007 = vsub.f32 %v680, %v2006
        %v2008 = vand.u32 %v2007, 4294901760
        %2009 = vmatmul.f32.gmra.mxu0 %v2008
        %v2010 = vpop.f32.mrf.mxu0
        %v2011 = vadd.f32 %v1967, %v2010
        %v2012 = vand.u32 %v681, 4294901760
        %v2013 = vsub.f32 %v681, %v2012
        %v2014 = vand.u32 %v2013, 4294901760
        %2015 = vmatmul.f32.gmra.mxu0 %v2014
        %v2016 = vpop.f32.mrf.mxu0
        %v2017 = vadd.f32 %v1972, %v2016
        %2018 = vdwg.mxu0
        %v2019 = vand.u32 %v1760, 4294901760
        %v2020 = vsub.f32 %v1760, %v2019
        %v2021 = vand.u32 %v2020, 4294901760
        %2022 = vmatpush.msra.mxu0 %v2021
        %v2023 = vand.u32 %v1759, 4294901760
        %v2024 = vsub.f32 %v1759, %v2023
        %v2025 = vand.u32 %v2024, 4294901760
        %2026 = vmatpush.msra.mxu0 %v2025
        %v2027 = vand.u32 %v1758, 4294901760
        %v2028 = vsub.f32 %v1758, %v2027
        %v2029 = vand.u32 %v2028, 4294901760
        %2030 = vmatpush.msra.mxu0 %v2029
        %v2031 = vand.u32 %v1757, 4294901760
        %v2032 = vsub.f32 %v1757, %v2031
        %v2033 = vand.u32 %v2032, 4294901760
        %2034 = vmatpush.msra.mxu0 %v2033
        %v2035 = vand.u32 %v1756, 4294901760
        %v2036 = vsub.f32 %v1756, %v2035
        %v2037 = vand.u32 %v2036, 4294901760
        %2038 = vmatpush.msra.mxu0 %v2037
        %v2039 = vand.u32 %v1755, 4294901760
        %v2040 = vsub.f32 %v1755, %v2039
        %v2041 = vand.u32 %v2040, 4294901760
        %2042 = vmatpush.msra.mxu0 %v2041
        %v2043 = vand.u32 %v1754, 4294901760
        %v2044 = vsub.f32 %v1754, %v2043
        %v2045 = vand.u32 %v2044, 4294901760
        %2046 = vmatpush.msra.mxu0 %v2045
        %v2047 = vand.u32 %v1753, 4294901760
        %v2048 = vsub.f32 %v1753, %v2047
        %v2049 = vand.u32 %v2048, 4294901760
        %2050 = vmatpush.msra.mxu0 %v2049
        %v2051 = vand.u32 %v1752, 4294901760
        %v2052 = vsub.f32 %v1752, %v2051
        %v2053 = vand.u32 %v2052, 4294901760
        %2054 = vmatpush.msra.mxu0 %v2053
        %v2055 = vand.u32 %v1751, 4294901760
        %v2056 = vsub.f32 %v1751, %v2055
        %v2057 = vand.u32 %v2056, 4294901760
        %2058 = vmatpush.msra.mxu0 %v2057
        %v2059 = vand.u32 %v1750, 4294901760
        %v2060 = vsub.f32 %v1750, %v2059
        %v2061 = vand.u32 %v2060, 4294901760
        %2062 = vmatpush.msra.mxu0 %v2061
        %v2063 = vand.u32 %v1749, 4294901760
        %v2064 = vsub.f32 %v1749, %v2063
        %v2065 = vand.u32 %v2064, 4294901760
        %2066 = vmatpush.msra.mxu0 %v2065
        %v2067 = vand.u32 %v1748, 4294901760
        %v2068 = vsub.f32 %v1748, %v2067
        %v2069 = vand.u32 %v2068, 4294901760
        %2070 = vmatpush.msra.mxu0 %v2069
        %v2071 = vand.u32 %v1747, 4294901760
        %v2072 = vsub.f32 %v1747, %v2071
        %v2073 = vand.u32 %v2072, 4294901760
        %2074 = vmatpush.msra.mxu0 %v2073
        %v2075 = vand.u32 %v1746, 4294901760
        %v2076 = vsub.f32 %v1746, %v2075
        %v2077 = vand.u32 %v2076, 4294901760
        %2078 = vmatpush.msra.mxu0 %v2077
        %v2079 = vand.u32 %v1745, 4294901760
        %v2080 = vsub.f32 %v1745, %v2079
        %v2081 = vand.u32 %v2080, 4294901760
        %2082 = vmatpush.msra.mxu0 %v2081
        %v2083 = vand.u32 %v680, 4294901760
        %2084 = vmatmul.f32.gmra.mxu0 %v2083
        %v2085 = vpop.f32.mrf.mxu0
        %v2086 = vadd.f32 %v2011, %v2085
        %v2087 = vand.u32 %v681, 4294901760
        %2088 = vmatmul.f32.gmra.mxu0 %v2087
        %v2089 = vpop.f32.mrf.mxu0
        %v2090 = vadd.f32 %v2017, %v2089
        %2091 = vdwg.mxu0
        %v2092 = vand.u32 %v1760, 4294901760
        %2093 = vmatpush.msra.mxu0 %v2092
        %v2094 = vand.u32 %v1759, 4294901760
        %2095 = vmatpush.msra.mxu0 %v2094
        %v2096 = vand.u32 %v1758, 4294901760
        %2097 = vmatpush.msra.mxu0 %v2096
        %v2098 = vand.u32 %v1757, 4294901760
        %2099 = vmatpush.msra.mxu0 %v2098
        %v2100 = vand.u32 %v1756, 4294901760
        %2101 = vmatpush.msra.mxu0 %v2100
        %v2102 = vand.u32 %v1755, 4294901760
        %2103 = vmatpush.msra.mxu0 %v2102
        %v2104 = vand.u32 %v1754, 4294901760
        %2105 = vmatpush.msra.mxu0 %v2104
        %v2106 = vand.u32 %v1753, 4294901760
        %2107 = vmatpush.msra.mxu0 %v2106
        %v2108 = vand.u32 %v1752, 4294901760
        %2109 = vmatpush.msra.mxu0 %v2108
        %v2110 = vand.u32 %v1751, 4294901760
        %2111 = vmatpush.msra.mxu0 %v2110
        %v2112 = vand.u32 %v1750, 4294901760
        %2113 = vmatpush.msra.mxu0 %v2112
        %v2114 = vand.u32 %v1749, 4294901760
        %2115 = vmatpush.msra.mxu0 %v2114
        %v2116 = vand.u32 %v1748, 4294901760
        %2117 = vmatpush.msra.mxu0 %v2116
        %v2118 = vand.u32 %v1747, 4294901760
        %2119 = vmatpush.msra.mxu0 %v2118
        %v2120 = vand.u32 %v1746, 4294901760
        %2121 = vmatpush.msra.mxu0 %v2120
        %v2122 = vand.u32 %v1745, 4294901760
        %2123 = vmatpush.msra.mxu0 %v2122
        %v2124 = vand.u32 %v680, 4294901760
        %2125 = vmatmul.f32.gmra.mxu0 %v2124
        %v2126 = vpop.f32.mrf.mxu0
        %v2127 = vadd.f32 %v2086, %v2126
        %v2128 = vand.u32 %v681, 4294901760
        %2129 = vmatmul.f32.gmra.mxu0 %v2128
        %v2130 = vpop.f32.mrf.mxu0
        %v2131 = vadd.f32 %v2090, %v2130
        %2132 = vdwg.mxu0
        %v2133 = vand.u32 %v1744, 4294901760
        %2134 = vmatpush.msra.mxu0 %v2133
        %v2135 = vand.u32 %v1743, 4294901760
        %2136 = vmatpush.msra.mxu0 %v2135
        %v2137 = vand.u32 %v1742, 4294901760
        %2138 = vmatpush.msra.mxu0 %v2137
        %v2139 = vand.u32 %v1741, 4294901760
        %2140 = vmatpush.msra.mxu0 %v2139
        %v2141 = vand.u32 %v1740, 4294901760
        %2142 = vmatpush.msra.mxu0 %v2141
        %v2143 = vand.u32 %v1739, 4294901760
        %2144 = vmatpush.msra.mxu0 %v2143
        %v2145 = vand.u32 %v1738, 4294901760
        %2146 = vmatpush.msra.mxu0 %v2145
        %v2147 = vand.u32 %v1737, 4294901760
        %2148 = vmatpush.msra.mxu0 %v2147
        %v2149 = vand.u32 %v1736, 4294901760
        %2150 = vmatpush.msra.mxu0 %v2149
        %v2151 = vand.u32 %v1735, 4294901760
        %2152 = vmatpush.msra.mxu0 %v2151
        %v2153 = vand.u32 %v1734, 4294901760
        %2154 = vmatpush.msra.mxu0 %v2153
        %v2155 = vand.u32 %v1733, 4294901760
        %2156 = vmatpush.msra.mxu0 %v2155
        %v2157 = vand.u32 %v1732, 4294901760
        %2158 = vmatpush.msra.mxu0 %v2157
        %v2159 = vand.u32 %v1731, 4294901760
        %2160 = vmatpush.msra.mxu0 %v2159
        %v2161 = vand.u32 %v1730, 4294901760
        %2162 = vmatpush.msra.mxu0 %v2161
        %v2163 = vand.u32 %v1729, 4294901760
        %2164 = vmatpush.msra.mxu0 %v2163
        %v2165 = vand.u32 %v1727, 4294901760
        %v2166 = vsub.f32 %v1727, %v2165
        %v2167 = vand.u32 %v2166, 4294901760
        %v2168 = vsub.f32 %v2166, %v2167
        %v2169 = vand.u32 %v2168, 4294901760
        %2170 = vmatmul.f32.gmra.mxu0 %v2169
        %v2171 = vpop.f32.mrf.mxu0
        %v2172 = vadd.f32 %v2127, %v2171
        %v2173 = vand.u32 %v1728, 4294901760
        %v2174 = vsub.f32 %v1728, %v2173
        %v2175 = vand.u32 %v2174, 4294901760
        %v2176 = vsub.f32 %v2174, %v2175
        %v2177 = vand.u32 %v2176, 4294901760
        %2178 = vmatmul.f32.gmra.mxu0 %v2177
        %v2179 = vpop.f32.mrf.mxu0
        %v2180 = vadd.f32 %v2131, %v2179
        %2181 = vdwg.mxu0
        %v2182 = vand.u32 %v1744, 4294901760
        %v2183 = vsub.f32 %v1744, %v2182
        %v2184 = vand.u32 %v2183, 4294901760
        %v2185 = vsub.f32 %v2183, %v2184
        %v2186 = vand.u32 %v2185, 4294901760
        %2187 = vmatpush.msra.mxu0 %v2186
        %v2188 = vand.u32 %v1743, 4294901760
        %v2189 = vsub.f32 %v1743, %v2188
        %v2190 = vand.u32 %v2189, 4294901760
        %v2191 = vsub.f32 %v2189, %v2190
        %v2192 = vand.u32 %v2191, 4294901760
        %2193 = vmatpush.msra.mxu0 %v2192
        %v2194 = vand.u32 %v1742, 4294901760
        %v2195 = vsub.f32 %v1742, %v2194
        %v2196 = vand.u32 %v2195, 4294901760
        %v2197 = vsub.f32 %v2195, %v2196
        %v2198 = vand.u32 %v2197, 4294901760
        %2199 = vmatpush.msra.mxu0 %v2198
        %v2200 = vand.u32 %v1741, 4294901760
        %v2201 = vsub.f32 %v1741, %v2200
        %v2202 = vand.u32 %v2201, 4294901760
        %v2203 = vsub.f32 %v2201, %v2202
        %v2204 = vand.u32 %v2203, 4294901760
        %2205 = vmatpush.msra.mxu0 %v2204
        %v2206 = vand.u32 %v1740, 4294901760
        %v2207 = vsub.f32 %v1740, %v2206
        %v2208 = vand.u32 %v2207, 4294901760
        %v2209 = vsub.f32 %v2207, %v2208
        %v2210 = vand.u32 %v2209, 4294901760
        %2211 = vmatpush.msra.mxu0 %v2210
        %v2212 = vand.u32 %v1739, 4294901760
        %v2213 = vsub.f32 %v1739, %v2212
        %v2214 = vand.u32 %v2213, 4294901760
        %v2215 = vsub.f32 %v2213, %v2214
        %v2216 = vand.u32 %v2215, 4294901760
        %2217 = vmatpush.msra.mxu0 %v2216
        %v2218 = vand.u32 %v1738, 4294901760
        %v2219 = vsub.f32 %v1738, %v2218
        %v2220 = vand.u32 %v2219, 4294901760
        %v2221 = vsub.f32 %v2219, %v2220
        %v2222 = vand.u32 %v2221, 4294901760
        %2223 = vmatpush.msra.mxu0 %v2222
        %v2224 = vand.u32 %v1737, 4294901760
        %v2225 = vsub.f32 %v1737, %v2224
        %v2226 = vand.u32 %v2225, 4294901760
        %v2227 = vsub.f32 %v2225, %v2226
        %v2228 = vand.u32 %v2227, 4294901760
        %2229 = vmatpush.msra.mxu0 %v2228
        %v2230 = vand.u32 %v1736, 4294901760
        %v2231 = vsub.f32 %v1736, %v2230
        %v2232 = vand.u32 %v2231, 4294901760
        %v2233 = vsub.f32 %v2231, %v2232
        %v2234 = vand.u32 %v2233, 4294901760
        %2235 = vmatpush.msra.mxu0 %v2234
        %v2236 = vand.u32 %v1735, 4294901760
        %v2237 = vsub.f32 %v1735, %v2236
        %v2238 = vand.u32 %v2237, 4294901760
        %v2239 = vsub.f32 %v2237, %v2238
        %v2240 = vand.u32 %v2239, 4294901760
        %2241 = vmatpush.msra.mxu0 %v2240
        %v2242 = vand.u32 %v1734, 4294901760
        %v2243 = vsub.f32 %v1734, %v2242
        %v2244 = vand.u32 %v2243, 4294901760
        %v2245 = vsub.f32 %v2243, %v2244
        %v2246 = vand.u32 %v2245, 4294901760
        %2247 = vmatpush.msra.mxu0 %v2246
        %v2248 = vand.u32 %v1733, 4294901760
        %v2249 = vsub.f32 %v1733, %v2248
        %v2250 = vand.u32 %v2249, 4294901760
        %v2251 = vsub.f32 %v2249, %v2250
        %v2252 = vand.u32 %v2251, 4294901760
        %2253 = vmatpush.msra.mxu0 %v2252
        %v2254 = vand.u32 %v1732, 4294901760
        %v2255 = vsub.f32 %v1732, %v2254
        %v2256 = vand.u32 %v2255, 4294901760
        %v2257 = vsub.f32 %v2255, %v2256
        %v2258 = vand.u32 %v2257, 4294901760
        %2259 = vmatpush.msra.mxu0 %v2258
        %v2260 = vand.u32 %v1731, 4294901760
        %v2261 = vsub.f32 %v1731, %v2260
        %v2262 = vand.u32 %v2261, 4294901760
        %v2263 = vsub.f32 %v2261, %v2262
        %v2264 = vand.u32 %v2263, 4294901760
        %2265 = vmatpush.msra.mxu0 %v2264
        %v2266 = vand.u32 %v1730, 4294901760
        %v2267 = vsub.f32 %v1730, %v2266
        %v2268 = vand.u32 %v2267, 4294901760
        %v2269 = vsub.f32 %v2267, %v2268
        %v2270 = vand.u32 %v2269, 4294901760
        %2271 = vmatpush.msra.mxu0 %v2270
        %v2272 = vand.u32 %v1729, 4294901760
        %v2273 = vsub.f32 %v1729, %v2272
        %v2274 = vand.u32 %v2273, 4294901760
        %v2275 = vsub.f32 %v2273, %v2274
        %v2276 = vand.u32 %v2275, 4294901760
        %2277 = vmatpush.msra.mxu0 %v2276
        %v2278 = vand.u32 %v1727, 4294901760
        %2279 = vmatmul.f32.gmra.mxu0 %v2278
        %v2280 = vpop.f32.mrf.mxu0
        %v2281 = vadd.f32 %v2172, %v2280
        %v2282 = vand.u32 %v1728, 4294901760
        %2283 = vmatmul.f32.gmra.mxu0 %v2282
        %v2284 = vpop.f32.mrf.mxu0
        %v2285 = vadd.f32 %v2180, %v2284
        %2286 = vdwg.mxu0
        %v2287 = vand.u32 %v1744, 4294901760
        %v2288 = vsub.f32 %v1744, %v2287
        %2289 = vmatpush.msra.mxu0 %v2288
        %v2290 = vand.u32 %v1743, 4294901760
        %v2291 = vsub.f32 %v1743, %v2290
        %2292 = vmatpush.msra.mxu0 %v2291
        %v2293 = vand.u32 %v1742, 4294901760
        %v2294 = vsub.f32 %v1742, %v2293
        %2295 = vmatpush.msra.mxu0 %v2294
        %v2296 = vand.u32 %v1741, 4294901760
        %v2297 = vsub.f32 %v1741, %v2296
        %2298 = vmatpush.msra.mxu0 %v2297
        %v2299 = vand.u32 %v1740, 4294901760
        %v2300 = vsub.f32 %v1740, %v2299
        %2301 = vmatpush.msra.mxu0 %v2300
        %v2302 = vand.u32 %v1739, 4294901760
        %v2303 = vsub.f32 %v1739, %v2302
        %2304 = vmatpush.msra.mxu0 %v2303
        %v2305 = vand.u32 %v1738, 4294901760
        %v2306 = vsub.f32 %v1738, %v2305
        %2307 = vmatpush.msra.mxu0 %v2306
        %v2308 = vand.u32 %v1737, 4294901760
        %v2309 = vsub.f32 %v1737, %v2308
        %2310 = vmatpush.msra.mxu0 %v2309
        %v2311 = vand.u32 %v1736, 4294901760
        %v2312 = vsub.f32 %v1736, %v2311
        %2313 = vmatpush.msra.mxu0 %v2312
        %v2314 = vand.u32 %v1735, 4294901760
        %v2315 = vsub.f32 %v1735, %v2314
        %2316 = vmatpush.msra.mxu0 %v2315
        %v2317 = vand.u32 %v1734, 4294901760
        %v2318 = vsub.f32 %v1734, %v2317
        %2319 = vmatpush.msra.mxu0 %v2318
        %v2320 = vand.u32 %v1733, 4294901760
        %v2321 = vsub.f32 %v1733, %v2320
        %2322 = vmatpush.msra.mxu0 %v2321
        %v2323 = vand.u32 %v1732, 4294901760
        %v2324 = vsub.f32 %v1732, %v2323
        %2325 = vmatpush.msra.mxu0 %v2324
        %v2326 = vand.u32 %v1731, 4294901760
        %v2327 = vsub.f32 %v1731, %v2326
        %2328 = vmatpush.msra.mxu0 %v2327
        %v2329 = vand.u32 %v1730, 4294901760
        %v2330 = vsub.f32 %v1730, %v2329
        %2331 = vmatpush.msra.mxu0 %v2330
        %v2332 = vand.u32 %v1729, 4294901760
        %v2333 = vsub.f32 %v1729, %v2332
        %2334 = vmatpush.msra.mxu0 %v2333
        %v2335 = vand.u32 %v1727, 4294901760
        %v2336 = vsub.f32 %v1727, %v2335
        %2337 = vmatmul.f32.gmra.mxu0 %v2336
        %v2338 = vpop.f32.mrf.mxu0
        %v2339 = vadd.f32 %v2281, %v2338
        %v2340 = vand.u32 %v1728, 4294901760
        %v2341 = vsub.f32 %v1728, %v2340
        %2342 = vmatmul.f32.gmra.mxu0 %v2341
        %v2343 = vpop.f32.mrf.mxu0
        %v2344 = vadd.f32 %v2285, %v2343
        %2345 = vdwg.mxu0
        %v2346 = vand.u32 %v1744, 4294901760
        %2347 = vmatpush.msra.mxu0 %v2346
        %v2348 = vand.u32 %v1743, 4294901760
        %2349 = vmatpush.msra.mxu0 %v2348
        %v2350 = vand.u32 %v1742, 4294901760
        %2351 = vmatpush.msra.mxu0 %v2350
        %v2352 = vand.u32 %v1741, 4294901760
        %2353 = vmatpush.msra.mxu0 %v2352
        %v2354 = vand.u32 %v1740, 4294901760
        %2355 = vmatpush.msra.mxu0 %v2354
        %v2356 = vand.u32 %v1739, 4294901760
        %2357 = vmatpush.msra.mxu0 %v2356
        %v2358 = vand.u32 %v1738, 4294901760
        %2359 = vmatpush.msra.mxu0 %v2358
        %v2360 = vand.u32 %v1737, 4294901760
        %2361 = vmatpush.msra.mxu0 %v2360
        %v2362 = vand.u32 %v1736, 4294901760
        %2363 = vmatpush.msra.mxu0 %v2362
        %v2364 = vand.u32 %v1735, 4294901760
        %2365 = vmatpush.msra.mxu0 %v2364
        %v2366 = vand.u32 %v1734, 4294901760
        %2367 = vmatpush.msra.mxu0 %v2366
        %v2368 = vand.u32 %v1733, 4294901760
        %2369 = vmatpush.msra.mxu0 %v2368
        %v2370 = vand.u32 %v1732, 4294901760
        %2371 = vmatpush.msra.mxu0 %v2370
        %v2372 = vand.u32 %v1731, 4294901760
        %2373 = vmatpush.msra.mxu0 %v2372
        %v2374 = vand.u32 %v1730, 4294901760
        %2375 = vmatpush.msra.mxu0 %v2374
        %v2376 = vand.u32 %v1729, 4294901760
        %2377 = vmatpush.msra.mxu0 %v2376
        %v2378 = vand.u32 %v1727, 4294901760
        %v2379 = vsub.f32 %v1727, %v2378
        %v2380 = vand.u32 %v2379, 4294901760
        %2381 = vmatmul.f32.gmra.mxu0 %v2380
        %v2382 = vpop.f32.mrf.mxu0
        %v2383 = vadd.f32 %v2339, %v2382
        %v2384 = vand.u32 %v1728, 4294901760
        %v2385 = vsub.f32 %v1728, %v2384
        %v2386 = vand.u32 %v2385, 4294901760
        %2387 = vmatmul.f32.gmra.mxu0 %v2386
        %v2388 = vpop.f32.mrf.mxu0
        %v2389 = vadd.f32 %v2344, %v2388
        %2390 = vdwg.mxu0
        %v2391 = vand.u32 %v1744, 4294901760
        %v2392 = vsub.f32 %v1744, %v2391
        %v2393 = vand.u32 %v2392, 4294901760
        %2394 = vmatpush.msra.mxu0 %v2393
        %v2395 = vand.u32 %v1743, 4294901760
        %v2396 = vsub.f32 %v1743, %v2395
        %v2397 = vand.u32 %v2396, 4294901760
        %2398 = vmatpush.msra.mxu0 %v2397
        %v2399 = vand.u32 %v1742, 4294901760
        %v2400 = vsub.f32 %v1742, %v2399
        %v2401 = vand.u32 %v2400, 4294901760
        %2402 = vmatpush.msra.mxu0 %v2401
        %v2403 = vand.u32 %v1741, 4294901760
        %v2404 = vsub.f32 %v1741, %v2403
        %v2405 = vand.u32 %v2404, 4294901760
        %2406 = vmatpush.msra.mxu0 %v2405
        %v2407 = vand.u32 %v1740, 4294901760
        %v2408 = vsub.f32 %v1740, %v2407
        %v2409 = vand.u32 %v2408, 4294901760
        %2410 = vmatpush.msra.mxu0 %v2409
        %v2411 = vand.u32 %v1739, 4294901760
        %v2412 = vsub.f32 %v1739, %v2411
        %v2413 = vand.u32 %v2412, 4294901760
        %2414 = vmatpush.msra.mxu0 %v2413
        %v2415 = vand.u32 %v1738, 4294901760
        %v2416 = vsub.f32 %v1738, %v2415
        %v2417 = vand.u32 %v2416, 4294901760
        %2418 = vmatpush.msra.mxu0 %v2417
        %v2419 = vand.u32 %v1737, 4294901760
        %v2420 = vsub.f32 %v1737, %v2419
        %v2421 = vand.u32 %v2420, 4294901760
        %2422 = vmatpush.msra.mxu0 %v2421
        %v2423 = vand.u32 %v1736, 4294901760
        %v2424 = vsub.f32 %v1736, %v2423
        %v2425 = vand.u32 %v2424, 4294901760
        %2426 = vmatpush.msra.mxu0 %v2425
        %v2427 = vand.u32 %v1735, 4294901760
        %v2428 = vsub.f32 %v1735, %v2427
        %v2429 = vand.u32 %v2428, 4294901760
        %2430 = vmatpush.msra.mxu0 %v2429
        %v2431 = vand.u32 %v1734, 4294901760
        %v2432 = vsub.f32 %v1734, %v2431
        %v2433 = vand.u32 %v2432, 4294901760
        %2434 = vmatpush.msra.mxu0 %v2433
        %v2435 = vand.u32 %v1733, 4294901760
        %v2436 = vsub.f32 %v1733, %v2435
        %v2437 = vand.u32 %v2436, 4294901760
        %2438 = vmatpush.msra.mxu0 %v2437
        %v2439 = vand.u32 %v1732, 4294901760
        %v2440 = vsub.f32 %v1732, %v2439
        %v2441 = vand.u32 %v2440, 4294901760
        %2442 = vmatpush.msra.mxu0 %v2441
        %v2443 = vand.u32 %v1731, 4294901760
        %v2444 = vsub.f32 %v1731, %v2443
        %v2445 = vand.u32 %v2444, 4294901760
        %2446 = vmatpush.msra.mxu0 %v2445
        %v2447 = vand.u32 %v1730, 4294901760
        %v2448 = vsub.f32 %v1730, %v2447
        %v2449 = vand.u32 %v2448, 4294901760
        %2450 = vmatpush.msra.mxu0 %v2449
        %v2451 = vand.u32 %v1729, 4294901760
        %v2452 = vsub.f32 %v1729, %v2451
        %v2453 = vand.u32 %v2452, 4294901760
        %2454 = vmatpush.msra.mxu0 %v2453
        %v2455 = vand.u32 %v1727, 4294901760
        %2456 = vmatmul.f32.gmra.mxu0 %v2455
        %v2457 = vpop.f32.mrf.mxu0
        %v2458 = vadd.f32 %v2383, %v2457
        %v2459 = vand.u32 %v1728, 4294901760
        %2460 = vmatmul.f32.gmra.mxu0 %v2459
        %v2461 = vpop.f32.mrf.mxu0
        %v2462 = vadd.f32 %v2389, %v2461
        %2463 = vdwg.mxu0
        %v2464 = vand.u32 %v1744, 4294901760
        %2465 = vmatpush.msra.mxu0 %v2464
        %v2466 = vand.u32 %v1743, 4294901760
        %2467 = vmatpush.msra.mxu0 %v2466
        %v2468 = vand.u32 %v1742, 4294901760
        %2469 = vmatpush.msra.mxu0 %v2468
        %v2470 = vand.u32 %v1741, 4294901760
        %2471 = vmatpush.msra.mxu0 %v2470
        %v2472 = vand.u32 %v1740, 4294901760
        %2473 = vmatpush.msra.mxu0 %v2472
        %v2474 = vand.u32 %v1739, 4294901760
        %2475 = vmatpush.msra.mxu0 %v2474
        %v2476 = vand.u32 %v1738, 4294901760
        %2477 = vmatpush.msra.mxu0 %v2476
        %v2478 = vand.u32 %v1737, 4294901760
        %2479 = vmatpush.msra.mxu0 %v2478
        %v2480 = vand.u32 %v1736, 4294901760
        %2481 = vmatpush.msra.mxu0 %v2480
        %v2482 = vand.u32 %v1735, 4294901760
        %2483 = vmatpush.msra.mxu0 %v2482
        %v2484 = vand.u32 %v1734, 4294901760
        %2485 = vmatpush.msra.mxu0 %v2484
        %v2486 = vand.u32 %v1733, 4294901760
        %2487 = vmatpush.msra.mxu0 %v2486
        %v2488 = vand.u32 %v1732, 4294901760
        %2489 = vmatpush.msra.mxu0 %v2488
        %v2490 = vand.u32 %v1731, 4294901760
        %2491 = vmatpush.msra.mxu0 %v2490
        %v2492 = vand.u32 %v1730, 4294901760
        %2493 = vmatpush.msra.mxu0 %v2492
        %v2494 = vand.u32 %v1729, 4294901760
        %2495 = vmatpush.msra.mxu0 %v2494
        %v2496 = vand.u32 %v1727, 4294901760
        %2497 = vmatmul.f32.gmra.mxu0 %v2496
        %v2498 = vpop.f32.mrf.mxu0
        %v2499 = vadd.f32 %v2458, %v2498
        %v2500 = vand.u32 %v1728, 4294901760
        %2501 = vmatmul.f32.gmra.mxu0 %v2500
        %v2502 = vpop.f32.mrf.mxu0
        %v2503 = vadd.f32 %v2462, %v2502
        %2504 = vdwg.mxu0
        %v2505 = vld [vmem:[%s615] sm:$0x1]
        %v2507 = vperm.slane %v2505, 0
        %v2509 = vadd.f32 %v2499, %v2507
        %v2510 = vadd.f32 %v2503, %v2507
        %2511 = vst [vmem:[#allocation2] sm:$0xff] %v2509
        %2512 = vst [vmem:[#allocation2 + $0x8] sm:$0xff] %v2510
        %p2513 = scmp.eq.s32.totalorder %s32, 1
        // Predicated region
        $region93: #{noglass_apply.1} parent=75 // pred_check
          %p2514 = pneg %p2513
        $region94: #{noglass_apply.1} parent=75 // pred_check_branch
          %2516 = sbr.rel (%p2514) target = $region96
        $region95: #{noglass_apply.1} parent=75 // pred_region
          %v2517 = vld [vmem:[%s11] sm:$0xff]
          %v2519 = vsel %vm1476, %v2517, 0
          %2521 = vmatpush.msra.mxu0 0.0
          %2522 = vmatpush.msra.mxu0 0.0
          %2523 = vmatpush.msra.mxu0 0.0
          %2524 = vmatpush.msra.mxu0 0.0
          %2525 = vmatpush.msra.mxu0 0.0
          %2526 = vmatpush.msra.mxu0 0.0
          %2527 = vmatpush.msra.mxu0 0.0
          %2528 = vmatpush.msra.mxu0 0.0
          %2529 = vmatpush.msra.mxu0 0.0
          %2530 = vmatpush.msra.mxu0 0.0
          %2531 = vmatpush.msra.mxu0 0.0
          %2532 = vmatpush.msra.mxu0 0.0
          %2533 = vmatpush.msra.mxu0 0.0
          %2534 = vmatpush.msra.mxu0 0.0
          %v2535 = vand.u32 %v2510, 4294901760
          %2536 = vmatpush.msra.mxu0 %v2535
          %v2537 = vand.u32 %v2509, 4294901760
          %2538 = vmatpush.msra.mxu0 %v2537
          %v2539 = vand.u32 %v2519, 4294901760
          %v2540 = vsub.f32 %v2519, %v2539
          %v2541 = vand.u32 %v2540, 4294901760
          %v2542 = vsub.f32 %v2540, %v2541
          %v2543 = vand.u32 %v2542, 4294901760
          %2544 = vmatmul.f32.gmra.mxu0 %v2543
          %v2545 = vpop.f32.mrf.mxu0
          %v2546 = vadd.f32 0.0, %v2545
          %2547 = vdwg.mxu0
          %2548 = vmatpush.msra.mxu0 0.0
          %2549 = vmatpush.msra.mxu0 0.0
          %2550 = vmatpush.msra.mxu0 0.0
          %2551 = vmatpush.msra.mxu0 0.0
          %2552 = vmatpush.msra.mxu0 0.0
          %2553 = vmatpush.msra.mxu0 0.0
          %2554 = vmatpush.msra.mxu0 0.0
          %2555 = vmatpush.msra.mxu0 0.0
          %2556 = vmatpush.msra.mxu0 0.0
          %2557 = vmatpush.msra.mxu0 0.0
          %2558 = vmatpush.msra.mxu0 0.0
          %2559 = vmatpush.msra.mxu0 0.0
          %2560 = vmatpush.msra.mxu0 0.0
          %2561 = vmatpush.msra.mxu0 0.0
          %v2562 = vand.u32 %v2510, 4294901760
          %v2563 = vsub.f32 %v2510, %v2562
          %v2564 = vand.u32 %v2563, 4294901760
          %v2565 = vsub.f32 %v2563, %v2564
          %v2566 = vand.u32 %v2565, 4294901760
          %2567 = vmatpush.msra.mxu0 %v2566
          %v2568 = vand.u32 %v2509, 4294901760
          %v2569 = vsub.f32 %v2509, %v2568
          %v2570 = vand.u32 %v2569, 4294901760
          %v2571 = vsub.f32 %v2569, %v2570
          %v2572 = vand.u32 %v2571, 4294901760
          %2573 = vmatpush.msra.mxu0 %v2572
          %v2574 = vand.u32 %v2519, 4294901760
          %2575 = vmatmul.f32.gmra.mxu0 %v2574
          %v2576 = vpop.f32.mrf.mxu0
          %v2577 = vadd.f32 %v2546, %v2576
          %2578 = vdwg.mxu0
          %2579 = vmatpush.msra.mxu0 0.0
          %2580 = vmatpush.msra.mxu0 0.0
          %2581 = vmatpush.msra.mxu0 0.0
          %2582 = vmatpush.msra.mxu0 0.0
          %2583 = vmatpush.msra.mxu0 0.0
          %2584 = vmatpush.msra.mxu0 0.0
          %2585 = vmatpush.msra.mxu0 0.0
          %2586 = vmatpush.msra.mxu0 0.0
          %2587 = vmatpush.msra.mxu0 0.0
          %2588 = vmatpush.msra.mxu0 0.0
          %2589 = vmatpush.msra.mxu0 0.0
          %2590 = vmatpush.msra.mxu0 0.0
          %2591 = vmatpush.msra.mxu0 0.0
          %2592 = vmatpush.msra.mxu0 0.0
          %v2593 = vand.u32 %v2510, 4294901760
          %v2594 = vsub.f32 %v2510, %v2593
          %2595 = vmatpush.msra.mxu0 %v2594
          %v2596 = vand.u32 %v2509, 4294901760
          %v2597 = vsub.f32 %v2509, %v2596
          %2598 = vmatpush.msra.mxu0 %v2597
          %v2599 = vand.u32 %v2519, 4294901760
          %v2600 = vsub.f32 %v2519, %v2599
          %2601 = vmatmul.f32.gmra.mxu0 %v2600
          %v2602 = vpop.f32.mrf.mxu0
          %v2603 = vadd.f32 %v2577, %v2602
          %2604 = vdwg.mxu0
          %2605 = vmatpush.msra.mxu0 0.0
          %2606 = vmatpush.msra.mxu0 0.0
          %2607 = vmatpush.msra.mxu0 0.0
          %2608 = vmatpush.msra.mxu0 0.0
          %2609 = vmatpush.msra.mxu0 0.0
          %2610 = vmatpush.msra.mxu0 0.0
          %2611 = vmatpush.msra.mxu0 0.0
          %2612 = vmatpush.msra.mxu0 0.0
          %2613 = vmatpush.msra.mxu0 0.0
          %2614 = vmatpush.msra.mxu0 0.0
          %2615 = vmatpush.msra.mxu0 0.0
          %2616 = vmatpush.msra.mxu0 0.0
          %2617 = vmatpush.msra.mxu0 0.0
          %2618 = vmatpush.msra.mxu0 0.0
          %v2619 = vand.u32 %v2510, 4294901760
          %2620 = vmatpush.msra.mxu0 %v2619
          %v2621 = vand.u32 %v2509, 4294901760
          %2622 = vmatpush.msra.mxu0 %v2621
          %v2623 = vand.u32 %v2519, 4294901760
          %v2624 = vsub.f32 %v2519, %v2623
          %v2625 = vand.u32 %v2624, 4294901760
          %2626 = vmatmul.f32.gmra.mxu0 %v2625
          %v2627 = vpop.f32.mrf.mxu0
          %v2628 = vadd.f32 %v2603, %v2627
          %2629 = vdwg.mxu0
          %2630 = vmatpush.msra.mxu0 0.0
          %2631 = vmatpush.msra.mxu0 0.0
          %2632 = vmatpush.msra.mxu0 0.0
          %2633 = vmatpush.msra.mxu0 0.0
          %2634 = vmatpush.msra.mxu0 0.0
          %2635 = vmatpush.msra.mxu0 0.0
          %2636 = vmatpush.msra.mxu0 0.0
          %2637 = vmatpush.msra.mxu0 0.0
          %2638 = vmatpush.msra.mxu0 0.0
          %2639 = vmatpush.msra.mxu0 0.0
          %2640 = vmatpush.msra.mxu0 0.0
          %2641 = vmatpush.msra.mxu0 0.0
          %2642 = vmatpush.msra.mxu0 0.0
          %2643 = vmatpush.msra.mxu0 0.0
          %v2644 = vand.u32 %v2510, 4294901760
          %v2645 = vsub.f32 %v2510, %v2644
          %v2646 = vand.u32 %v2645, 4294901760
          %2647 = vmatpush.msra.mxu0 %v2646
          %v2648 = vand.u32 %v2509, 4294901760
          %v2649 = vsub.f32 %v2509, %v2648
          %v2650 = vand.u32 %v2649, 4294901760
          %2651 = vmatpush.msra.mxu0 %v2650
          %v2652 = vand.u32 %v2519, 4294901760
          %2653 = vmatmul.f32.gmra.mxu0 %v2652
          %v2654 = vpop.f32.mrf.mxu0
          %v2655 = vadd.f32 %v2628, %v2654
          %2656 = vdwg.mxu0
          %2657 = vmatpush.msra.mxu0 0.0
          %2658 = vmatpush.msra.mxu0 0.0
          %2659 = vmatpush.msra.mxu0 0.0
          %2660 = vmatpush.msra.mxu0 0.0
          %2661 = vmatpush.msra.mxu0 0.0
          %2662 = vmatpush.msra.mxu0 0.0
          %2663 = vmatpush.msra.mxu0 0.0
          %2664 = vmatpush.msra.mxu0 0.0
          %2665 = vmatpush.msra.mxu0 0.0
          %2666 = vmatpush.msra.mxu0 0.0
          %2667 = vmatpush.msra.mxu0 0.0
          %2668 = vmatpush.msra.mxu0 0.0
          %2669 = vmatpush.msra.mxu0 0.0
          %2670 = vmatpush.msra.mxu0 0.0
          %v2671 = vand.u32 %v2510, 4294901760
          %2672 = vmatpush.msra.mxu0 %v2671
          %v2673 = vand.u32 %v2509, 4294901760
          %2674 = vmatpush.msra.mxu0 %v2673
          %v2675 = vand.u32 %v2519, 4294901760
          %2676 = vmatmul.f32.gmra.mxu0 %v2675
          %v2677 = vpop.f32.mrf.mxu0
          %v2678 = vadd.f32 %v2655, %v2677
          %2679 = vdwg.mxu0
          %v2680 = vld [vmem:[%s12] sm:$0xff]
          %v2681 = vld [vmem:[%s12 + $0x8] sm:$0xff]
          %v2682 = vld [vmem:[%s12 + $0x10] sm:$0xff]
          %v2683 = vld [vmem:[%s12 + $0x18] sm:$0xff]
          %v2684 = vld [vmem:[%s12 + $0x20] sm:$0xff]
          %v2685 = vld [vmem:[%s12 + $0x28] sm:$0xff]
          %v2686 = vld [vmem:[%s12 + $0x30] sm:$0xff]
          %v2687 = vld [vmem:[%s12 + $0x38] sm:$0xff]
          %v2688 = vld [vmem:[%s12 + $0x40] sm:$0xff]
          %v2689 = vld [vmem:[%s12 + $0x48] sm:$0xff]
          %v2690 = vld [vmem:[%s12 + $0x50] sm:$0xff]
          %v2691 = vld [vmem:[%s12 + $0x58] sm:$0xff]
          %v2692 = vld [vmem:[%s12 + $0x60] sm:$0xff]
          %v2693 = vld [vmem:[%s12 + $0x68] sm:$0xff]
          %v2694 = vld [vmem:[%s12 + $0x70] sm:$0xff]
          %v2695 = vld [vmem:[%s12 + $0x78] sm:$0xff]
          %v2696 = vld [vmem:[%s13] sm:$0x1]
          %v2698 = vperm.slane %v2696, 0
          %v2700 = vand.u32 %v2695, 4294901760
          %2701 = vmatpush.msra.mxu0 %v2700
          %v2702 = vand.u32 %v2694, 4294901760
          %2703 = vmatpush.msra.mxu0 %v2702
          %v2704 = vand.u32 %v2693, 4294901760
          %2705 = vmatpush.msra.mxu0 %v2704
          %v2706 = vand.u32 %v2692, 4294901760
          %2707 = vmatpush.msra.mxu0 %v2706
          %v2708 = vand.u32 %v2691, 4294901760
          %2709 = vmatpush.msra.mxu0 %v2708
          %v2710 = vand.u32 %v2690, 4294901760
          %2711 = vmatpush.msra.mxu0 %v2710
          %v2712 = vand.u32 %v2689, 4294901760
          %2713 = vmatpush.msra.mxu0 %v2712
          %v2714 = vand.u32 %v2688, 4294901760
          %2715 = vmatpush.msra.mxu0 %v2714
          %v2716 = vand.u32 %v2687, 4294901760
          %2717 = vmatpush.msra.mxu0 %v2716
          %v2718 = vand.u32 %v2686, 4294901760
          %2719 = vmatpush.msra.mxu0 %v2718
          %v2720 = vand.u32 %v2685, 4294901760
          %2721 = vmatpush.msra.mxu0 %v2720
          %v2722 = vand.u32 %v2684, 4294901760
          %2723 = vmatpush.msra.mxu0 %v2722
          %v2724 = vand.u32 %v2683, 4294901760
          %2725 = vmatpush.msra.mxu0 %v2724
          %v2726 = vand.u32 %v2682, 4294901760
          %2727 = vmatpush.msra.mxu0 %v2726
          %v2728 = vand.u32 %v2681, 4294901760
          %2729 = vmatpush.msra.mxu0 %v2728
          %v2730 = vand.u32 %v2680, 4294901760
          %2731 = vmatpush.msra.mxu0 %v2730
          %v2732 = vand.u32 %v2678, 4294901760
          %v2733 = vsub.f32 %v2678, %v2732
          %v2734 = vand.u32 %v2733, 4294901760
          %v2735 = vsub.f32 %v2733, %v2734
          %v2736 = vand.u32 %v2735, 4294901760
          %2737 = vmatmul.f32.gmra.mxu0 %v2736
          %v2738 = vpop.f32.mrf.mxu0
          %v2739 = vadd.f32 %v2698, %v2738
          %2740 = vdwg.mxu0
          %v2741 = vand.u32 %v2695, 4294901760
          %v2742 = vsub.f32 %v2695, %v2741
          %v2743 = vand.u32 %v2742, 4294901760
          %v2744 = vsub.f32 %v2742, %v2743
          %v2745 = vand.u32 %v2744, 4294901760
          %2746 = vmatpush.msra.mxu0 %v2745
          %v2747 = vand.u32 %v2694, 4294901760
          %v2748 = vsub.f32 %v2694, %v2747
          %v2749 = vand.u32 %v2748, 4294901760
          %v2750 = vsub.f32 %v2748, %v2749
          %v2751 = vand.u32 %v2750, 4294901760
          %2752 = vmatpush.msra.mxu0 %v2751
          %v2753 = vand.u32 %v2693, 4294901760
          %v2754 = vsub.f32 %v2693, %v2753
          %v2755 = vand.u32 %v2754, 4294901760
          %v2756 = vsub.f32 %v2754, %v2755
          %v2757 = vand.u32 %v2756, 4294901760
          %2758 = vmatpush.msra.mxu0 %v2757
          %v2759 = vand.u32 %v2692, 4294901760
          %v2760 = vsub.f32 %v2692, %v2759
          %v2761 = vand.u32 %v2760, 4294901760
          %v2762 = vsub.f32 %v2760, %v2761
          %v2763 = vand.u32 %v2762, 4294901760
          %2764 = vmatpush.msra.mxu0 %v2763
          %v2765 = vand.u32 %v2691, 4294901760
          %v2766 = vsub.f32 %v2691, %v2765
          %v2767 = vand.u32 %v2766, 4294901760
          %v2768 = vsub.f32 %v2766, %v2767
          %v2769 = vand.u32 %v2768, 4294901760
          %2770 = vmatpush.msra.mxu0 %v2769
          %v2771 = vand.u32 %v2690, 4294901760
          %v2772 = vsub.f32 %v2690, %v2771
          %v2773 = vand.u32 %v2772, 4294901760
          %v2774 = vsub.f32 %v2772, %v2773
          %v2775 = vand.u32 %v2774, 4294901760
          %2776 = vmatpush.msra.mxu0 %v2775
          %v2777 = vand.u32 %v2689, 4294901760
          %v2778 = vsub.f32 %v2689, %v2777
          %v2779 = vand.u32 %v2778, 4294901760
          %v2780 = vsub.f32 %v2778, %v2779
          %v2781 = vand.u32 %v2780, 4294901760
          %2782 = vmatpush.msra.mxu0 %v2781
          %v2783 = vand.u32 %v2688, 4294901760
          %v2784 = vsub.f32 %v2688, %v2783
          %v2785 = vand.u32 %v2784, 4294901760
          %v2786 = vsub.f32 %v2784, %v2785
          %v2787 = vand.u32 %v2786, 4294901760
          %2788 = vmatpush.msra.mxu0 %v2787
          %v2789 = vand.u32 %v2687, 4294901760
          %v2790 = vsub.f32 %v2687, %v2789
          %v2791 = vand.u32 %v2790, 4294901760
          %v2792 = vsub.f32 %v2790, %v2791
          %v2793 = vand.u32 %v2792, 4294901760
          %2794 = vmatpush.msra.mxu0 %v2793
          %v2795 = vand.u32 %v2686, 4294901760
          %v2796 = vsub.f32 %v2686, %v2795
          %v2797 = vand.u32 %v2796, 4294901760
          %v2798 = vsub.f32 %v2796, %v2797
          %v2799 = vand.u32 %v2798, 4294901760
          %2800 = vmatpush.msra.mxu0 %v2799
          %v2801 = vand.u32 %v2685, 4294901760
          %v2802 = vsub.f32 %v2685, %v2801
          %v2803 = vand.u32 %v2802, 4294901760
          %v2804 = vsub.f32 %v2802, %v2803
          %v2805 = vand.u32 %v2804, 4294901760
          %2806 = vmatpush.msra.mxu0 %v2805
          %v2807 = vand.u32 %v2684, 4294901760
          %v2808 = vsub.f32 %v2684, %v2807
          %v2809 = vand.u32 %v2808, 4294901760
          %v2810 = vsub.f32 %v2808, %v2809
          %v2811 = vand.u32 %v2810, 4294901760
          %2812 = vmatpush.msra.mxu0 %v2811
          %v2813 = vand.u32 %v2683, 4294901760
          %v2814 = vsub.f32 %v2683, %v2813
          %v2815 = vand.u32 %v2814, 4294901760
          %v2816 = vsub.f32 %v2814, %v2815
          %v2817 = vand.u32 %v2816, 4294901760
          %2818 = vmatpush.msra.mxu0 %v2817
          %v2819 = vand.u32 %v2682, 4294901760
          %v2820 = vsub.f32 %v2682, %v2819
          %v2821 = vand.u32 %v2820, 4294901760
          %v2822 = vsub.f32 %v2820, %v2821
          %v2823 = vand.u32 %v2822, 4294901760
          %2824 = vmatpush.msra.mxu0 %v2823
          %v2825 = vand.u32 %v2681, 4294901760
          %v2826 = vsub.f32 %v2681, %v2825
          %v2827 = vand.u32 %v2826, 4294901760
          %v2828 = vsub.f32 %v2826, %v2827
          %v2829 = vand.u32 %v2828, 4294901760
          %2830 = vmatpush.msra.mxu0 %v2829
          %v2831 = vand.u32 %v2680, 4294901760
          %v2832 = vsub.f32 %v2680, %v2831
          %v2833 = vand.u32 %v2832, 4294901760
          %v2834 = vsub.f32 %v2832, %v2833
          %v2835 = vand.u32 %v2834, 4294901760
          %2836 = vmatpush.msra.mxu0 %v2835
          %v2837 = vand.u32 %v2678, 4294901760
          %2838 = vmatmul.f32.gmra.mxu0 %v2837
          %v2839 = vpop.f32.mrf.mxu0
          %v2840 = vadd.f32 %v2739, %v2839
          %2841 = vdwg.mxu0
          %v2842 = vand.u32 %v2695, 4294901760
          %v2843 = vsub.f32 %v2695, %v2842
          %2844 = vmatpush.msra.mxu0 %v2843
          %v2845 = vand.u32 %v2694, 4294901760
          %v2846 = vsub.f32 %v2694, %v2845
          %2847 = vmatpush.msra.mxu0 %v2846
          %v2848 = vand.u32 %v2693, 4294901760
          %v2849 = vsub.f32 %v2693, %v2848
          %2850 = vmatpush.msra.mxu0 %v2849
          %v2851 = vand.u32 %v2692, 4294901760
          %v2852 = vsub.f32 %v2692, %v2851
          %2853 = vmatpush.msra.mxu0 %v2852
          %v2854 = vand.u32 %v2691, 4294901760
          %v2855 = vsub.f32 %v2691, %v2854
          %2856 = vmatpush.msra.mxu0 %v2855
          %v2857 = vand.u32 %v2690, 4294901760
          %v2858 = vsub.f32 %v2690, %v2857
          %2859 = vmatpush.msra.mxu0 %v2858
          %v2860 = vand.u32 %v2689, 4294901760
          %v2861 = vsub.f32 %v2689, %v2860
          %2862 = vmatpush.msra.mxu0 %v2861
          %v2863 = vand.u32 %v2688, 4294901760
          %v2864 = vsub.f32 %v2688, %v2863
          %2865 = vmatpush.msra.mxu0 %v2864
          %v2866 = vand.u32 %v2687, 4294901760
          %v2867 = vsub.f32 %v2687, %v2866
          %2868 = vmatpush.msra.mxu0 %v2867
          %v2869 = vand.u32 %v2686, 4294901760
          %v2870 = vsub.f32 %v2686, %v2869
          %2871 = vmatpush.msra.mxu0 %v2870
          %v2872 = vand.u32 %v2685, 4294901760
          %v2873 = vsub.f32 %v2685, %v2872
          %2874 = vmatpush.msra.mxu0 %v2873
          %v2875 = vand.u32 %v2684, 4294901760
          %v2876 = vsub.f32 %v2684, %v2875
          %2877 = vmatpush.msra.mxu0 %v2876
          %v2878 = vand.u32 %v2683, 4294901760
          %v2879 = vsub.f32 %v2683, %v2878
          %2880 = vmatpush.msra.mxu0 %v2879
          %v2881 = vand.u32 %v2682, 4294901760
          %v2882 = vsub.f32 %v2682, %v2881
          %2883 = vmatpush.msra.mxu0 %v2882
          %v2884 = vand.u32 %v2681, 4294901760
          %v2885 = vsub.f32 %v2681, %v2884
          %2886 = vmatpush.msra.mxu0 %v2885
          %v2887 = vand.u32 %v2680, 4294901760
          %v2888 = vsub.f32 %v2680, %v2887
          %2889 = vmatpush.msra.mxu0 %v2888
          %v2890 = vand.u32 %v2678, 4294901760
          %v2891 = vsub.f32 %v2678, %v2890
          %2892 = vmatmul.f32.gmra.mxu0 %v2891
          %v2893 = vpop.f32.mrf.mxu0
          %v2894 = vadd.f32 %v2840, %v2893
          %2895 = vdwg.mxu0
          %v2896 = vand.u32 %v2695, 4294901760
          %2897 = vmatpush.msra.mxu0 %v2896
          %v2898 = vand.u32 %v2694, 4294901760
          %2899 = vmatpush.msra.mxu0 %v2898
          %v2900 = vand.u32 %v2693, 4294901760
          %2901 = vmatpush.msra.mxu0 %v2900
          %v2902 = vand.u32 %v2692, 4294901760
          %2903 = vmatpush.msra.mxu0 %v2902
          %v2904 = vand.u32 %v2691, 4294901760
          %2905 = vmatpush.msra.mxu0 %v2904
          %v2906 = vand.u32 %v2690, 4294901760
          %2907 = vmatpush.msra.mxu0 %v2906
          %v2908 = vand.u32 %v2689, 4294901760
          %2909 = vmatpush.msra.mxu0 %v2908
          %v2910 = vand.u32 %v2688, 4294901760
          %2911 = vmatpush.msra.mxu0 %v2910
          %v2912 = vand.u32 %v2687, 4294901760
          %2913 = vmatpush.msra.mxu0 %v2912
          %v2914 = vand.u32 %v2686, 4294901760
          %2915 = vmatpush.msra.mxu0 %v2914
          %v2916 = vand.u32 %v2685, 4294901760
          %2917 = vmatpush.msra.mxu0 %v2916
          %v2918 = vand.u32 %v2684, 4294901760
          %2919 = vmatpush.msra.mxu0 %v2918
          %v2920 = vand.u32 %v2683, 4294901760
          %2921 = vmatpush.msra.mxu0 %v2920
          %v2922 = vand.u32 %v2682, 4294901760
          %2923 = vmatpush.msra.mxu0 %v2922
          %v2924 = vand.u32 %v2681, 4294901760
          %2925 = vmatpush.msra.mxu0 %v2924
          %v2926 = vand.u32 %v2680, 4294901760
          %2927 = vmatpush.msra.mxu0 %v2926
          %v2928 = vand.u32 %v2678, 4294901760
          %v2929 = vsub.f32 %v2678, %v2928
          %v2930 = vand.u32 %v2929, 4294901760
          %2931 = vmatmul.f32.gmra.mxu0 %v2930
          %v2932 = vpop.f32.mrf.mxu0
          %v2933 = vadd.f32 %v2894, %v2932
          %2934 = vdwg.mxu0
          %v2935 = vand.u32 %v2695, 4294901760
          %v2936 = vsub.f32 %v2695, %v2935
          %v2937 = vand.u32 %v2936, 4294901760
          %2938 = vmatpush.msra.mxu0 %v2937
          %v2939 = vand.u32 %v2694, 4294901760
          %v2940 = vsub.f32 %v2694, %v2939
          %v2941 = vand.u32 %v2940, 4294901760
          %2942 = vmatpush.msra.mxu0 %v2941
          %v2943 = vand.u32 %v2693, 4294901760
          %v2944 = vsub.f32 %v2693, %v2943
          %v2945 = vand.u32 %v2944, 4294901760
          %2946 = vmatpush.msra.mxu0 %v2945
          %v2947 = vand.u32 %v2692, 4294901760
          %v2948 = vsub.f32 %v2692, %v2947
          %v2949 = vand.u32 %v2948, 4294901760
          %2950 = vmatpush.msra.mxu0 %v2949
          %v2951 = vand.u32 %v2691, 4294901760
          %v2952 = vsub.f32 %v2691, %v2951
          %v2953 = vand.u32 %v2952, 4294901760
          %2954 = vmatpush.msra.mxu0 %v2953
          %v2955 = vand.u32 %v2690, 4294901760
          %v2956 = vsub.f32 %v2690, %v2955
          %v2957 = vand.u32 %v2956, 4294901760
          %2958 = vmatpush.msra.mxu0 %v2957
          %v2959 = vand.u32 %v2689, 4294901760
          %v2960 = vsub.f32 %v2689, %v2959
          %v2961 = vand.u32 %v2960, 4294901760
          %2962 = vmatpush.msra.mxu0 %v2961
          %v2963 = vand.u32 %v2688, 4294901760
          %v2964 = vsub.f32 %v2688, %v2963
          %v2965 = vand.u32 %v2964, 4294901760
          %2966 = vmatpush.msra.mxu0 %v2965
          %v2967 = vand.u32 %v2687, 4294901760
          %v2968 = vsub.f32 %v2687, %v2967
          %v2969 = vand.u32 %v2968, 4294901760
          %2970 = vmatpush.msra.mxu0 %v2969
          %v2971 = vand.u32 %v2686, 4294901760
          %v2972 = vsub.f32 %v2686, %v2971
          %v2973 = vand.u32 %v2972, 4294901760
          %2974 = vmatpush.msra.mxu0 %v2973
          %v2975 = vand.u32 %v2685, 4294901760
          %v2976 = vsub.f32 %v2685, %v2975
          %v2977 = vand.u32 %v2976, 4294901760
          %2978 = vmatpush.msra.mxu0 %v2977
          %v2979 = vand.u32 %v2684, 4294901760
          %v2980 = vsub.f32 %v2684, %v2979
          %v2981 = vand.u32 %v2980, 4294901760
          %2982 = vmatpush.msra.mxu0 %v2981
          %v2983 = vand.u32 %v2683, 4294901760
          %v2984 = vsub.f32 %v2683, %v2983
          %v2985 = vand.u32 %v2984, 4294901760
          %2986 = vmatpush.msra.mxu0 %v2985
          %v2987 = vand.u32 %v2682, 4294901760
          %v2988 = vsub.f32 %v2682, %v2987
          %v2989 = vand.u32 %v2988, 4294901760
          %2990 = vmatpush.msra.mxu0 %v2989
          %v2991 = vand.u32 %v2681, 4294901760
          %v2992 = vsub.f32 %v2681, %v2991
          %v2993 = vand.u32 %v2992, 4294901760
          %2994 = vmatpush.msra.mxu0 %v2993
          %v2995 = vand.u32 %v2680, 4294901760
          %v2996 = vsub.f32 %v2680, %v2995
          %v2997 = vand.u32 %v2996, 4294901760
          %2998 = vmatpush.msra.mxu0 %v2997
          %v2999 = vand.u32 %v2678, 4294901760
          %3000 = vmatmul.f32.gmra.mxu0 %v2999
          %v3001 = vpop.f32.mrf.mxu0
          %v3002 = vadd.f32 %v2933, %v3001
          %3003 = vdwg.mxu0
          %v3004 = vand.u32 %v2695, 4294901760
          %3005 = vmatpush.msra.mxu0 %v3004
          %v3006 = vand.u32 %v2694, 4294901760
          %3007 = vmatpush.msra.mxu0 %v3006
          %v3008 = vand.u32 %v2693, 4294901760
          %3009 = vmatpush.msra.mxu0 %v3008
          %v3010 = vand.u32 %v2692, 4294901760
          %3011 = vmatpush.msra.mxu0 %v3010
          %v3012 = vand.u32 %v2691, 4294901760
          %3013 = vmatpush.msra.mxu0 %v3012
          %v3014 = vand.u32 %v2690, 4294901760
          %3015 = vmatpush.msra.mxu0 %v3014
          %v3016 = vand.u32 %v2689, 4294901760
          %3017 = vmatpush.msra.mxu0 %v3016
          %v3018 = vand.u32 %v2688, 4294901760
          %3019 = vmatpush.msra.mxu0 %v3018
          %v3020 = vand.u32 %v2687, 4294901760
          %3021 = vmatpush.msra.mxu0 %v3020
          %v3022 = vand.u32 %v2686, 4294901760
          %3023 = vmatpush.msra.mxu0 %v3022
          %v3024 = vand.u32 %v2685, 4294901760
          %3025 = vmatpush.msra.mxu0 %v3024
          %v3026 = vand.u32 %v2684, 4294901760
          %3027 = vmatpush.msra.mxu0 %v3026
          %v3028 = vand.u32 %v2683, 4294901760
          %3029 = vmatpush.msra.mxu0 %v3028
          %v3030 = vand.u32 %v2682, 4294901760
          %3031 = vmatpush.msra.mxu0 %v3030
          %v3032 = vand.u32 %v2681, 4294901760
          %3033 = vmatpush.msra.mxu0 %v3032
          %v3034 = vand.u32 %v2680, 4294901760
          %3035 = vmatpush.msra.mxu0 %v3034
          %v3036 = vand.u32 %v2678, 4294901760
          %3037 = vmatmul.f32.gmra.mxu0 %v3036
          %v3038 = vpop.f32.mrf.mxu0
          %v3039 = vadd.f32 %v3002, %v3038
          %3040 = vdwg.mxu0
          %3041 = vst [vmem:[#allocation9] sm:$0xff] %v3039
        $region96: #{noglass_apply.1} parent=75 // pred_fallthru
          _
        // Predicated region
        $region97: #{noglass_apply.1} parent=75 // pred_check
          %p3042 = pneg %p374
        $region98: #{noglass_apply.1} parent=75 // pred_check_branch
          %3044 = sbr.rel (%p3042) target = $region100
        $region99: #{noglass_apply.1} parent=75 // pred_region
          %3046 = vsyncadd [#allocation5], 0
          %s3048 = sshll.u32 [#allocation9], 4
          %s3049 = int_to_ptr.vmem [resolvable:$true] %s3048
          %s3050 = sshll.u32 %s14, 4
          %s3051 = int_to_ptr.hbm [resolvable:$true] %s3050
          %3053 = dma.vmem_to_hbm [thread:$0]  %s3049, 128, %s3051, [#allocation5]
        $region100: #{noglass_apply.1} parent=75 // pred_fallthru
          _
        // Predicated region
        $region101: #{noglass_apply.1} parent=75 // pred_check
          %p3054 = pneg %p374
        $region102: #{noglass_apply.1} parent=75 // pred_check_branch
          %3056 = sbr.rel (%p3054) target = $region104
        $region103: #{noglass_apply.1} parent=75 // pred_region
          %3058 = dma.done [#allocation5], 128
        $region104: #{noglass_apply.1} parent=75 // pred_fallthru
          _
      $region76: #{noglass_apply.1} parent=5 // pred_fallthru
        _
      %p3059 = scmp.le.s32.totalorder 2, %s27
      // Predicated region
      $region105: #{noglass_apply.1} parent=5 // pred_check
        %p3060 = pneg %p3059
      $region106: #{noglass_apply.1} parent=5 // pred_check_branch
        %3062 = sbr.rel (%p3060) target = $region108
      $region107: #{noglass_apply.1} parent=5 // pred_region
        %s3063 = ssub.s32 %s27, 2
      $region108: #{noglass_apply.1} parent=5 // pred_fallthru
        _
    $region6: #{noglass_apply.1} parent=1 // loop_footer
      %s31 = sadd.s32 1, %s27
    $region7: #{noglass_apply.1} parent=1 // loop_footer_branch
      %26 = sbr.rel target = $region3
    $region8: #{noglass_apply.1} parent=1 // loop_exit
      _
    %3064 = vsyncpa [#allocation4], 1
    %s3065 = scalar_lea.sflag [#allocation4], 1
    %3066 = vsyncpa %s3065, 1
    %3067 = vsyncpa [#allocation7], 1
    %s3068 = scalar_lea.sflag [#allocation7], 1
    %3069 = vsyncpa %s3068, 1
    %3070 = vsyncpa [#allocation5], 1
    %s3071 = scalar_lea.sflag [#allocation5], 1
    %3072 = vsyncpa %s3071, 1

</llo_original>
